<compile_context>
chip_gen: v7x
topology: tpu7x:2x2x1
jax: 0.10.0
libtpu: 0.0.40
codegen_flags: <defaults>
</compile_context>

<pallas_src>
import functools
import math

import jax
import jax.numpy as jnp
from jax.experimental import pallas as pl
from jax.experimental.pallas import tpu as pltpu

_LN_EPS = 1e-5
_GELU_C = math.sqrt(2.0 / math.pi)
_MIB = 1024 * 1024


def _layernorm_f32(x_f32, gamma, beta):
    mean = jnp.mean(x_f32, axis=-1, keepdims=True)
    var = jnp.mean((x_f32 - mean) ** 2, axis=-1, keepdims=True)
    inv = jax.lax.rsqrt(var + _LN_EPS)
    return (x_f32 - mean) * inv * gamma.astype(jnp.float32) + beta.astype(jnp.float32)


def _chip_vmem_bytes():
    try:
        return int(pltpu.get_tpu_info().vmem_capacity_bytes)
    except Exception:
        return 128 * _MIB


def _vmem_limit_bytes(working_set_bytes):
    # Generous multiple of the per-step working set (covers double-buffering +
    # f32 intermediates), capped at ~85% of this chip's physical VMEM
    # (~54 MiB on v7x, ~109 MiB on v5e/v6e).
    cap = int(0.85 * _chip_vmem_bytes())
    return int(min(max(4 * working_set_bytes, 32 * _MIB), cap))


def _const_spec(shape, single_buffer):
    """BlockSpec for a grid-invariant operand (weights / biases / LN params)."""
    index_map = lambda *_: (0,) * len(shape)
    if single_buffer:
        # Grid-invariant blocks are only DMA'd once; skip double-buffering.
        return pl.BlockSpec(shape, index_map, pipeline_mode=pl.Buffered(1))
    return pl.BlockSpec(shape, index_map)


def _divisor_tile(total, want):
    """Largest sublane-aligned tile <= want that divides total (else total)."""
    want = max(1, min(want, total))
    if want == total:
        return total
    for t in range(want, 7, -1):
        if total % t == 0 and t % 8 == 0:
            return t
    return total


# ----------------------------------------------------------------------------
# Kernel 1: LN1 + causal multi-head attention + out-proj + residual
# ----------------------------------------------------------------------------
def _attn_block_kernel(xq_ref, xkv_ref, g1_ref, s1_ref,
                       wq_ref, bq_ref, wkv_ref, bkv_ref, wo_ref, bo_ref,
                       o_ref, *, num_heads):
    # xq_ref: (1, TQ, E) query-row tile; xkv_ref: (1, S, E) full sequence.
    qi = pl.program_id(1)
    tq = xq_ref.shape[1]
    seq, emb = xkv_ref.shape[1], xkv_ref.shape[2]
    head_dim = emb // num_heads
    scale = 1.0 / math.sqrt(head_dim)
    mm_dtype = wq_ref.dtype

    xq = xq_ref[0].astype(jnp.float32)                               # (TQ, E)
    xn_q = _layernorm_f32(xq, g1_ref[...], s1_ref[...]).astype(mm_dtype)
    xn_kv = _layernorm_f32(xkv_ref[0].astype(jnp.float32),
                           g1_ref[...], s1_ref[...]).astype(mm_dtype)

    # Projections: bf16 MXU operands, f32 accumulation.  K and V are fused.
    q = (jnp.dot(xn_q, wq_ref[...], preferred_element_type=jnp.float32)
         + bq_ref[...]).astype(mm_dtype)                             # (TQ, E)
    kv = (jnp.dot(xn_kv, wkv_ref[...], preferred_element_type=jnp.float32)
          + bkv_ref[...]).astype(mm_dtype)                           # (S, 2E)
    k = kv[:, :emb]
    v = kv[:, emb:]

    row = qi * tq + jax.lax.broadcasted_iota(jnp.int32, (tq, seq), 0)
    col = jax.lax.broadcasted_iota(jnp.int32, (tq, seq), 1)
    causal_mask = col > row                  # True = masked (future position)

    ctx_heads = []
    for h in range(num_heads):               # static unroll over heads
        sl = slice(h * head_dim, (h + 1) * head_dim)
        s = jax.lax.dot_general(q[:, sl], k[:, sl], (((1,), (1,)), ((), ())),
                                preferred_element_type=jnp.float32) * scale
        s = jnp.where(causal_mask, -jnp.inf, s)
        s = s - jnp.max(s, axis=-1, keepdims=True)
        p = jnp.exp(s)
        p = p * pl.reciprocal(jnp.sum(p, axis=-1, keepdims=True), approx=True)
        ctx_heads.append(jnp.dot(p.astype(mm_dtype), v[:, sl],
                                 preferred_element_type=jnp.float32))

    # One full-K (K = E) output projection instead of num_heads K=head_dim ones.
    ctx = jnp.concatenate(ctx_heads, axis=-1).astype(mm_dtype)       # (TQ, E)
    attn_out = jnp.dot(ctx, wo_ref[...],
                       preferred_element_type=jnp.float32) + bo_ref[...]
    o_ref[0] = (xq + attn_out).astype(o_ref.dtype)   # residual (dropout = id)


def _attention_residual(x, p, num_heads, *, mm_dtype, q_tile, single_buffer):
    b, s, e = x.shape
    dtype = x.dtype
    mm_b = jnp.dtype(mm_dtype).itemsize

    g1 = p["ln1_g"].reshape(1, e).astype(jnp.float32)
    s1 = p["ln1_b"].reshape(1, e).astype(jnp.float32)
    wq = p["wq"].astype(mm_dtype)
    wkv = jnp.concatenate([p["wk"], p["wv"]], axis=1).astype(mm_dtype)  # (E,2E)
    wo = p["wo"].astype(mm_dtype)
    bq = p["bq"].reshape(1, e).astype(jnp.float32)
    bkv = jnp.concatenate([p["bk"], p["bv"]]).reshape(1, 2 * e).astype(jnp.float32)
    bo = p["bo"].reshape(1, e).astype(jnp.float32)

    tq = _divisor_tile(s, q_tile)
    nq = s // tq

    flops = b * ((4 * nq + 4) * s * e * e + 4 * s * s * e)
    transcendentals = b * num_heads * s * s
    bytes_accessed = 3 * b * s * e * dtype.itemsize + 4 * e * e * mm_b + 6 * e * 4
    working_set = ((2 * tq * e + s * e) * dtype.itemsize       # x / out blocks
                   + 4 * e * e * mm_b + 6 * e * 4              # resident weights
                   + 4 * (3 * tq * e + 3 * s * e)              # f32 q/ctx/out, xn/kv
                   + 4 * 3 * tq * s)                           # scores + iota masks

    kernel = functools.partial(_attn_block_kernel, num_heads=num_heads)
    return pl.pallas_call(
        kernel,
        out_shape=jax.ShapeDtypeStruct((b, s, e), dtype),
        grid_spec=pltpu.PrefetchScalarGridSpec(
            num_scalar_prefetch=0,
            grid=(b, nq),
            in_specs=[
                pl.BlockSpec((1, tq, e), lambda bi, qi: (bi, qi, 0)),  # x (q rows)
                pl.BlockSpec((1, s, e), lambda bi, qi: (bi, 0, 0)),    # x (k/v rows)
                _const_spec((1, e), single_buffer),        # ln1 scale
                _const_spec((1, e), single_buffer),        # ln1 shift
                _const_spec((e, e), single_buffer),        # Wq
                _const_spec((1, e), single_buffer),        # bq
                _const_spec((e, 2 * e), single_buffer),    # W_kv (fused)
                _const_spec((1, 2 * e), single_buffer),    # b_kv (fused)
                _const_spec((e, e), single_buffer),        # Wo
                _const_spec((1, e), single_buffer),        # bo
            ],
            out_specs=pl.BlockSpec((1, tq, e), lambda bi, qi: (bi, qi, 0)),
        ),
        compiler_params=pltpu.CompilerParams(
            # TODO(synk): on v7x consider pltpu.CORE_PARALLEL on these axes to
            # explicitly split batch / q-tiles across the two TensorCores.
            dimension_semantics=("parallel", "parallel"),
            vmem_limit_bytes=_vmem_limit_bytes(working_set)),
        cost_estimate=pl.CostEstimate(flops=flops,
                                      transcendentals=transcendentals,
                                      bytes_accessed=bytes_accessed),
    )(x, x, g1, s1, wq, bq, wkv, bkv, wo, bo)


# ----------------------------------------------------------------------------
# Kernel 2: LN2 + FeedForward (Linear -> GELU(tanh) -> Linear) + residual
# ----------------------------------------------------------------------------
def _ffn_block_kernel(x_ref, g2_ref, s2_ref, w1_ref, b1_ref, w2_ref, b2_ref,
                      o_ref):
    # x_ref: (TM, E) — post-attention residual stream rows.
    xf = x_ref[...].astype(jnp.float32)
    xn = _layernorm_f32(xf, g2_ref[...], s2_ref[...])
    h = jnp.dot(xn.astype(w1_ref.dtype), w1_ref[...],
                preferred_element_type=jnp.float32) + b1_ref[...]
    # GELU, tanh approximation (matches the torch GELU module).
    h = 0.5 * h * (1.0 + jnp.tanh(_GELU_C * (h + 0.044715 * h * h * h)))
    o = jnp.dot(h.astype(w2_ref.dtype), w2_ref[...],
                preferred_element_type=jnp.float32) + b2_ref[...]
    o_ref[...] = (xf + o).astype(o_ref.dtype)   # second residual (dropout = id)


def _ffn_residual(x, p, *, mm_dtype, tile_m, single_buffer):
    b, s, e = x.shape
    dtype = x.dtype
    mm_b = jnp.dtype(mm_dtype).itemsize

    w1 = p["w1"].astype(mm_dtype)
    w2 = p["w2"].astype(mm_dtype)
    hidden = w1.shape[1]
    g2 = p["ln2_g"].reshape(1, e).astype(jnp.float32)
    s2 = p["ln2_b"].reshape(1, e).astype(jnp.float32)
    b1 = p["b1"].reshape(1, hidden).astype(jnp.float32)
    b2 = p["b2"].reshape(1, e).astype(jnp.float32)

    m = b * s
    x2 = x.reshape(m, e)
    tm = _divisor_tile(m, tile_m)
    m_pad = m
    if tm > 2 * tile_m:   # no clean divisor tile; rare — pad the ragged tail
        tm = max(8, (min(tile_m, m) // 8) * 8)
        m_pad = ((m + tm - 1) // tm) * tm
        x2 = jnp.pad(x2, ((0, m_pad - m), (0, 0)))

    flops = 4 * m * e * hidden
    transcendentals = m * hidden
    bytes_accessed = 2 * m * e * dtype.itemsize + 2 * e * hidden * mm_b + (hidden + 3 * e) * 4
    working_set = (2 * tm * e * dtype.itemsize            # in / out blocks
                   + 2 * e * hidden * mm_b                # resident W1/W2
                   + (hidden + 3 * e) * 4                 # biases / LN params
                   + tm * hidden * 4 + 2 * tm * e * 4)    # f32 h / xf / xn

    out2 = pl.pallas_call(
        _ffn_block_kernel,
        out_shape=jax.ShapeDtypeStruct((m_pad, e), dtype),
        grid_spec=pltpu.PrefetchScalarGridSpec(
            num_scalar_prefetch=0,
            grid=(m_pad // tm,),
            in_specs=[
                pl.BlockSpec((tm, e), lambda i: (i, 0)),       # x tile
                _const_spec((1, e), single_buffer),            # ln2 scale
                _const_spec((1, e), single_buffer),            # ln2 shift
                _const_spec((e, hidden), single_buffer),       # W1 (resident)
                _const_spec((1, hidden), single_buffer),       # b1
                _const_spec((hidden, e), single_buffer),       # W2 (resident)
                _const_spec((1, e), single_buffer),            # b2
            ],
            out_specs=pl.BlockSpec((tm, e), lambda i: (i, 0)),
        ),
        compiler_params=pltpu.CompilerParams(
            dimension_semantics=("parallel",),
            vmem_limit_bytes=_vmem_limit_bytes(working_set)),
        cost_estimate=pl.CostEstimate(flops=flops,
                                      transcendentals=transcendentals,
                                      bytes_accessed=bytes_accessed),
    )(x2, g2, s2, w1, b1, w2, b2)

    if m_pad != m:
        out2 = out2[:m]
    return out2.reshape(b, s, e)


# ----------------------------------------------------------------------------
# Full TransformerBlock forward
# ----------------------------------------------------------------------------
@functools.partial(jax.jit, static_argnames=("num_heads", "q_tile", "ffn_tile",
                                              "mm_dtype", "single_buffer_consts"))
def transformer_block(x, params, *, num_heads, q_tile=256, ffn_tile=None,
                      mm_dtype=jnp.bfloat16, single_buffer_consts=True):
    """x: (batch, seq, emb) -> (batch, seq, emb). Eval-mode (dropout = id)."""
    if ffn_tile is None:
        # 512 rows on 128 MiB-VMEM chips (v5e/v6e); 256 on v7x (64 MiB).
        ffn_tile = 512 if _chip_vmem_bytes() >= 96 * _MIB else 256
    x1 = _attention_residual(x, params, num_heads, mm_dtype=mm_dtype,
                             q_tile=q_tile, single_buffer=single_buffer_consts)
    x2 = _ffn_residual(x1, params, mm_dtype=mm_dtype, tile_m=ffn_tile,
                       single_buffer=single_buffer_consts)
    return x2


# ----------------------------------------------------------------------------
# Pure-JAX reference (mirrors the PyTorch forward semantics)
# ----------------------------------------------------------------------------
def _reference_transformer_block(x, p, num_heads):
    def ln(v, g, bias):
        mean = v.mean(-1, keepdims=True)
        var = ((v - mean) ** 2).mean(-1, keepdims=True)
        return g * (v - mean) / jnp.sqrt(var + _LN_EPS) + bias

    b, s, e = x.shape
    hd = e // num_heads
    xf = x.astype(jnp.float32)

    xn = ln(xf, p["ln1_g"], p["ln1_b"])
    q = xn @ p["wq"] + p["bq"]
    k = xn @ p["wk"] + p["bk"]
    v = xn @ p["wv"] + p["bv"]

    def split(t):
        return t.reshape(b, s, num_heads, hd).transpose(0, 2, 1, 3)

    q, k, v = split(q), split(k), split(v)
    scores = jnp.einsum("bhqd,bhkd->bhqk", q, k) / math.sqrt(hd)
    mask = jnp.triu(jnp.ones((s, s), dtype=bool), k=1)
    scores = jnp.where(mask, -jnp.inf, scores)
    attn = jax.nn.softmax(scores, axis=-1)
    ctx = jnp.einsum("bhqk,bhkd->bhqd", attn, v).transpose(0, 2, 1, 3)
    ctx = ctx.reshape(b, s, e)
    x1 = xf + ctx @ p["wo"] + p["bo"]

    xn2 = ln(x1, p["ln2_g"], p["ln2_b"])
    h = xn2 @ p["w1"] + p["b1"]
    h = 0.5 * h * (1.0 + jnp.tanh(_GELU_C * (h + 0.044715 * h ** 3)))
    out = x1 + h @ p["w2"] + p["b2"]
    return out.astype(x.dtype)


if __name__ == "__main__":
    cfg = dict(emb_dim=32, context_length=8, n_heads=4, drop_rate=0.0,
               qkv_bias=True)
    batch, seq = 2, 8
    emb = cfg["emb_dim"]
    hidden = 4 * emb

    key = jax.random.PRNGKey(0)
    ks = jax.random.split(key, 17)

    def w(k, shape, scale=0.02):
        return jax.random.normal(k, shape, dtype=jnp.float32) * scale

    x = jax.random.normal(ks[0], (batch, seq, emb), dtype=jnp.float32)
    params = dict(
        ln1_g=1.0 + 0.1 * jax.random.normal(ks[1], (emb,), jnp.float32),
        ln1_b=w(ks[2], (emb,)),
        wq=w(ks[3], (emb, emb)), bq=w(ks[4], (emb,)),
        wk=w(ks[5], (emb, emb)), bk=w(ks[6], (emb,)),
        wv=w(ks[7], (emb, emb)), bv=w(ks[8], (emb,)),
        wo=w(ks[9], (emb, emb)), bo=w(ks[10], (emb,)),
        ln2_g=1.0 + 0.1 * jax.random.normal(ks[11], (emb,), jnp.float32),
        ln2_b=w(ks[12], (emb,)),
        w1=w(ks[13], (emb, hidden)), b1=w(ks[14], (hidden,)),
        w2=w(ks[15], (hidden, emb)), b2=w(ks[16], (emb,)),
    )

    run = functools.partial(transformer_block, num_heads=cfg["n_heads"])
    try:
        out = jax.block_until_ready(run(x, params))
    except Exception:
        # Fallback if this JAX/Mosaic build rejects pl.Buffered(1) single
        # buffering for grid-invariant blocks; everything else is unchanged.
        out = jax.block_until_ready(run(x, params, single_buffer_consts=False))

    ref = _reference_transformer_block(x, params, cfg["n_heads"])
    assert out.shape == (batch, seq, emb)
    # bf16 MXU operands + approx softmax reciprocal => relaxed tolerance.
    assert jnp.allclose(out.astype(jnp.float32), ref, atol=2e-2, rtol=2e-2), \
        "mismatch vs reference"

    print("KERNEL_OK")
</pallas_src>

<mosaic_0001>
module attributes {stable_mosaic.version = 11 : i64} {
  func.func @_attn_block_kernel(%arg0: i32, %arg1: i32, %arg2: memref<1x8x32xf32, #tpu.memory_space<vmem>>, %arg3: memref<1x8x32xf32, #tpu.memory_space<vmem>>, %arg4: memref<1x32xf32, #tpu.memory_space<vmem>>, %arg5: memref<1x32xf32, #tpu.memory_space<vmem>>, %arg6: memref<32x32xbf16, #tpu.memory_space<vmem>>, %arg7: memref<1x32xf32, #tpu.memory_space<vmem>>, %arg8: memref<32x64xbf16, #tpu.memory_space<vmem>>, %arg9: memref<1x64xf32, #tpu.memory_space<vmem>>, %arg10: memref<32x32xbf16, #tpu.memory_space<vmem>>, %arg11: memref<1x32xf32, #tpu.memory_space<vmem>>, %arg12: memref<1x8x32xf32, #tpu.memory_space<vmem>>) attributes {dimension_semantics = [#tpu.dimension_semantics<parallel>, #tpu.dimension_semantics<parallel>], iteration_bounds = array<i64: 2, 1>, scalar_prefetch = 0 : i64, scratch_operands = 0 : i64, tpu.core_type = #tpu.core_type<tc>, window_params = [{transform_indices = @transform_0, window_bounds = array<i64: 1, 8, 32>}, {transform_indices = @transform_1, window_bounds = array<i64: 1, 8, 32>}, {pipeline_mode = #tpu.pipeline_mode<synchronous>, transform_indices = @transform_2, window_bounds = array<i64: 1, 32>}, {pipeline_mode = #tpu.pipeline_mode<synchronous>, transform_indices = @transform_3, window_bounds = array<i64: 1, 32>}, {pipeline_mode = #tpu.pipeline_mode<synchronous>, transform_indices = @transform_4, window_bounds = array<i64: 32, 32>}, {pipeline_mode = #tpu.pipeline_mode<synchronous>, transform_indices = @transform_5, window_bounds = array<i64: 1, 32>}, {pipeline_mode = #tpu.pipeline_mode<synchronous>, transform_indices = @transform_6, window_bounds = array<i64: 32, 64>}, {pipeline_mode = #tpu.pipeline_mode<synchronous>, transform_indices = @transform_7, window_bounds = array<i64: 1, 64>}, {pipeline_mode = #tpu.pipeline_mode<synchronous>, transform_indices = @transform_8, window_bounds = array<i64: 32, 32>}, {pipeline_mode = #tpu.pipeline_mode<synchronous>, transform_indices = @transform_9, window_bounds = array<i64: 1, 32>}, {transform_indices = @transform_10, window_bounds = array<i64: 1, 8, 32>}]} {
    %c0 = arith.constant 0 : index
    %c0_0 = arith.constant 0 : index
    %c0_1 = arith.constant 0 : index
    %0 = vector.load %arg2[%c0, %c0_0, %c0_1] : memref<1x8x32xf32, #tpu.memory_space<vmem>>, vector<1x8x32xf32>
    %1 = vector.shape_cast %0 : vector<1x8x32xf32> to vector<8x32xf32>
    %c0_2 = arith.constant 0 : index
    %c0_3 = arith.constant 0 : index
    %2 = vector.load %arg4[%c0_2, %c0_3] : memref<1x32xf32, #tpu.memory_space<vmem>>, vector<1x32xf32>
    %c0_4 = arith.constant 0 : index
    %c0_5 = arith.constant 0 : index
    %3 = vector.load %arg5[%c0_4, %c0_5] : memref<1x32xf32, #tpu.memory_space<vmem>>, vector<1x32xf32>
    %cst = arith.constant dense<0.000000e+00> : vector<8xf32>
    %4 = vector.multi_reduction <add>, %1, %cst [1] : vector<8x32xf32> to vector<8xf32>
    %5 = vector.shape_cast %4 : vector<8xf32> to vector<8x1xf32>
    %cst_6 = arith.constant 3.200000e+01 : f32
    %6 = vector.broadcast %cst_6 : f32 to vector<8x1xf32>
    %7 = arith.divf %5, %6 : vector<8x1xf32>
    %8 = vector.broadcast %7 : vector<8x1xf32> to vector<8x32xf32>
    %9 = arith.subf %1, %8 : vector<8x32xf32>
    %10 = arith.mulf %9, %9 : vector<8x32xf32>
    %cst_7 = arith.constant dense<0.000000e+00> : vector<8xf32>
    %11 = vector.multi_reduction <add>, %10, %cst_7 [1] : vector<8x32xf32> to vector<8xf32>
    %12 = vector.shape_cast %11 : vector<8xf32> to vector<8x1xf32>
    %cst_8 = arith.constant 3.200000e+01 : f32
    %13 = vector.broadcast %cst_8 : f32 to vector<8x1xf32>
    %14 = arith.divf %12, %13 : vector<8x1xf32>
    %cst_9 = arith.constant 9.99999974E-6 : f32
    %15 = vector.broadcast %cst_9 : f32 to vector<8x1xf32>
    %16 = arith.addf %14, %15 : vector<8x1xf32>
    %17 = math.rsqrt %16 : vector<8x1xf32>
    %18 = vector.broadcast %7 : vector<8x1xf32> to vector<8x32xf32>
    %19 = arith.subf %1, %18 : vector<8x32xf32>
    %20 = vector.broadcast %17 : vector<8x1xf32> to vector<8x32xf32>
    %21 = arith.mulf %19, %20 : vector<8x32xf32>
    %22 = vector.broadcast %2 : vector<1x32xf32> to vector<8x32xf32>
    %23 = arith.mulf %21, %22 : vector<8x32xf32>
    %24 = vector.broadcast %3 : vector<1x32xf32> to vector<8x32xf32>
    %25 = arith.addf %23, %24 : vector<8x32xf32>
    %26 = arith.truncf %25 : vector<8x32xf32> to vector<8x32xbf16>
    %c0_10 = arith.constant 0 : index
    %c0_11 = arith.constant 0 : index
    %c0_12 = arith.constant 0 : index
    %27 = vector.load %arg3[%c0_10, %c0_11, %c0_12] : memref<1x8x32xf32, #tpu.memory_space<vmem>>, vector<1x8x32xf32>
    %28 = vector.shape_cast %27 : vector<1x8x32xf32> to vector<8x32xf32>
    %c0_13 = arith.constant 0 : index
    %c0_14 = arith.constant 0 : index
    %29 = vector.load %arg4[%c0_13, %c0_14] : memref<1x32xf32, #tpu.memory_space<vmem>>, vector<1x32xf32>
    %c0_15 = arith.constant 0 : index
    %c0_16 = arith.constant 0 : index
    %30 = vector.load %arg5[%c0_15, %c0_16] : memref<1x32xf32, #tpu.memory_space<vmem>>, vector<1x32xf32>
    %cst_17 = arith.constant dense<0.000000e+00> : vector<8xf32>
    %31 = vector.multi_reduction <add>, %28, %cst_17 [1] : vector<8x32xf32> to vector<8xf32>
    %32 = vector.shape_cast %31 : vector<8xf32> to vector<8x1xf32>
    %cst_18 = arith.constant 3.200000e+01 : f32
    %33 = vector.broadcast %cst_18 : f32 to vector<8x1xf32>
    %34 = arith.divf %32, %33 : vector<8x1xf32>
    %35 = vector.broadcast %34 : vector<8x1xf32> to vector<8x32xf32>
    %36 = arith.subf %28, %35 : vector<8x32xf32>
    %37 = arith.mulf %36, %36 : vector<8x32xf32>
    %cst_19 = arith.constant dense<0.000000e+00> : vector<8xf32>
    %38 = vector.multi_reduction <add>, %37, %cst_19 [1] : vector<8x32xf32> to vector<8xf32>
    %39 = vector.shape_cast %38 : vector<8xf32> to vector<8x1xf32>
    %cst_20 = arith.constant 3.200000e+01 : f32
    %40 = vector.broadcast %cst_20 : f32 to vector<8x1xf32>
    %41 = arith.divf %39, %40 : vector<8x1xf32>
    %cst_21 = arith.constant 9.99999974E-6 : f32
    %42 = vector.broadcast %cst_21 : f32 to vector<8x1xf32>
    %43 = arith.addf %41, %42 : vector<8x1xf32>
    %44 = math.rsqrt %43 : vector<8x1xf32>
    %45 = vector.broadcast %34 : vector<8x1xf32> to vector<8x32xf32>
    %46 = arith.subf %28, %45 : vector<8x32xf32>
    %47 = vector.broadcast %44 : vector<8x1xf32> to vector<8x32xf32>
    %48 = arith.mulf %46, %47 : vector<8x32xf32>
    %49 = vector.broadcast %29 : vector<1x32xf32> to vector<8x32xf32>
    %50 = arith.mulf %48, %49 : vector<8x32xf32>
    %51 = vector.broadcast %30 : vector<1x32xf32> to vector<8x32xf32>
    %52 = arith.addf %50, %51 : vector<8x32xf32>
    %53 = arith.truncf %52 : vector<8x32xf32> to vector<8x32xbf16>
    %c0_22 = arith.constant 0 : index
    %c0_23 = arith.constant 0 : index
    %54 = vector.load %arg6[%c0_22, %c0_23] : memref<32x32xbf16, #tpu.memory_space<vmem>>, vector<32x32xbf16>
    %cst_24 = arith.constant dense<0.000000e+00> : vector<8x32xf32>
    %55 = tpu.matmul %26, %54, %cst_24 {dimension_numbers = #tpu.dot_dimension_numbers<[1], [0], [0], [1], [0, 0, 1, 1], [], []>} : vector<8x32xbf16>, vector<32x32xbf16>, vector<8x32xf32> -> vector<8x32xf32>
    %c0_25 = arith.constant 0 : index
    %c0_26 = arith.constant 0 : index
    %56 = vector.load %arg7[%c0_25, %c0_26] : memref<1x32xf32, #tpu.memory_space<vmem>>, vector<1x32xf32>
    %57 = vector.broadcast %56 : vector<1x32xf32> to vector<8x32xf32>
    %58 = arith.addf %55, %57 : vector<8x32xf32>
    %59 = arith.truncf %58 : vector<8x32xf32> to vector<8x32xbf16>
    %c0_27 = arith.constant 0 : index
    %c0_28 = arith.constant 0 : index
    %60 = vector.load %arg8[%c0_27, %c0_28] : memref<32x64xbf16, #tpu.memory_space<vmem>>, vector<32x64xbf16>
    %cst_29 = arith.constant dense<0.000000e+00> : vector<8x64xf32>
    %61 = tpu.matmul %53, %60, %cst_29 {dimension_numbers = #tpu.dot_dimension_numbers<[1], [0], [0], [1], [0, 0, 1, 1], [], []>} : vector<8x32xbf16>, vector<32x64xbf16>, vector<8x64xf32> -> vector<8x64xf32>
    %c0_30 = arith.constant 0 : index
    %c0_31 = arith.constant 0 : index
    %62 = vector.load %arg9[%c0_30, %c0_31] : memref<1x64xf32, #tpu.memory_space<vmem>>, vector<1x64xf32>
    %63 = vector.broadcast %62 : vector<1x64xf32> to vector<8x64xf32>
    %64 = arith.addf %61, %63 : vector<8x64xf32>
    %65 = arith.truncf %64 : vector<8x64xf32> to vector<8x64xbf16>
    %66 = vector.extract_strided_slice %65 {offsets = [0, 0], sizes = [8, 32], strides = [1, 1]} : vector<8x64xbf16> to vector<8x32xbf16>
    %67 = vector.extract_strided_slice %65 {offsets = [0, 32], sizes = [8, 32], strides = [1, 1]} : vector<8x64xbf16> to vector<8x32xbf16>
    %c8_i32 = arith.constant 8 : i32
    %68 = arith.muli %arg1, %c8_i32 : i32
    %69 = tpu.iota {dimensions = array<i32: 0>} : vector<8x8xi32>
    %70 = vector.broadcast %68 : i32 to vector<8x8xi32>
    %71 = arith.addi %70, %69 : vector<8x8xi32>
    %72 = tpu.iota {dimensions = array<i32: 1>} : vector<8x8xi32>
    %73 = arith.cmpi sgt, %72, %71 : vector<8x8xi32>
    %74 = vector.extract_strided_slice %59 {offsets = [0, 0], sizes = [8, 8], strides = [1, 1]} : vector<8x32xbf16> to vector<8x8xbf16>
    %75 = vector.extract_strided_slice %66 {offsets = [0, 0], sizes = [8, 8], strides = [1, 1]} : vector<8x32xbf16> to vector<8x8xbf16>
    %cst_32 = arith.constant dense<0.000000e+00> : vector<8x8xf32>
    %76 = tpu.matmul %74, %75, %cst_32 {dimension_numbers = #tpu.dot_dimension_numbers<[1], [1], [0], [0], [0, 0, 1, 0], [], []>} : vector<8x8xbf16>, vector<8x8xbf16>, vector<8x8xf32> -> vector<8x8xf32>
    %cst_33 = arith.constant 0.353553385 : f32
    %77 = vector.broadcast %cst_33 : f32 to vector<8x8xf32>
    %78 = arith.mulf %76, %77 : vector<8x8xf32>
    %cst_34 = arith.constant 0xFF800000 : f32
    %79 = vector.broadcast %cst_34 : f32 to vector<8x8xf32>
    %80 = arith.select %73, %79, %78 : vector<8x8xi1>, vector<8x8xf32>
    %cst_35 = arith.constant dense<0xFF800000> : vector<8xf32>
    %81 = vector.multi_reduction <maximumf>, %80, %cst_35 [1] : vector<8x8xf32> to vector<8xf32>
    %82 = vector.shape_cast %81 : vector<8xf32> to vector<8x1xf32>
    %83 = vector.broadcast %82 : vector<8x1xf32> to vector<8x8xf32>
    %84 = arith.subf %80, %83 : vector<8x8xf32>
    %85 = math.exp %84 : vector<8x8xf32>
    %cst_36 = arith.constant dense<0.000000e+00> : vector<8xf32>
    %86 = vector.multi_reduction <add>, %85, %cst_36 [1] : vector<8x8xf32> to vector<8xf32>
    %87 = vector.shape_cast %86 : vector<8xf32> to vector<8x1xf32>
    %88 = tpu.reciprocal %87 {approx = true} : vector<8x1xf32> -> vector<8x1xf32>
    %89 = vector.broadcast %88 : vector<8x1xf32> to vector<8x8xf32>
    %90 = arith.mulf %85, %89 : vector<8x8xf32>
    %91 = arith.truncf %90 : vector<8x8xf32> to vector<8x8xbf16>
    %92 = vector.extract_strided_slice %67 {offsets = [0, 0], sizes = [8, 8], strides = [1, 1]} : vector<8x32xbf16> to vector<8x8xbf16>
    %cst_37 = arith.constant dense<0.000000e+00> : vector<8x8xf32>
    %93 = tpu.matmul %91, %92, %cst_37 {dimension_numbers = #tpu.dot_dimension_numbers<[1], [0], [0], [1], [0, 0, 1, 1], [], []>} : vector<8x8xbf16>, vector<8x8xbf16>, vector<8x8xf32> -> vector<8x8xf32>
    %94 = vector.extract_strided_slice %59 {offsets = [0, 8], sizes = [8, 8], strides = [1, 1]} : vector<8x32xbf16> to vector<8x8xbf16>
    %95 = vector.extract_strided_slice %66 {offsets = [0, 8], sizes = [8, 8], strides = [1, 1]} : vector<8x32xbf16> to vector<8x8xbf16>
    %cst_38 = arith.constant dense<0.000000e+00> : vector<8x8xf32>
    %96 = tpu.matmul %94, %95, %cst_38 {dimension_numbers = #tpu.dot_dimension_numbers<[1], [1], [0], [0], [0, 0, 1, 0], [], []>} : vector<8x8xbf16>, vector<8x8xbf16>, vector<8x8xf32> -> vector<8x8xf32>
    %cst_39 = arith.constant 0.353553385 : f32
    %97 = vector.broadcast %cst_39 : f32 to vector<8x8xf32>
    %98 = arith.mulf %96, %97 : vector<8x8xf32>
    %cst_40 = arith.constant 0xFF800000 : f32
    %99 = vector.broadcast %cst_40 : f32 to vector<8x8xf32>
    %100 = arith.select %73, %99, %98 : vector<8x8xi1>, vector<8x8xf32>
    %cst_41 = arith.constant dense<0xFF800000> : vector<8xf32>
    %101 = vector.multi_reduction <maximumf>, %100, %cst_41 [1] : vector<8x8xf32> to vector<8xf32>
    %102 = vector.shape_cast %101 : vector<8xf32> to vector<8x1xf32>
    %103 = vector.broadcast %102 : vector<8x1xf32> to vector<8x8xf32>
    %104 = arith.subf %100, %103 : vector<8x8xf32>
    %105 = math.exp %104 : vector<8x8xf32>
    %cst_42 = arith.constant dense<0.000000e+00> : vector<8xf32>
    %106 = vector.multi_reduction <add>, %105, %cst_42 [1] : vector<8x8xf32> to vector<8xf32>
    %107 = vector.shape_cast %106 : vector<8xf32> to vector<8x1xf32>
    %108 = tpu.reciprocal %107 {approx = true} : vector<8x1xf32> -> vector<8x1xf32>
    %109 = vector.broadcast %108 : vector<8x1xf32> to vector<8x8xf32>
    %110 = arith.mulf %105, %109 : vector<8x8xf32>
    %111 = arith.truncf %110 : vector<8x8xf32> to vector<8x8xbf16>
    %112 = vector.extract_strided_slice %67 {offsets = [0, 8], sizes = [8, 8], strides = [1, 1]} : vector<8x32xbf16> to vector<8x8xbf16>
    %cst_43 = arith.constant dense<0.000000e+00> : vector<8x8xf32>
    %113 = tpu.matmul %111, %112, %cst_43 {dimension_numbers = #tpu.dot_dimension_numbers<[1], [0], [0], [1], [0, 0, 1, 1], [], []>} : vector<8x8xbf16>, vector<8x8xbf16>, vector<8x8xf32> -> vector<8x8xf32>
    %114 = vector.extract_strided_slice %59 {offsets = [0, 16], sizes = [8, 8], strides = [1, 1]} : vector<8x32xbf16> to vector<8x8xbf16>
    %115 = vector.extract_strided_slice %66 {offsets = [0, 16], sizes = [8, 8], strides = [1, 1]} : vector<8x32xbf16> to vector<8x8xbf16>
    %cst_44 = arith.constant dense<0.000000e+00> : vector<8x8xf32>
    %116 = tpu.matmul %114, %115, %cst_44 {dimension_numbers = #tpu.dot_dimension_numbers<[1], [1], [0], [0], [0, 0, 1, 0], [], []>} : vector<8x8xbf16>, vector<8x8xbf16>, vector<8x8xf32> -> vector<8x8xf32>
    %cst_45 = arith.constant 0.353553385 : f32
    %117 = vector.broadcast %cst_45 : f32 to vector<8x8xf32>
    %118 = arith.mulf %116, %117 : vector<8x8xf32>
    %cst_46 = arith.constant 0xFF800000 : f32
    %119 = vector.broadcast %cst_46 : f32 to vector<8x8xf32>
    %120 = arith.select %73, %119, %118 : vector<8x8xi1>, vector<8x8xf32>
    %cst_47 = arith.constant dense<0xFF800000> : vector<8xf32>
    %121 = vector.multi_reduction <maximumf>, %120, %cst_47 [1] : vector<8x8xf32> to vector<8xf32>
    %122 = vector.shape_cast %121 : vector<8xf32> to vector<8x1xf32>
    %123 = vector.broadcast %122 : vector<8x1xf32> to vector<8x8xf32>
    %124 = arith.subf %120, %123 : vector<8x8xf32>
    %125 = math.exp %124 : vector<8x8xf32>
    %cst_48 = arith.constant dense<0.000000e+00> : vector<8xf32>
    %126 = vector.multi_reduction <add>, %125, %cst_48 [1] : vector<8x8xf32> to vector<8xf32>
    %127 = vector.shape_cast %126 : vector<8xf32> to vector<8x1xf32>
    %128 = tpu.reciprocal %127 {approx = true} : vector<8x1xf32> -> vector<8x1xf32>
    %129 = vector.broadcast %128 : vector<8x1xf32> to vector<8x8xf32>
    %130 = arith.mulf %125, %129 : vector<8x8xf32>
    %131 = arith.truncf %130 : vector<8x8xf32> to vector<8x8xbf16>
    %132 = vector.extract_strided_slice %67 {offsets = [0, 16], sizes = [8, 8], strides = [1, 1]} : vector<8x32xbf16> to vector<8x8xbf16>
    %cst_49 = arith.constant dense<0.000000e+00> : vector<8x8xf32>
    %133 = tpu.matmul %131, %132, %cst_49 {dimension_numbers = #tpu.dot_dimension_numbers<[1], [0], [0], [1], [0, 0, 1, 1], [], []>} : vector<8x8xbf16>, vector<8x8xbf16>, vector<8x8xf32> -> vector<8x8xf32>
    %134 = vector.extract_strided_slice %59 {offsets = [0, 24], sizes = [8, 8], strides = [1, 1]} : vector<8x32xbf16> to vector<8x8xbf16>
    %135 = vector.extract_strided_slice %66 {offsets = [0, 24], sizes = [8, 8], strides = [1, 1]} : vector<8x32xbf16> to vector<8x8xbf16>
    %cst_50 = arith.constant dense<0.000000e+00> : vector<8x8xf32>
    %136 = tpu.matmul %134, %135, %cst_50 {dimension_numbers = #tpu.dot_dimension_numbers<[1], [1], [0], [0], [0, 0, 1, 0], [], []>} : vector<8x8xbf16>, vector<8x8xbf16>, vector<8x8xf32> -> vector<8x8xf32>
    %cst_51 = arith.constant 0.353553385 : f32
    %137 = vector.broadcast %cst_51 : f32 to vector<8x8xf32>
    %138 = arith.mulf %136, %137 : vector<8x8xf32>
    %cst_52 = arith.constant 0xFF800000 : f32
    %139 = vector.broadcast %cst_52 : f32 to vector<8x8xf32>
    %140 = arith.select %73, %139, %138 : vector<8x8xi1>, vector<8x8xf32>
    %cst_53 = arith.constant dense<0xFF800000> : vector<8xf32>
    %141 = vector.multi_reduction <maximumf>, %140, %cst_53 [1] : vector<8x8xf32> to vector<8xf32>
    %142 = vector.shape_cast %141 : vector<8xf32> to vector<8x1xf32>
    %143 = vector.broadcast %142 : vector<8x1xf32> to vector<8x8xf32>
    %144 = arith.subf %140, %143 : vector<8x8xf32>
    %145 = math.exp %144 : vector<8x8xf32>
    %cst_54 = arith.constant dense<0.000000e+00> : vector<8xf32>
    %146 = vector.multi_reduction <add>, %145, %cst_54 [1] : vector<8x8xf32> to vector<8xf32>
    %147 = vector.shape_cast %146 : vector<8xf32> to vector<8x1xf32>
    %148 = tpu.reciprocal %147 {approx = true} : vector<8x1xf32> -> vector<8x1xf32>
    %149 = vector.broadcast %148 : vector<8x1xf32> to vector<8x8xf32>
    %150 = arith.mulf %145, %149 : vector<8x8xf32>
    %151 = arith.truncf %150 : vector<8x8xf32> to vector<8x8xbf16>
    %152 = vector.extract_strided_slice %67 {offsets = [0, 24], sizes = [8, 8], strides = [1, 1]} : vector<8x32xbf16> to vector<8x8xbf16>
    %cst_55 = arith.constant dense<0.000000e+00> : vector<8x8xf32>
    %153 = tpu.matmul %151, %152, %cst_55 {dimension_numbers = #tpu.dot_dimension_numbers<[1], [0], [0], [1], [0, 0, 1, 1], [], []>} : vector<8x8xbf16>, vector<8x8xbf16>, vector<8x8xf32> -> vector<8x8xf32>
    %154 = tpu.concatenate %93, %113, %133, %153 in 1 : vector<8x8xf32>, vector<8x8xf32>, vector<8x8xf32>, vector<8x8xf32> -> vector<8x32xf32>
    %155 = arith.truncf %154 : vector<8x32xf32> to vector<8x32xbf16>
    %c0_56 = arith.constant 0 : index
    %c0_57 = arith.constant 0 : index
    %156 = vector.load %arg10[%c0_56, %c0_57] : memref<32x32xbf16, #tpu.memory_space<vmem>>, vector<32x32xbf16>
    %cst_58 = arith.constant dense<0.000000e+00> : vector<8x32xf32>
    %157 = tpu.matmul %155, %156, %cst_58 {dimension_numbers = #tpu.dot_dimension_numbers<[1], [0], [0], [1], [0, 0, 1, 1], [], []>} : vector<8x32xbf16>, vector<32x32xbf16>, vector<8x32xf32> -> vector<8x32xf32>
    %c0_59 = arith.constant 0 : index
    %c0_60 = arith.constant 0 : index
    %158 = vector.load %arg11[%c0_59, %c0_60] : memref<1x32xf32, #tpu.memory_space<vmem>>, vector<1x32xf32>
    %159 = vector.broadcast %158 : vector<1x32xf32> to vector<8x32xf32>
    %160 = arith.addf %157, %159 : vector<8x32xf32>
    %161 = arith.addf %1, %160 : vector<8x32xf32>
    %c0_61 = arith.constant 0 : index
    %c0_62 = arith.constant 0 : index
    %c0_63 = arith.constant 0 : index
    %162 = vector.load %arg12[%c0_61, %c0_62, %c0_63] : memref<1x8x32xf32, #tpu.memory_space<vmem>>, vector<1x8x32xf32>
    %163 = vector.shape_cast %162 : vector<1x8x32xf32> to vector<8x32xf32>
    %164 = vector.shape_cast %161 : vector<8x32xf32> to vector<1x8x32xf32>
    tpu.vector_store %arg12[%c0_61, %c0_62, %c0_63], %164 {strides = array<i32>} : memref<1x8x32xf32, #tpu.memory_space<vmem>>, vector<1x8x32xf32>,
    return
  }
  func.func @transform_0(%arg0: i32, %arg1: i32) -> (i32, i32, i32) {
    %c0_i32 = arith.constant 0 : i32
    %c0_i32_0 = arith.constant 0 : i32
    return %arg0, %arg1, %c0_i32 : i32, i32, i32
  }
  func.func @transform_1(%arg0: i32, %arg1: i32) -> (i32, i32, i32) {
    %c0_i32 = arith.constant 0 : i32
    %c0_i32_0 = arith.constant 0 : i32
    %c0_i32_1 = arith.constant 0 : i32
    return %arg0, %c0_i32, %c0_i32_0 : i32, i32, i32
  }
  func.func @transform_2(%arg0: i32, %arg1: i32) -> (i32, i32) {
    %c0_i32 = arith.constant 0 : i32
    %c0_i32_0 = arith.constant 0 : i32
    %c0_i32_1 = arith.constant 0 : i32
    return %c0_i32, %c0_i32_0 : i32, i32
  }
  func.func @transform_3(%arg0: i32, %arg1: i32) -> (i32, i32) {
    %c0_i32 = arith.constant 0 : i32
    %c0_i32_0 = arith.constant 0 : i32
    %c0_i32_1 = arith.constant 0 : i32
    return %c0_i32, %c0_i32_0 : i32, i32
  }
  func.func @transform_4(%arg0: i32, %arg1: i32) -> (i32, i32) {
    %c0_i32 = arith.constant 0 : i32
    %c0_i32_0 = arith.constant 0 : i32
    %c0_i32_1 = arith.constant 0 : i32
    return %c0_i32, %c0_i32_0 : i32, i32
  }
  func.func @transform_5(%arg0: i32, %arg1: i32) -> (i32, i32) {
    %c0_i32 = arith.constant 0 : i32
    %c0_i32_0 = arith.constant 0 : i32
    %c0_i32_1 = arith.constant 0 : i32
    return %c0_i32, %c0_i32_0 : i32, i32
  }
  func.func @transform_6(%arg0: i32, %arg1: i32) -> (i32, i32) {
    %c0_i32 = arith.constant 0 : i32
    %c0_i32_0 = arith.constant 0 : i32
    %c0_i32_1 = arith.constant 0 : i32
    return %c0_i32, %c0_i32_0 : i32, i32
  }
  func.func @transform_7(%arg0: i32, %arg1: i32) -> (i32, i32) {
    %c0_i32 = arith.constant 0 : i32
    %c0_i32_0 = arith.constant 0 : i32
    %c0_i32_1 = arith.constant 0 : i32
    return %c0_i32, %c0_i32_0 : i32, i32
  }
  func.func @transform_8(%arg0: i32, %arg1: i32) -> (i32, i32) {
    %c0_i32 = arith.constant 0 : i32
    %c0_i32_0 = arith.constant 0 : i32
    %c0_i32_1 = arith.constant 0 : i32
    return %c0_i32, %c0_i32_0 : i32, i32
  }
  func.func @transform_9(%arg0: i32, %arg1: i32) -> (i32, i32) {
    %c0_i32 = arith.constant 0 : i32
    %c0_i32_0 = arith.constant 0 : i32
    %c0_i32_1 = arith.constant 0 : i32
    return %c0_i32, %c0_i32_0 : i32, i32
  }
  func.func @transform_10(%arg0: i32, %arg1: i32) -> (i32, i32, i32) {
    %c0_i32 = arith.constant 0 : i32
    %c0_i32_0 = arith.constant 0 : i32
    return %arg0, %arg1, %c0_i32 : i32, i32, i32
  }
}

module attributes {stable_mosaic.version = 11 : i64} {
  func.func @_ffn_block_kernel(%arg0: i32, %arg1: memref<16x32xf32, #tpu.memory_space<vmem>>, %arg2: memref<1x32xf32, #tpu.memory_space<vmem>>, %arg3: memref<1x32xf32, #tpu.memory_space<vmem>>, %arg4: memref<32x128xbf16, #tpu.memory_space<vmem>>, %arg5: memref<1x128xf32, #tpu.memory_space<vmem>>, %arg6: memref<128x32xbf16, #tpu.memory_space<vmem>>, %arg7: memref<1x32xf32, #tpu.memory_space<vmem>>, %arg8: memref<16x32xf32, #tpu.memory_space<vmem>>) attributes {dimension_semantics = [#tpu.dimension_semantics<parallel>], iteration_bounds = array<i64: 1>, scalar_prefetch = 0 : i64, scratch_operands = 0 : i64, tpu.core_type = #tpu.core_type<tc>, window_params = [{transform_indices = @transform_0, window_bounds = array<i64: 16, 32>}, {pipeline_mode = #tpu.pipeline_mode<synchronous>, transform_indices = @transform_1, window_bounds = array<i64: 1, 32>}, {pipeline_mode = #tpu.pipeline_mode<synchronous>, transform_indices = @transform_2, window_bounds = array<i64: 1, 32>}, {pipeline_mode = #tpu.pipeline_mode<synchronous>, transform_indices = @transform_3, window_bounds = array<i64: 32, 128>}, {pipeline_mode = #tpu.pipeline_mode<synchronous>, transform_indices = @transform_4, window_bounds = array<i64: 1, 128>}, {pipeline_mode = #tpu.pipeline_mode<synchronous>, transform_indices = @transform_5, window_bounds = array<i64: 128, 32>}, {pipeline_mode = #tpu.pipeline_mode<synchronous>, transform_indices = @transform_6, window_bounds = array<i64: 1, 32>}, {transform_indices = @transform_7, window_bounds = array<i64: 16, 32>}]} {
    %c0 = arith.constant 0 : index
    %c0_0 = arith.constant 0 : index
    %0 = vector.load %arg1[%c0, %c0_0] : memref<16x32xf32, #tpu.memory_space<vmem>>, vector<16x32xf32>
    %c0_1 = arith.constant 0 : index
    %c0_2 = arith.constant 0 : index
    %1 = vector.load %arg2[%c0_1, %c0_2] : memref<1x32xf32, #tpu.memory_space<vmem>>, vector<1x32xf32>
    %c0_3 = arith.constant 0 : index
    %c0_4 = arith.constant 0 : index
    %2 = vector.load %arg3[%c0_3, %c0_4] : memref<1x32xf32, #tpu.memory_space<vmem>>, vector<1x32xf32>
    %cst = arith.constant dense<0.000000e+00> : vector<16xf32>
    %3 = vector.multi_reduction <add>, %0, %cst [1] : vector<16x32xf32> to vector<16xf32>
    %4 = vector.shape_cast %3 : vector<16xf32> to vector<16x1xf32>
    %cst_5 = arith.constant 3.200000e+01 : f32
    %5 = vector.broadcast %cst_5 : f32 to vector<16x1xf32>
    %6 = arith.divf %4, %5 : vector<16x1xf32>
    %7 = vector.broadcast %6 : vector<16x1xf32> to vector<16x32xf32>
    %8 = arith.subf %0, %7 : vector<16x32xf32>
    %9 = arith.mulf %8, %8 : vector<16x32xf32>
    %cst_6 = arith.constant dense<0.000000e+00> : vector<16xf32>
    %10 = vector.multi_reduction <add>, %9, %cst_6 [1] : vector<16x32xf32> to vector<16xf32>
    %11 = vector.shape_cast %10 : vector<16xf32> to vector<16x1xf32>
    %cst_7 = arith.constant 3.200000e+01 : f32
    %12 = vector.broadcast %cst_7 : f32 to vector<16x1xf32>
    %13 = arith.divf %11, %12 : vector<16x1xf32>
    %cst_8 = arith.constant 9.99999974E-6 : f32
    %14 = vector.broadcast %cst_8 : f32 to vector<16x1xf32>
    %15 = arith.addf %13, %14 : vector<16x1xf32>
    %16 = math.rsqrt %15 : vector<16x1xf32>
    %17 = vector.broadcast %6 : vector<16x1xf32> to vector<16x32xf32>
    %18 = arith.subf %0, %17 : vector<16x32xf32>
    %19 = vector.broadcast %16 : vector<16x1xf32> to vector<16x32xf32>
    %20 = arith.mulf %18, %19 : vector<16x32xf32>
    %21 = vector.broadcast %1 : vector<1x32xf32> to vector<16x32xf32>
    %22 = arith.mulf %20, %21 : vector<16x32xf32>
    %23 = vector.broadcast %2 : vector<1x32xf32> to vector<16x32xf32>
    %24 = arith.addf %22, %23 : vector<16x32xf32>
    %25 = arith.truncf %24 : vector<16x32xf32> to vector<16x32xbf16>
    %c0_9 = arith.constant 0 : index
    %c0_10 = arith.constant 0 : index
    %26 = vector.load %arg4[%c0_9, %c0_10] : memref<32x128xbf16, #tpu.memory_space<vmem>>, vector<32x128xbf16>
    %cst_11 = arith.constant dense<0.000000e+00> : vector<16x128xf32>
    %27 = tpu.matmul %25, %26, %cst_11 {dimension_numbers = #tpu.dot_dimension_numbers<[1], [0], [0], [1], [0, 0, 1, 1], [], []>} : vector<16x32xbf16>, vector<32x128xbf16>, vector<16x128xf32> -> vector<16x128xf32>
    %c0_12 = arith.constant 0 : index
    %c0_13 = arith.constant 0 : index
    %28 = vector.load %arg5[%c0_12, %c0_13] : memref<1x128xf32, #tpu.memory_space<vmem>>, vector<1x128xf32>
    %29 = vector.broadcast %28 : vector<1x128xf32> to vector<16x128xf32>
    %30 = arith.addf %27, %29 : vector<16x128xf32>
    %cst_14 = arith.constant 5.000000e-01 : f32
    %31 = vector.broadcast %cst_14 : f32 to vector<16x128xf32>
    %32 = arith.mulf %31, %30 : vector<16x128xf32>
    %cst_15 = arith.constant 4.471500e-02 : f32
    %33 = vector.broadcast %cst_15 : f32 to vector<16x128xf32>
    %34 = arith.mulf %33, %30 : vector<16x128xf32>
    %35 = arith.mulf %34, %30 : vector<16x128xf32>
    %36 = arith.mulf %35, %30 : vector<16x128xf32>
    %37 = arith.addf %30, %36 : vector<16x128xf32>
    %cst_16 = arith.constant 0.797884583 : f32
    %38 = vector.broadcast %cst_16 : f32 to vector<16x128xf32>
    %39 = arith.mulf %38, %37 : vector<16x128xf32>
    %40 = math.tanh %39 : vector<16x128xf32>
    %cst_17 = arith.constant 1.000000e+00 : f32
    %41 = vector.broadcast %cst_17 : f32 to vector<16x128xf32>
    %42 = arith.addf %41, %40 : vector<16x128xf32>
    %43 = arith.mulf %32, %42 : vector<16x128xf32>
    %44 = arith.truncf %43 : vector<16x128xf32> to vector<16x128xbf16>
    %c0_18 = arith.constant 0 : index
    %c0_19 = arith.constant 0 : index
    %45 = vector.load %arg6[%c0_18, %c0_19] : memref<128x32xbf16, #tpu.memory_space<vmem>>, vector<128x32xbf16>
    %cst_20 = arith.constant dense<0.000000e+00> : vector<16x32xf32>
    %46 = tpu.matmul %44, %45, %cst_20 {dimension_numbers = #tpu.dot_dimension_numbers<[1], [0], [0], [1], [0, 0, 1, 1], [], []>} : vector<16x128xbf16>, vector<128x32xbf16>, vector<16x32xf32> -> vector<16x32xf32>
    %c0_21 = arith.constant 0 : index
    %c0_22 = arith.constant 0 : index
    %47 = vector.load %arg7[%c0_21, %c0_22] : memref<1x32xf32, #tpu.memory_space<vmem>>, vector<1x32xf32>
    %48 = vector.broadcast %47 : vector<1x32xf32> to vector<16x32xf32>
    %49 = arith.addf %46, %48 : vector<16x32xf32>
    %50 = arith.addf %0, %49 : vector<16x32xf32>
    %c0_23 = arith.constant 0 : index
    %c0_24 = arith.constant 0 : index
    %51 = vector.load %arg8[%c0_23, %c0_24] : memref<16x32xf32, #tpu.memory_space<vmem>>, vector<16x32xf32>
    tpu.vector_store %arg8[%c0_23, %c0_24], %50 {strides = array<i32>} : memref<16x32xf32, #tpu.memory_space<vmem>>, vector<16x32xf32>,
    return
  }
  func.func @transform_0(%arg0: i32) -> (i32, i32) {
    %c0_i32 = arith.constant 0 : i32
    %c0_i32_0 = arith.constant 0 : i32
    return %arg0, %c0_i32 : i32, i32
  }
  func.func @transform_1(%arg0: i32) -> (i32, i32) {
    %c0_i32 = arith.constant 0 : i32
    %c0_i32_0 = arith.constant 0 : i32
    %c0_i32_1 = arith.constant 0 : i32
    return %c0_i32, %c0_i32_0 : i32, i32
  }
  func.func @transform_2(%arg0: i32) -> (i32, i32) {
    %c0_i32 = arith.constant 0 : i32
    %c0_i32_0 = arith.constant 0 : i32
    %c0_i32_1 = arith.constant 0 : i32
    return %c0_i32, %c0_i32_0 : i32, i32
  }
  func.func @transform_3(%arg0: i32) -> (i32, i32) {
    %c0_i32 = arith.constant 0 : i32
    %c0_i32_0 = arith.constant 0 : i32
    %c0_i32_1 = arith.constant 0 : i32
    return %c0_i32, %c0_i32_0 : i32, i32
  }
  func.func @transform_4(%arg0: i32) -> (i32, i32) {
    %c0_i32 = arith.constant 0 : i32
    %c0_i32_0 = arith.constant 0 : i32
    %c0_i32_1 = arith.constant 0 : i32
    return %c0_i32, %c0_i32_0 : i32, i32
  }
  func.func @transform_5(%arg0: i32) -> (i32, i32) {
    %c0_i32 = arith.constant 0 : i32
    %c0_i32_0 = arith.constant 0 : i32
    %c0_i32_1 = arith.constant 0 : i32
    return %c0_i32, %c0_i32_0 : i32, i32
  }
  func.func @transform_6(%arg0: i32) -> (i32, i32) {
    %c0_i32 = arith.constant 0 : i32
    %c0_i32_0 = arith.constant 0 : i32
    %c0_i32_1 = arith.constant 0 : i32
    return %c0_i32, %c0_i32_0 : i32, i32
  }
  func.func @transform_7(%arg0: i32) -> (i32, i32) {
    %c0_i32 = arith.constant 0 : i32
    %c0_i32_0 = arith.constant 0 : i32
    return %arg0, %c0_i32 : i32, i32
  }
}

module attributes {stable_mosaic.version = 11 : i64} {
  func.func @_attn_block_kernel(%arg0: i32, %arg1: i32, %arg2: memref<1x8x32xf32, #tpu.memory_space<vmem>>, %arg3: memref<1x8x32xf32, #tpu.memory_space<vmem>>, %arg4: memref<1x32xf32, #tpu.memory_space<vmem>>, %arg5: memref<1x32xf32, #tpu.memory_space<vmem>>, %arg6: memref<32x32xbf16, #tpu.memory_space<vmem>>, %arg7: memref<1x32xf32, #tpu.memory_space<vmem>>, %arg8: memref<32x64xbf16, #tpu.memory_space<vmem>>, %arg9: memref<1x64xf32, #tpu.memory_space<vmem>>, %arg10: memref<32x32xbf16, #tpu.memory_space<vmem>>, %arg11: memref<1x32xf32, #tpu.memory_space<vmem>>, %arg12: memref<1x8x32xf32, #tpu.memory_space<vmem>>) attributes {dimension_semantics = [#tpu.dimension_semantics<parallel>, #tpu.dimension_semantics<parallel>], iteration_bounds = array<i64: 2, 1>, scalar_prefetch = 0 : i64, scratch_operands = 0 : i64, tpu.core_type = #tpu.core_type<tc>, window_params = [{transform_indices = @transform_0, window_bounds = array<i64: 1, 8, 32>}, {transform_indices = @transform_1, window_bounds = array<i64: 1, 8, 32>}, {pipeline_mode = #tpu.pipeline_mode<synchronous>, transform_indices = @transform_2, window_bounds = array<i64: 1, 32>}, {pipeline_mode = #tpu.pipeline_mode<synchronous>, transform_indices = @transform_3, window_bounds = array<i64: 1, 32>}, {pipeline_mode = #tpu.pipeline_mode<synchronous>, transform_indices = @transform_4, window_bounds = array<i64: 32, 32>}, {pipeline_mode = #tpu.pipeline_mode<synchronous>, transform_indices = @transform_5, window_bounds = array<i64: 1, 32>}, {pipeline_mode = #tpu.pipeline_mode<synchronous>, transform_indices = @transform_6, window_bounds = array<i64: 32, 64>}, {pipeline_mode = #tpu.pipeline_mode<synchronous>, transform_indices = @transform_7, window_bounds = array<i64: 1, 64>}, {pipeline_mode = #tpu.pipeline_mode<synchronous>, transform_indices = @transform_8, window_bounds = array<i64: 32, 32>}, {pipeline_mode = #tpu.pipeline_mode<synchronous>, transform_indices = @transform_9, window_bounds = array<i64: 1, 32>}, {transform_indices = @transform_10, window_bounds = array<i64: 1, 8, 32>}]} {
    %c0 = arith.constant 0 : index
    %c0_0 = arith.constant 0 : index
    %c0_1 = arith.constant 0 : index
    %0 = vector.load %arg2[%c0, %c0_0, %c0_1] : memref<1x8x32xf32, #tpu.memory_space<vmem>>, vector<1x8x32xf32>
    %1 = vector.shape_cast %0 : vector<1x8x32xf32> to vector<8x32xf32>
    %c0_2 = arith.constant 0 : index
    %c0_3 = arith.constant 0 : index
    %2 = vector.load %arg4[%c0_2, %c0_3] : memref<1x32xf32, #tpu.memory_space<vmem>>, vector<1x32xf32>
    %c0_4 = arith.constant 0 : index
    %c0_5 = arith.constant 0 : index
    %3 = vector.load %arg5[%c0_4, %c0_5] : memref<1x32xf32, #tpu.memory_space<vmem>>, vector<1x32xf32>
    %cst = arith.constant dense<0.000000e+00> : vector<8xf32>
    %4 = vector.multi_reduction <add>, %1, %cst [1] : vector<8x32xf32> to vector<8xf32>
    %5 = vector.shape_cast %4 : vector<8xf32> to vector<8x1xf32>
    %cst_6 = arith.constant 3.200000e+01 : f32
    %6 = vector.broadcast %cst_6 : f32 to vector<8x1xf32>
    %7 = arith.divf %5, %6 : vector<8x1xf32>
    %8 = vector.broadcast %7 : vector<8x1xf32> to vector<8x32xf32>
    %9 = arith.subf %1, %8 : vector<8x32xf32>
    %10 = arith.mulf %9, %9 : vector<8x32xf32>
    %cst_7 = arith.constant dense<0.000000e+00> : vector<8xf32>
    %11 = vector.multi_reduction <add>, %10, %cst_7 [1] : vector<8x32xf32> to vector<8xf32>
    %12 = vector.shape_cast %11 : vector<8xf32> to vector<8x1xf32>
    %cst_8 = arith.constant 3.200000e+01 : f32
    %13 = vector.broadcast %cst_8 : f32 to vector<8x1xf32>
    %14 = arith.divf %12, %13 : vector<8x1xf32>
    %cst_9 = arith.constant 9.99999974E-6 : f32
    %15 = vector.broadcast %cst_9 : f32 to vector<8x1xf32>
    %16 = arith.addf %14, %15 : vector<8x1xf32>
    %17 = math.rsqrt %16 : vector<8x1xf32>
    %18 = vector.broadcast %7 : vector<8x1xf32> to vector<8x32xf32>
    %19 = arith.subf %1, %18 : vector<8x32xf32>
    %20 = vector.broadcast %17 : vector<8x1xf32> to vector<8x32xf32>
    %21 = arith.mulf %19, %20 : vector<8x32xf32>
    %22 = vector.broadcast %2 : vector<1x32xf32> to vector<8x32xf32>
    %23 = arith.mulf %21, %22 : vector<8x32xf32>
    %24 = vector.broadcast %3 : vector<1x32xf32> to vector<8x32xf32>
    %25 = arith.addf %23, %24 : vector<8x32xf32>
    %26 = arith.truncf %25 : vector<8x32xf32> to vector<8x32xbf16>
    %c0_10 = arith.constant 0 : index
    %c0_11 = arith.constant 0 : index
    %c0_12 = arith.constant 0 : index
    %27 = vector.load %arg3[%c0_10, %c0_11, %c0_12] : memref<1x8x32xf32, #tpu.memory_space<vmem>>, vector<1x8x32xf32>
    %28 = vector.shape_cast %27 : vector<1x8x32xf32> to vector<8x32xf32>
    %c0_13 = arith.constant 0 : index
    %c0_14 = arith.constant 0 : index
    %29 = vector.load %arg4[%c0_13, %c0_14] : memref<1x32xf32, #tpu.memory_space<vmem>>, vector<1x32xf32>
    %c0_15 = arith.constant 0 : index
    %c0_16 = arith.constant 0 : index
    %30 = vector.load %arg5[%c0_15, %c0_16] : memref<1x32xf32, #tpu.memory_space<vmem>>, vector<1x32xf32>
    %cst_17 = arith.constant dense<0.000000e+00> : vector<8xf32>
    %31 = vector.multi_reduction <add>, %28, %cst_17 [1] : vector<8x32xf32> to vector<8xf32>
    %32 = vector.shape_cast %31 : vector<8xf32> to vector<8x1xf32>
    %cst_18 = arith.constant 3.200000e+01 : f32
    %33 = vector.broadcast %cst_18 : f32 to vector<8x1xf32>
    %34 = arith.divf %32, %33 : vector<8x1xf32>
    %35 = vector.broadcast %34 : vector<8x1xf32> to vector<8x32xf32>
    %36 = arith.subf %28, %35 : vector<8x32xf32>
    %37 = arith.mulf %36, %36 : vector<8x32xf32>
    %cst_19 = arith.constant dense<0.000000e+00> : vector<8xf32>
    %38 = vector.multi_reduction <add>, %37, %cst_19 [1] : vector<8x32xf32> to vector<8xf32>
    %39 = vector.shape_cast %38 : vector<8xf32> to vector<8x1xf32>
    %cst_20 = arith.constant 3.200000e+01 : f32
    %40 = vector.broadcast %cst_20 : f32 to vector<8x1xf32>
    %41 = arith.divf %39, %40 : vector<8x1xf32>
    %cst_21 = arith.constant 9.99999974E-6 : f32
    %42 = vector.broadcast %cst_21 : f32 to vector<8x1xf32>
    %43 = arith.addf %41, %42 : vector<8x1xf32>
    %44 = math.rsqrt %43 : vector<8x1xf32>
    %45 = vector.broadcast %34 : vector<8x1xf32> to vector<8x32xf32>
    %46 = arith.subf %28, %45 : vector<8x32xf32>
    %47 = vector.broadcast %44 : vector<8x1xf32> to vector<8x32xf32>
    %48 = arith.mulf %46, %47 : vector<8x32xf32>
    %49 = vector.broadcast %29 : vector<1x32xf32> to vector<8x32xf32>
    %50 = arith.mulf %48, %49 : vector<8x32xf32>
    %51 = vector.broadcast %30 : vector<1x32xf32> to vector<8x32xf32>
    %52 = arith.addf %50, %51 : vector<8x32xf32>
    %53 = arith.truncf %52 : vector<8x32xf32> to vector<8x32xbf16>
    %c0_22 = arith.constant 0 : index
    %c0_23 = arith.constant 0 : index
    %54 = vector.load %arg6[%c0_22, %c0_23] : memref<32x32xbf16, #tpu.memory_space<vmem>>, vector<32x32xbf16>
    %cst_24 = arith.constant dense<0.000000e+00> : vector<8x32xf32>
    %55 = tpu.matmul %26, %54, %cst_24 {dimension_numbers = #tpu.dot_dimension_numbers<[1], [0], [0], [1], [0, 0, 1, 1], [], []>} : vector<8x32xbf16>, vector<32x32xbf16>, vector<8x32xf32> -> vector<8x32xf32>
    %c0_25 = arith.constant 0 : index
    %c0_26 = arith.constant 0 : index
    %56 = vector.load %arg7[%c0_25, %c0_26] : memref<1x32xf32, #tpu.memory_space<vmem>>, vector<1x32xf32>
    %57 = vector.broadcast %56 : vector<1x32xf32> to vector<8x32xf32>
    %58 = arith.addf %55, %57 : vector<8x32xf32>
    %59 = arith.truncf %58 : vector<8x32xf32> to vector<8x32xbf16>
    %c0_27 = arith.constant 0 : index
    %c0_28 = arith.constant 0 : index
    %60 = vector.load %arg8[%c0_27, %c0_28] : memref<32x64xbf16, #tpu.memory_space<vmem>>, vector<32x64xbf16>
    %cst_29 = arith.constant dense<0.000000e+00> : vector<8x64xf32>
    %61 = tpu.matmul %53, %60, %cst_29 {dimension_numbers = #tpu.dot_dimension_numbers<[1], [0], [0], [1], [0, 0, 1, 1], [], []>} : vector<8x32xbf16>, vector<32x64xbf16>, vector<8x64xf32> -> vector<8x64xf32>
    %c0_30 = arith.constant 0 : index
    %c0_31 = arith.constant 0 : index
    %62 = vector.load %arg9[%c0_30, %c0_31] : memref<1x64xf32, #tpu.memory_space<vmem>>, vector<1x64xf32>
    %63 = vector.broadcast %62 : vector<1x64xf32> to vector<8x64xf32>
    %64 = arith.addf %61, %63 : vector<8x64xf32>
    %65 = arith.truncf %64 : vector<8x64xf32> to vector<8x64xbf16>
    %66 = vector.extract_strided_slice %65 {offsets = [0, 0], sizes = [8, 32], strides = [1, 1]} : vector<8x64xbf16> to vector<8x32xbf16>
    %67 = vector.extract_strided_slice %65 {offsets = [0, 32], sizes = [8, 32], strides = [1, 1]} : vector<8x64xbf16> to vector<8x32xbf16>
    %c8_i32 = arith.constant 8 : i32
    %68 = arith.muli %arg1, %c8_i32 : i32
    %69 = tpu.iota {dimensions = array<i32: 0>} : vector<8x8xi32>
    %70 = vector.broadcast %68 : i32 to vector<8x8xi32>
    %71 = arith.addi %70, %69 : vector<8x8xi32>
    %72 = tpu.iota {dimensions = array<i32: 1>} : vector<8x8xi32>
    %73 = arith.cmpi sgt, %72, %71 : vector<8x8xi32>
    %74 = vector.extract_strided_slice %59 {offsets = [0, 0], sizes = [8, 8], strides = [1, 1]} : vector<8x32xbf16> to vector<8x8xbf16>
    %75 = vector.extract_strided_slice %66 {offsets = [0, 0], sizes = [8, 8], strides = [1, 1]} : vector<8x32xbf16> to vector<8x8xbf16>
    %cst_32 = arith.constant dense<0.000000e+00> : vector<8x8xf32>
    %76 = tpu.matmul %74, %75, %cst_32 {dimension_numbers = #tpu.dot_dimension_numbers<[1], [1], [0], [0], [0, 0, 1, 0], [], []>} : vector<8x8xbf16>, vector<8x8xbf16>, vector<8x8xf32> -> vector<8x8xf32>
    %cst_33 = arith.constant 0.353553385 : f32
    %77 = vector.broadcast %cst_33 : f32 to vector<8x8xf32>
    %78 = arith.mulf %76, %77 : vector<8x8xf32>
    %cst_34 = arith.constant 0xFF800000 : f32
    %79 = vector.broadcast %cst_34 : f32 to vector<8x8xf32>
    %80 = arith.select %73, %79, %78 : vector<8x8xi1>, vector<8x8xf32>
    %cst_35 = arith.constant dense<0xFF800000> : vector<8xf32>
    %81 = vector.multi_reduction <maximumf>, %80, %cst_35 [1] : vector<8x8xf32> to vector<8xf32>
    %82 = vector.shape_cast %81 : vector<8xf32> to vector<8x1xf32>
    %83 = vector.broadcast %82 : vector<8x1xf32> to vector<8x8xf32>
    %84 = arith.subf %80, %83 : vector<8x8xf32>
    %85 = math.exp %84 : vector<8x8xf32>
    %cst_36 = arith.constant dense<0.000000e+00> : vector<8xf32>
    %86 = vector.multi_reduction <add>, %85, %cst_36 [1] : vector<8x8xf32> to vector<8xf32>
    %87 = vector.shape_cast %86 : vector<8xf32> to vector<8x1xf32>
    %88 = tpu.reciprocal %87 {approx = true} : vector<8x1xf32> -> vector<8x1xf32>
    %89 = vector.broadcast %88 : vector<8x1xf32> to vector<8x8xf32>
    %90 = arith.mulf %85, %89 : vector<8x8xf32>
    %91 = arith.truncf %90 : vector<8x8xf32> to vector<8x8xbf16>
    %92 = vector.extract_strided_slice %67 {offsets = [0, 0], sizes = [8, 8], strides = [1, 1]} : vector<8x32xbf16> to vector<8x8xbf16>
    %cst_37 = arith.constant dense<0.000000e+00> : vector<8x8xf32>
    %93 = tpu.matmul %91, %92, %cst_37 {dimension_numbers = #tpu.dot_dimension_numbers<[1], [0], [0], [1], [0, 0, 1, 1], [], []>} : vector<8x8xbf16>, vector<8x8xbf16>, vector<8x8xf32> -> vector<8x8xf32>
    %94 = vector.extract_strided_slice %59 {offsets = [0, 8], sizes = [8, 8], strides = [1, 1]} : vector<8x32xbf16> to vector<8x8xbf16>
    %95 = vector.extract_strided_slice %66 {offsets = [0, 8], sizes = [8, 8], strides = [1, 1]} : vector<8x32xbf16> to vector<8x8xbf16>
    %cst_38 = arith.constant dense<0.000000e+00> : vector<8x8xf32>
    %96 = tpu.matmul %94, %95, %cst_38 {dimension_numbers = #tpu.dot_dimension_numbers<[1], [1], [0], [0], [0, 0, 1, 0], [], []>} : vector<8x8xbf16>, vector<8x8xbf16>, vector<8x8xf32> -> vector<8x8xf32>
    %cst_39 = arith.constant 0.353553385 : f32
    %97 = vector.broadcast %cst_39 : f32 to vector<8x8xf32>
    %98 = arith.mulf %96, %97 : vector<8x8xf32>
    %cst_40 = arith.constant 0xFF800000 : f32
    %99 = vector.broadcast %cst_40 : f32 to vector<8x8xf32>
    %100 = arith.select %73, %99, %98 : vector<8x8xi1>, vector<8x8xf32>
    %cst_41 = arith.constant dense<0xFF800000> : vector<8xf32>
    %101 = vector.multi_reduction <maximumf>, %100, %cst_41 [1] : vector<8x8xf32> to vector<8xf32>
    %102 = vector.shape_cast %101 : vector<8xf32> to vector<8x1xf32>
    %103 = vector.broadcast %102 : vector<8x1xf32> to vector<8x8xf32>
    %104 = arith.subf %100, %103 : vector<8x8xf32>
    %105 = math.exp %104 : vector<8x8xf32>
    %cst_42 = arith.constant dense<0.000000e+00> : vector<8xf32>
    %106 = vector.multi_reduction <add>, %105, %cst_42 [1] : vector<8x8xf32> to vector<8xf32>
    %107 = vector.shape_cast %106 : vector<8xf32> to vector<8x1xf32>
    %108 = tpu.reciprocal %107 {approx = true} : vector<8x1xf32> -> vector<8x1xf32>
    %109 = vector.broadcast %108 : vector<8x1xf32> to vector<8x8xf32>
    %110 = arith.mulf %105, %109 : vector<8x8xf32>
    %111 = arith.truncf %110 : vector<8x8xf32> to vector<8x8xbf16>
    %112 = vector.extract_strided_slice %67 {offsets = [0, 8], sizes = [8, 8], strides = [1, 1]} : vector<8x32xbf16> to vector<8x8xbf16>
    %cst_43 = arith.constant dense<0.000000e+00> : vector<8x8xf32>
    %113 = tpu.matmul %111, %112, %cst_43 {dimension_numbers = #tpu.dot_dimension_numbers<[1], [0], [0], [1], [0, 0, 1, 1], [], []>} : vector<8x8xbf16>, vector<8x8xbf16>, vector<8x8xf32> -> vector<8x8xf32>
    %114 = vector.extract_strided_slice %59 {offsets = [0, 16], sizes = [8, 8], strides = [1, 1]} : vector<8x32xbf16> to vector<8x8xbf16>
    %115 = vector.extract_strided_slice %66 {offsets = [0, 16], sizes = [8, 8], strides = [1, 1]} : vector<8x32xbf16> to vector<8x8xbf16>
    %cst_44 = arith.constant dense<0.000000e+00> : vector<8x8xf32>
    %116 = tpu.matmul %114, %115, %cst_44 {dimension_numbers = #tpu.dot_dimension_numbers<[1], [1], [0], [0], [0, 0, 1, 0], [], []>} : vector<8x8xbf16>, vector<8x8xbf16>, vector<8x8xf32> -> vector<8x8xf32>
    %cst_45 = arith.constant 0.353553385 : f32
    %117 = vector.broadcast %cst_45 : f32 to vector<8x8xf32>
    %118 = arith.mulf %116, %117 : vector<8x8xf32>
    %cst_46 = arith.constant 0xFF800000 : f32
    %119 = vector.broadcast %cst_46 : f32 to vector<8x8xf32>
    %120 = arith.select %73, %119, %118 : vector<8x8xi1>, vector<8x8xf32>
    %cst_47 = arith.constant dense<0xFF800000> : vector<8xf32>
    %121 = vector.multi_reduction <maximumf>, %120, %cst_47 [1] : vector<8x8xf32> to vector<8xf32>
    %122 = vector.shape_cast %121 : vector<8xf32> to vector<8x1xf32>
    %123 = vector.broadcast %122 : vector<8x1xf32> to vector<8x8xf32>
    %124 = arith.subf %120, %123 : vector<8x8xf32>
    %125 = math.exp %124 : vector<8x8xf32>
    %cst_48 = arith.constant dense<0.000000e+00> : vector<8xf32>
    %126 = vector.multi_reduction <add>, %125, %cst_48 [1] : vector<8x8xf32> to vector<8xf32>
    %127 = vector.shape_cast %126 : vector<8xf32> to vector<8x1xf32>
    %128 = tpu.reciprocal %127 {approx = true} : vector<8x1xf32> -> vector<8x1xf32>
    %129 = vector.broadcast %128 : vector<8x1xf32> to vector<8x8xf32>
    %130 = arith.mulf %125, %129 : vector<8x8xf32>
    %131 = arith.truncf %130 : vector<8x8xf32> to vector<8x8xbf16>
    %132 = vector.extract_strided_slice %67 {offsets = [0, 16], sizes = [8, 8], strides = [1, 1]} : vector<8x32xbf16> to vector<8x8xbf16>
    %cst_49 = arith.constant dense<0.000000e+00> : vector<8x8xf32>
    %133 = tpu.matmul %131, %132, %cst_49 {dimension_numbers = #tpu.dot_dimension_numbers<[1], [0], [0], [1], [0, 0, 1, 1], [], []>} : vector<8x8xbf16>, vector<8x8xbf16>, vector<8x8xf32> -> vector<8x8xf32>
    %134 = vector.extract_strided_slice %59 {offsets = [0, 24], sizes = [8, 8], strides = [1, 1]} : vector<8x32xbf16> to vector<8x8xbf16>
    %135 = vector.extract_strided_slice %66 {offsets = [0, 24], sizes = [8, 8], strides = [1, 1]} : vector<8x32xbf16> to vector<8x8xbf16>
    %cst_50 = arith.constant dense<0.000000e+00> : vector<8x8xf32>
    %136 = tpu.matmul %134, %135, %cst_50 {dimension_numbers = #tpu.dot_dimension_numbers<[1], [1], [0], [0], [0, 0, 1, 0], [], []>} : vector<8x8xbf16>, vector<8x8xbf16>, vector<8x8xf32> -> vector<8x8xf32>
    %cst_51 = arith.constant 0.353553385 : f32
    %137 = vector.broadcast %cst_51 : f32 to vector<8x8xf32>
    %138 = arith.mulf %136, %137 : vector<8x8xf32>
    %cst_52 = arith.constant 0xFF800000 : f32
    %139 = vector.broadcast %cst_52 : f32 to vector<8x8xf32>
    %140 = arith.select %73, %139, %138 : vector<8x8xi1>, vector<8x8xf32>
    %cst_53 = arith.constant dense<0xFF800000> : vector<8xf32>
    %141 = vector.multi_reduction <maximumf>, %140, %cst_53 [1] : vector<8x8xf32> to vector<8xf32>
    %142 = vector.shape_cast %141 : vector<8xf32> to vector<8x1xf32>
    %143 = vector.broadcast %142 : vector<8x1xf32> to vector<8x8xf32>
    %144 = arith.subf %140, %143 : vector<8x8xf32>
    %145 = math.exp %144 : vector<8x8xf32>
    %cst_54 = arith.constant dense<0.000000e+00> : vector<8xf32>
    %146 = vector.multi_reduction <add>, %145, %cst_54 [1] : vector<8x8xf32> to vector<8xf32>
    %147 = vector.shape_cast %146 : vector<8xf32> to vector<8x1xf32>
    %148 = tpu.reciprocal %147 {approx = true} : vector<8x1xf32> -> vector<8x1xf32>
    %149 = vector.broadcast %148 : vector<8x1xf32> to vector<8x8xf32>
    %150 = arith.mulf %145, %149 : vector<8x8xf32>
    %151 = arith.truncf %150 : vector<8x8xf32> to vector<8x8xbf16>
    %152 = vector.extract_strided_slice %67 {offsets = [0, 24], sizes = [8, 8], strides = [1, 1]} : vector<8x32xbf16> to vector<8x8xbf16>
    %cst_55 = arith.constant dense<0.000000e+00> : vector<8x8xf32>
    %153 = tpu.matmul %151, %152, %cst_55 {dimension_numbers = #tpu.dot_dimension_numbers<[1], [0], [0], [1], [0, 0, 1, 1], [], []>} : vector<8x8xbf16>, vector<8x8xbf16>, vector<8x8xf32> -> vector<8x8xf32>
    %154 = tpu.concatenate %93, %113, %133, %153 in 1 : vector<8x8xf32>, vector<8x8xf32>, vector<8x8xf32>, vector<8x8xf32> -> vector<8x32xf32>
    %155 = arith.truncf %154 : vector<8x32xf32> to vector<8x32xbf16>
    %c0_56 = arith.constant 0 : index
    %c0_57 = arith.constant 0 : index
    %156 = vector.load %arg10[%c0_56, %c0_57] : memref<32x32xbf16, #tpu.memory_space<vmem>>, vector<32x32xbf16>
    %cst_58 = arith.constant dense<0.000000e+00> : vector<8x32xf32>
    %157 = tpu.matmul %155, %156, %cst_58 {dimension_numbers = #tpu.dot_dimension_numbers<[1], [0], [0], [1], [0, 0, 1, 1], [], []>} : vector<8x32xbf16>, vector<32x32xbf16>, vector<8x32xf32> -> vector<8x32xf32>
    %c0_59 = arith.constant 0 : index
    %c0_60 = arith.constant 0 : index
    %158 = vector.load %arg11[%c0_59, %c0_60] : memref<1x32xf32, #tpu.memory_space<vmem>>, vector<1x32xf32>
    %159 = vector.broadcast %158 : vector<1x32xf32> to vector<8x32xf32>
    %160 = arith.addf %157, %159 : vector<8x32xf32>
    %161 = arith.addf %1, %160 : vector<8x32xf32>
    %c0_61 = arith.constant 0 : index
    %c0_62 = arith.constant 0 : index
    %c0_63 = arith.constant 0 : index
    %162 = vector.load %arg12[%c0_61, %c0_62, %c0_63] : memref<1x8x32xf32, #tpu.memory_space<vmem>>, vector<1x8x32xf32>
    %163 = vector.shape_cast %162 : vector<1x8x32xf32> to vector<8x32xf32>
    %164 = vector.shape_cast %161 : vector<8x32xf32> to vector<1x8x32xf32>
    tpu.vector_store %arg12[%c0_61, %c0_62, %c0_63], %164 {strides = array<i32>} : memref<1x8x32xf32, #tpu.memory_space<vmem>>, vector<1x8x32xf32>,
    return
  }
  func.func @transform_0(%arg0: i32, %arg1: i32) -> (i32, i32, i32) {
    %c0_i32 = arith.constant 0 : i32
    %c0_i32_0 = arith.constant 0 : i32
    return %arg0, %arg1, %c0_i32 : i32, i32, i32
  }
  func.func @transform_1(%arg0: i32, %arg1: i32) -> (i32, i32, i32) {
    %c0_i32 = arith.constant 0 : i32
    %c0_i32_0 = arith.constant 0 : i32
    %c0_i32_1 = arith.constant 0 : i32
    return %arg0, %c0_i32, %c0_i32_0 : i32, i32, i32
  }
  func.func @transform_2(%arg0: i32, %arg1: i32) -> (i32, i32) {
    %c0_i32 = arith.constant 0 : i32
    %c0_i32_0 = arith.constant 0 : i32
    %c0_i32_1 = arith.constant 0 : i32
    return %c0_i32, %c0_i32_0 : i32, i32
  }
  func.func @transform_3(%arg0: i32, %arg1: i32) -> (i32, i32) {
    %c0_i32 = arith.constant 0 : i32
    %c0_i32_0 = arith.constant 0 : i32
    %c0_i32_1 = arith.constant 0 : i32
    return %c0_i32, %c0_i32_0 : i32, i32
  }
  func.func @transform_4(%arg0: i32, %arg1: i32) -> (i32, i32) {
    %c0_i32 = arith.constant 0 : i32
    %c0_i32_0 = arith.constant 0 : i32
    %c0_i32_1 = arith.constant 0 : i32
    return %c0_i32, %c0_i32_0 : i32, i32
  }
  func.func @transform_5(%arg0: i32, %arg1: i32) -> (i32, i32) {
    %c0_i32 = arith.constant 0 : i32
    %c0_i32_0 = arith.constant 0 : i32
    %c0_i32_1 = arith.constant 0 : i32
    return %c0_i32, %c0_i32_0 : i32, i32
  }
  func.func @transform_6(%arg0: i32, %arg1: i32) -> (i32, i32) {
    %c0_i32 = arith.constant 0 : i32
    %c0_i32_0 = arith.constant 0 : i32
    %c0_i32_1 = arith.constant 0 : i32
    return %c0_i32, %c0_i32_0 : i32, i32
  }
  func.func @transform_7(%arg0: i32, %arg1: i32) -> (i32, i32) {
    %c0_i32 = arith.constant 0 : i32
    %c0_i32_0 = arith.constant 0 : i32
    %c0_i32_1 = arith.constant 0 : i32
    return %c0_i32, %c0_i32_0 : i32, i32
  }
  func.func @transform_8(%arg0: i32, %arg1: i32) -> (i32, i32) {
    %c0_i32 = arith.constant 0 : i32
    %c0_i32_0 = arith.constant 0 : i32
    %c0_i32_1 = arith.constant 0 : i32
    return %c0_i32, %c0_i32_0 : i32, i32
  }
  func.func @transform_9(%arg0: i32, %arg1: i32) -> (i32, i32) {
    %c0_i32 = arith.constant 0 : i32
    %c0_i32_0 = arith.constant 0 : i32
    %c0_i32_1 = arith.constant 0 : i32
    return %c0_i32, %c0_i32_0 : i32, i32
  }
  func.func @transform_10(%arg0: i32, %arg1: i32) -> (i32, i32, i32) {
    %c0_i32 = arith.constant 0 : i32
    %c0_i32_0 = arith.constant 0 : i32
    return %arg0, %arg1, %c0_i32 : i32, i32, i32
  }
}

module attributes {stable_mosaic.version = 11 : i64} {
  func.func @_ffn_block_kernel(%arg0: i32, %arg1: memref<16x32xf32, #tpu.memory_space<vmem>>, %arg2: memref<1x32xf32, #tpu.memory_space<vmem>>, %arg3: memref<1x32xf32, #tpu.memory_space<vmem>>, %arg4: memref<32x128xbf16, #tpu.memory_space<vmem>>, %arg5: memref<1x128xf32, #tpu.memory_space<vmem>>, %arg6: memref<128x32xbf16, #tpu.memory_space<vmem>>, %arg7: memref<1x32xf32, #tpu.memory_space<vmem>>, %arg8: memref<16x32xf32, #tpu.memory_space<vmem>>) attributes {dimension_semantics = [#tpu.dimension_semantics<parallel>], iteration_bounds = array<i64: 1>, scalar_prefetch = 0 : i64, scratch_operands = 0 : i64, tpu.core_type = #tpu.core_type<tc>, window_params = [{transform_indices = @transform_0, window_bounds = array<i64: 16, 32>}, {pipeline_mode = #tpu.pipeline_mode<synchronous>, transform_indices = @transform_1, window_bounds = array<i64: 1, 32>}, {pipeline_mode = #tpu.pipeline_mode<synchronous>, transform_indices = @transform_2, window_bounds = array<i64: 1, 32>}, {pipeline_mode = #tpu.pipeline_mode<synchronous>, transform_indices = @transform_3, window_bounds = array<i64: 32, 128>}, {pipeline_mode = #tpu.pipeline_mode<synchronous>, transform_indices = @transform_4, window_bounds = array<i64: 1, 128>}, {pipeline_mode = #tpu.pipeline_mode<synchronous>, transform_indices = @transform_5, window_bounds = array<i64: 128, 32>}, {pipeline_mode = #tpu.pipeline_mode<synchronous>, transform_indices = @transform_6, window_bounds = array<i64: 1, 32>}, {transform_indices = @transform_7, window_bounds = array<i64: 16, 32>}]} {
    %c0 = arith.constant 0 : index
    %c0_0 = arith.constant 0 : index
    %0 = vector.load %arg1[%c0, %c0_0] : memref<16x32xf32, #tpu.memory_space<vmem>>, vector<16x32xf32>
    %c0_1 = arith.constant 0 : index
    %c0_2 = arith.constant 0 : index
    %1 = vector.load %arg2[%c0_1, %c0_2] : memref<1x32xf32, #tpu.memory_space<vmem>>, vector<1x32xf32>
    %c0_3 = arith.constant 0 : index
    %c0_4 = arith.constant 0 : index
    %2 = vector.load %arg3[%c0_3, %c0_4] : memref<1x32xf32, #tpu.memory_space<vmem>>, vector<1x32xf32>
    %cst = arith.constant dense<0.000000e+00> : vector<16xf32>
    %3 = vector.multi_reduction <add>, %0, %cst [1] : vector<16x32xf32> to vector<16xf32>
    %4 = vector.shape_cast %3 : vector<16xf32> to vector<16x1xf32>
    %cst_5 = arith.constant 3.200000e+01 : f32
    %5 = vector.broadcast %cst_5 : f32 to vector<16x1xf32>
    %6 = arith.divf %4, %5 : vector<16x1xf32>
    %7 = vector.broadcast %6 : vector<16x1xf32> to vector<16x32xf32>
    %8 = arith.subf %0, %7 : vector<16x32xf32>
    %9 = arith.mulf %8, %8 : vector<16x32xf32>
    %cst_6 = arith.constant dense<0.000000e+00> : vector<16xf32>
    %10 = vector.multi_reduction <add>, %9, %cst_6 [1] : vector<16x32xf32> to vector<16xf32>
    %11 = vector.shape_cast %10 : vector<16xf32> to vector<16x1xf32>
    %cst_7 = arith.constant 3.200000e+01 : f32
    %12 = vector.broadcast %cst_7 : f32 to vector<16x1xf32>
    %13 = arith.divf %11, %12 : vector<16x1xf32>
    %cst_8 = arith.constant 9.99999974E-6 : f32
    %14 = vector.broadcast %cst_8 : f32 to vector<16x1xf32>
    %15 = arith.addf %13, %14 : vector<16x1xf32>
    %16 = math.rsqrt %15 : vector<16x1xf32>
    %17 = vector.broadcast %6 : vector<16x1xf32> to vector<16x32xf32>
    %18 = arith.subf %0, %17 : vector<16x32xf32>
    %19 = vector.broadcast %16 : vector<16x1xf32> to vector<16x32xf32>
    %20 = arith.mulf %18, %19 : vector<16x32xf32>
    %21 = vector.broadcast %1 : vector<1x32xf32> to vector<16x32xf32>
    %22 = arith.mulf %20, %21 : vector<16x32xf32>
    %23 = vector.broadcast %2 : vector<1x32xf32> to vector<16x32xf32>
    %24 = arith.addf %22, %23 : vector<16x32xf32>
    %25 = arith.truncf %24 : vector<16x32xf32> to vector<16x32xbf16>
    %c0_9 = arith.constant 0 : index
    %c0_10 = arith.constant 0 : index
    %26 = vector.load %arg4[%c0_9, %c0_10] : memref<32x128xbf16, #tpu.memory_space<vmem>>, vector<32x128xbf16>
    %cst_11 = arith.constant dense<0.000000e+00> : vector<16x128xf32>
    %27 = tpu.matmul %25, %26, %cst_11 {dimension_numbers = #tpu.dot_dimension_numbers<[1], [0], [0], [1], [0, 0, 1, 1], [], []>} : vector<16x32xbf16>, vector<32x128xbf16>, vector<16x128xf32> -> vector<16x128xf32>
    %c0_12 = arith.constant 0 : index
    %c0_13 = arith.constant 0 : index
    %28 = vector.load %arg5[%c0_12, %c0_13] : memref<1x128xf32, #tpu.memory_space<vmem>>, vector<1x128xf32>
    %29 = vector.broadcast %28 : vector<1x128xf32> to vector<16x128xf32>
    %30 = arith.addf %27, %29 : vector<16x128xf32>
    %cst_14 = arith.constant 5.000000e-01 : f32
    %31 = vector.broadcast %cst_14 : f32 to vector<16x128xf32>
    %32 = arith.mulf %31, %30 : vector<16x128xf32>
    %cst_15 = arith.constant 4.471500e-02 : f32
    %33 = vector.broadcast %cst_15 : f32 to vector<16x128xf32>
    %34 = arith.mulf %33, %30 : vector<16x128xf32>
    %35 = arith.mulf %34, %30 : vector<16x128xf32>
    %36 = arith.mulf %35, %30 : vector<16x128xf32>
    %37 = arith.addf %30, %36 : vector<16x128xf32>
    %cst_16 = arith.constant 0.797884583 : f32
    %38 = vector.broadcast %cst_16 : f32 to vector<16x128xf32>
    %39 = arith.mulf %38, %37 : vector<16x128xf32>
    %40 = math.tanh %39 : vector<16x128xf32>
    %cst_17 = arith.constant 1.000000e+00 : f32
    %41 = vector.broadcast %cst_17 : f32 to vector<16x128xf32>
    %42 = arith.addf %41, %40 : vector<16x128xf32>
    %43 = arith.mulf %32, %42 : vector<16x128xf32>
    %44 = arith.truncf %43 : vector<16x128xf32> to vector<16x128xbf16>
    %c0_18 = arith.constant 0 : index
    %c0_19 = arith.constant 0 : index
    %45 = vector.load %arg6[%c0_18, %c0_19] : memref<128x32xbf16, #tpu.memory_space<vmem>>, vector<128x32xbf16>
    %cst_20 = arith.constant dense<0.000000e+00> : vector<16x32xf32>
    %46 = tpu.matmul %44, %45, %cst_20 {dimension_numbers = #tpu.dot_dimension_numbers<[1], [0], [0], [1], [0, 0, 1, 1], [], []>} : vector<16x128xbf16>, vector<128x32xbf16>, vector<16x32xf32> -> vector<16x32xf32>
    %c0_21 = arith.constant 0 : index
    %c0_22 = arith.constant 0 : index
    %47 = vector.load %arg7[%c0_21, %c0_22] : memref<1x32xf32, #tpu.memory_space<vmem>>, vector<1x32xf32>
    %48 = vector.broadcast %47 : vector<1x32xf32> to vector<16x32xf32>
    %49 = arith.addf %46, %48 : vector<16x32xf32>
    %50 = arith.addf %0, %49 : vector<16x32xf32>
    %c0_23 = arith.constant 0 : index
    %c0_24 = arith.constant 0 : index
    %51 = vector.load %arg8[%c0_23, %c0_24] : memref<16x32xf32, #tpu.memory_space<vmem>>, vector<16x32xf32>
    tpu.vector_store %arg8[%c0_23, %c0_24], %50 {strides = array<i32>} : memref<16x32xf32, #tpu.memory_space<vmem>>, vector<16x32xf32>,
    return
  }
  func.func @transform_0(%arg0: i32) -> (i32, i32) {
    %c0_i32 = arith.constant 0 : i32
    %c0_i32_0 = arith.constant 0 : i32
    return %arg0, %c0_i32 : i32, i32
  }
  func.func @transform_1(%arg0: i32) -> (i32, i32) {
    %c0_i32 = arith.constant 0 : i32
    %c0_i32_0 = arith.constant 0 : i32
    %c0_i32_1 = arith.constant 0 : i32
    return %c0_i32, %c0_i32_0 : i32, i32
  }
  func.func @transform_2(%arg0: i32) -> (i32, i32) {
    %c0_i32 = arith.constant 0 : i32
    %c0_i32_0 = arith.constant 0 : i32
    %c0_i32_1 = arith.constant 0 : i32
    return %c0_i32, %c0_i32_0 : i32, i32
  }
  func.func @transform_3(%arg0: i32) -> (i32, i32) {
    %c0_i32 = arith.constant 0 : i32
    %c0_i32_0 = arith.constant 0 : i32
    %c0_i32_1 = arith.constant 0 : i32
    return %c0_i32, %c0_i32_0 : i32, i32
  }
  func.func @transform_4(%arg0: i32) -> (i32, i32) {
    %c0_i32 = arith.constant 0 : i32
    %c0_i32_0 = arith.constant 0 : i32
    %c0_i32_1 = arith.constant 0 : i32
    return %c0_i32, %c0_i32_0 : i32, i32
  }
  func.func @transform_5(%arg0: i32) -> (i32, i32) {
    %c0_i32 = arith.constant 0 : i32
    %c0_i32_0 = arith.constant 0 : i32
    %c0_i32_1 = arith.constant 0 : i32
    return %c0_i32, %c0_i32_0 : i32, i32
  }
  func.func @transform_6(%arg0: i32) -> (i32, i32) {
    %c0_i32 = arith.constant 0 : i32
    %c0_i32_0 = arith.constant 0 : i32
    %c0_i32_1 = arith.constant 0 : i32
    return %c0_i32, %c0_i32_0 : i32, i32
  }
  func.func @transform_7(%arg0: i32) -> (i32, i32) {
    %c0_i32 = arith.constant 0 : i32
    %c0_i32_0 = arith.constant 0 : i32
    return %arg0, %c0_i32 : i32, i32
  }
}

</mosaic_0001>

<llo_original>
// kernel: transformer_block.3
$region0: #{transformer_block.3}
  #allocation0 [shape = 'u32[]', space=smem, size = 0x4, offset = 0x4, fixed_abs, tag = 'smem constant byte address 0x4 - core index']
  #allocation1 [shape = 'u32[144,128]{1,0:T(1,128)}', space=vmem, size = 0x12000, scoped, tag = 'internal scratch']
  %s0 = inlined_call_operand.vmem [shape: f32[16,32], index: 0, kind: input, shape index: {}]
  %s1 = inlined_call_operand.vmem [shape: f32[1,32], index: 1, kind: input, shape index: {}]
  %s2 = inlined_call_operand.vmem [shape: f32[1,32], index: 2, kind: input, shape index: {}]
  %s3 = inlined_call_operand.vmem [shape: bf16[32,128], index: 3, kind: input, shape index: {}]
  %s4 = inlined_call_operand.vmem [shape: f32[1,128], index: 4, kind: input, shape index: {}]
  %s5 = inlined_call_operand.vmem [shape: bf16[128,32], index: 5, kind: input, shape index: {}]
  %s6 = inlined_call_operand.vmem [shape: f32[1,32], index: 6, kind: input, shape index: {}]
  %s7 = inlined_call_operand.hbm [shape: f32[16,32], index: 7, kind: output, shape index: {}]
  %s8 = sld [smem:[#allocation0]]
  $region38: #{transformer_block.3} parent=0
    _
  %s10 = ssub.s32 1, %s8
  %s11 = scalar_select 0, %s10, %s8
  $region1: #{transformer_block.3} parent=0
    #allocation2 [shape = 'u8[8192]{0}', space=vmem, size = 0x2000, scoped, tag = 'output window, operand 0, single buffered']
    #allocation3 [shape = 's32[1]{0}', space=sflag, size = 0x4, scoped, tag = 'scoped memory for transformer_block.3']
    %12 = vsyncpa [#allocation3], 0
    // Predicated region
    $region2: #{transformer_block.3} parent=1 // pred_check
      _
    $region3: #{transformer_block.3} parent=1 // pred_check_branch
      %14 = sbr.rel (0) target = $region5
    $region4: #{transformer_block.3} parent=1 // pred_region
      _
    $region5: #{transformer_block.3} parent=1 // pred_fallthru
      _
    // Predicated region
    $region6: #{transformer_block.3} parent=1 // pred_check
      _
    $region7: #{transformer_block.3} parent=1 // pred_check_branch
      %16 = sbr.rel (0) target = $region9
    $region8: #{transformer_block.3} parent=1 // pred_region
      _
    $region9: #{transformer_block.3} parent=1 // pred_fallthru
      _
    // Predicated region
    $region10: #{transformer_block.3} parent=1 // pred_check
      _
    $region11: #{transformer_block.3} parent=1 // pred_check_branch
      %18 = sbr.rel (0) target = $region13
    $region12: #{transformer_block.3} parent=1 // pred_region
      _
    $region13: #{transformer_block.3} parent=1 // pred_fallthru
      _
    // Predicated region
    $region14: #{transformer_block.3} parent=1 // pred_check
      _
    $region15: #{transformer_block.3} parent=1 // pred_check_branch
      %20 = sbr.rel (0) target = $region17
    $region16: #{transformer_block.3} parent=1 // pred_region
      _
    $region17: #{transformer_block.3} parent=1 // pred_fallthru
      _
    // Predicated region
    $region18: #{transformer_block.3} parent=1 // pred_check
      _
    $region19: #{transformer_block.3} parent=1 // pred_check_branch
      %22 = sbr.rel (0) target = $region21
    $region20: #{transformer_block.3} parent=1 // pred_region
      _
    $region21: #{transformer_block.3} parent=1 // pred_fallthru
      _
    // Predicated region
    $region22: #{transformer_block.3} parent=1 // pred_check
      _
    $region23: #{transformer_block.3} parent=1 // pred_check_branch
      %24 = sbr.rel (0) target = $region25
    $region24: #{transformer_block.3} parent=1 // pred_region
      _
    $region25: #{transformer_block.3} parent=1 // pred_fallthru
      _
    // Predicated region
    $region26: #{transformer_block.3} parent=1 // pred_check
      _
    $region27: #{transformer_block.3} parent=1 // pred_check_branch
      %26 = sbr.rel (0) target = $region29
    $region28: #{transformer_block.3} parent=1 // pred_region
      _
    $region29: #{transformer_block.3} parent=1 // pred_fallthru
      _
    %v28 = vld [vmem:[%s0] sm:$0xff]
    %v29 = vld [vmem:[%s0 + $0x8] sm:$0xff]
    %v30 = vld [vmem:[%s1] sm:$0x1]
    %v31 = vld [vmem:[%s2] sm:$0x1]
    %vm32 = vcmask 261120
    %v33 = vsel %vm32, %v28, 0.0
    %34 = vadd.xlane.f32.xlu0 %v33
    %v35 = vpop.xlane.xlu0 %34
    %v36 = vsel %vm32, %v29, 0.0
    %37 = vadd.xlane.f32.xlu0 %v36
    %v38 = vpop.xlane.xlu0 %37
    %v39 = vrcp.pop 32.0
    %v40 = vmul.f32 %v35, %v39
    %v41 = vmul.f32 %v38, %v39
    %v42 = vsub.f32 %v28, %v40
    %v43 = vsub.f32 %v29, %v41
    %v44 = vmul.f32 %v42, %v42
    %v45 = vmul.f32 %v43, %v43
    %v46 = vsel %vm32, %v44, 0.0
    %47 = vadd.xlane.f32.xlu0 %v46
    %v48 = vpop.xlane.xlu0 %47
    %v49 = vsel %vm32, %v45, 0.0
    %50 = vadd.xlane.f32.xlu0 %v49
    %v51 = vpop.xlane.xlu0 %50
    %v52 = vmul.f32 %v48, %v39
    %v53 = vmul.f32 %v51, %v39
    %v54 = vadd.f32 %v52, 1e-05
    %v55 = vadd.f32 %v53, 1e-05
    %v56 = vrsqrt.pop %v54
    %v57 = vrsqrt.pop %v55
    %v58 = vmul.f32 %v42, %v56
    %v59 = vmul.f32 %v43, %v57
    %v61 = vlaneseq
    %v62 = vshrl.u32 %v61, 7
    %v63 = vsub.s32 0, %v62
    %v64 = vrot.slane %v30, %v63
    %v66 = vmul.f32 %v58, %v64
    %v67 = vmul.f32 %v59, %v64
    %v69 = vlaneseq
    %v70 = vshrl.u32 %v69, 7
    %v71 = vsub.s32 0, %v70
    %v72 = vrot.slane %v31, %v71
    %v74 = vadd.f32 %v66, %v72
    %v75 = vadd.f32 %v67, %v72
    %v76 = vpack.c.bf16 %v75, %v74
    %v77 = vld [vmem:[%s3] sm:$0xf]
    %v78 = vld [vmem:[%s3 + $0x4] sm:$0xf]
    %v79 = vld [vmem:[%s3 + $0x8] sm:$0xf]
    %v80 = vld [vmem:[%s3 + $0xc] sm:$0xf]
    %v81 = vld [vmem:[%s4] sm:$0x1]
    %v83 = vlaneseq
    %v84 = vshrl.u32 %v83, 7
    %v85 = vsub.s32 0, %v84
    %v86 = vrot.slane %v81, %v85
    %v92 = vunpack.c.l.b16 %v77
    %v93 = vunpack.c.l.b16 %v78
    %v94 = vunpack.c.l.b16 %v79
    %v95 = vunpack.c.l.b16 %v80
    %v96 = vpack.c.b16 %v93, %v92
    %v97 = vpack.c.b16 %v95, %v94
    %v101 = vsel %vm32, %v76, 0
    %103 = vmatprep.subr.bf16.mxu0 0
    %104 = vmatpush1.bf16.msra.mxu0 %v96
    %105 = vmatprep.subr.bf16.mxu0 0
    %106 = vmatpush1.bf16.msra.mxu0 %v97
    %107 = vmatprep.subr.bf16.mxu0 0
    %108 = vmatpush1.bf16.msra.mxu0 0
    %109 = vmatprep.subr.bf16.mxu0 0
    %110 = vmatpush1.bf16.msra.mxu0 0
    %111 = vmatprep.subr.bf16.mxu0 0
    %112 = vmatpush1.bf16.msra.mxu0 0
    %113 = vmatprep.subr.bf16.mxu0 0
    %114 = vmatpush1.bf16.msra.mxu0 0
    %115 = vmatprep.subr.bf16.mxu0 0
    %116 = vmatpush1.bf16.msra.mxu0 0
    %117 = vmatprep.subr.bf16.mxu0 0
    %118 = vmatpush1.bf16.msra.mxu0 0
    %119 = vmatprep.subr.bf16.mxu0 0
    %120 = vmatpush1.bf16.msra.mxu0 0
    %121 = vmatprep.subr.bf16.mxu0 0
    %122 = vmatpush1.bf16.msra.mxu0 0
    %123 = vmatprep.subr.bf16.mxu0 0
    %124 = vmatpush1.bf16.msra.mxu0 0
    %125 = vmatprep.subr.bf16.mxu0 0
    %126 = vmatpush1.bf16.msra.mxu0 0
    %127 = vmatprep.subr.bf16.mxu0 0
    %128 = vmatpush1.bf16.msra.mxu0 0
    %129 = vmatprep.subr.bf16.mxu0 0
    %130 = vmatpush1.bf16.msra.mxu0 0
    %131 = vmatprep.subr.bf16.mxu0 0
    %132 = vmatpush1.bf16.msra.mxu0 0
    %133 = vmatprep.subr.bf16.mxu0 0
    %134 = vmatpush1.bf16.msra.mxu0 0
    %135 = vmatprep.mubr.bf16.mxu0 0
    %136 = vmatmul.mubr.bf16.gmra.mrb[0].mxu0 %v101
    %v137 = vpop.f32.mrb[0].mxu0
    %v138 = vadd.f32 %v86, %v137
    %v139 = vpop.f32.mrb[0].mxu0
    %v140 = vpop.f32.mrb[0].mxu0
    %v141 = vadd.f32 %v86, %v140
    %v142 = vpop.f32.mrb[0].mxu0
    %143 = vdwg.mxu0
    %v144 = vmul.f32 %v138, 0.5
    %v145 = vmul.f32 %v141, 0.5
    %v146 = vmul.f32 %v138, 0.044715
    %v147 = vmul.f32 %v141, 0.044715
    %v148 = vmul.f32 %v146, %v138
    %v149 = vmul.f32 %v147, %v141
    %v150 = vmul.f32 %v148, %v138
    %v151 = vmul.f32 %v149, %v141
    %v152 = vadd.f32 %v138, %v150
    %v153 = vadd.f32 %v141, %v151
    %v154 = vmul.f32 %v152, 0.7978846
    %v155 = vmul.f32 %v153, 0.7978846
    %v156 = vtanh.pop %v154
    %v157 = vtanh.pop %v155
    %v158 = vadd.f32 %v156, 1.0
    %v159 = vadd.f32 %v157, 1.0
    %v160 = vmul.f32 %v144, %v158
    %v161 = vmul.f32 %v145, %v159
    %v162 = vpack.c.bf16 %v161, %v160
    %v163 = vld [vmem:[%s5] sm:$0xf]
    %v164 = vld [vmem:[%s5 + $0x4] sm:$0xf]
    %v165 = vld [vmem:[%s5 + $0x8] sm:$0xf]
    %v166 = vld [vmem:[%s5 + $0xc] sm:$0xf]
    %v167 = vld [vmem:[%s5 + $0x10] sm:$0xf]
    %v168 = vld [vmem:[%s5 + $0x14] sm:$0xf]
    %v169 = vld [vmem:[%s5 + $0x18] sm:$0xf]
    %v170 = vld [vmem:[%s5 + $0x1c] sm:$0xf]
    %v171 = vld [vmem:[%s5 + $0x20] sm:$0xf]
    %v172 = vld [vmem:[%s5 + $0x24] sm:$0xf]
    %v173 = vld [vmem:[%s5 + $0x28] sm:$0xf]
    %v174 = vld [vmem:[%s5 + $0x2c] sm:$0xf]
    %v175 = vld [vmem:[%s5 + $0x30] sm:$0xf]
    %v176 = vld [vmem:[%s5 + $0x34] sm:$0xf]
    %v177 = vld [vmem:[%s5 + $0x38] sm:$0xf]
    %v178 = vld [vmem:[%s5 + $0x3c] sm:$0xf]
    %v179 = vld [vmem:[%s6] sm:$0x1]
    %v181 = vlaneseq
    %v182 = vshrl.u32 %v181, 7
    %v183 = vsub.s32 0, %v182
    %v184 = vrot.slane %v179, %v183
    %v202 = vunpack.c.l.b16 %v163
    %v203 = vunpack.c.l.b16 %v164
    %v204 = vunpack.c.l.b16 %v165
    %v205 = vunpack.c.l.b16 %v166
    %v206 = vunpack.c.l.b16 %v167
    %v207 = vunpack.c.l.b16 %v168
    %v208 = vunpack.c.l.b16 %v169
    %v209 = vunpack.c.l.b16 %v170
    %v210 = vunpack.c.l.b16 %v171
    %v211 = vunpack.c.l.b16 %v172
    %v212 = vunpack.c.l.b16 %v173
    %v213 = vunpack.c.l.b16 %v174
    %v214 = vunpack.c.l.b16 %v175
    %v215 = vunpack.c.l.b16 %v176
    %v216 = vunpack.c.l.b16 %v177
    %v217 = vunpack.c.l.b16 %v178
    %v218 = vpack.c.b16 %v203, %v202
    %v219 = vpack.c.b16 %v205, %v204
    %v220 = vpack.c.b16 %v207, %v206
    %v221 = vpack.c.b16 %v209, %v208
    %v222 = vpack.c.b16 %v211, %v210
    %v223 = vpack.c.b16 %v213, %v212
    %v224 = vpack.c.b16 %v215, %v214
    %v225 = vpack.c.b16 %v217, %v216
    %234 = vmatprep.subr.bf16.mxu0 0
    %235 = vmatpush1.bf16.msra.mxu0 %v218
    %236 = vmatprep.subr.bf16.mxu0 0
    %237 = vmatpush1.bf16.msra.mxu0 %v219
    %238 = vmatprep.subr.bf16.mxu0 0
    %239 = vmatpush1.bf16.msra.mxu0 %v220
    %240 = vmatprep.subr.bf16.mxu0 0
    %241 = vmatpush1.bf16.msra.mxu0 %v221
    %242 = vmatprep.subr.bf16.mxu0 0
    %243 = vmatpush1.bf16.msra.mxu0 %v222
    %244 = vmatprep.subr.bf16.mxu0 0
    %245 = vmatpush1.bf16.msra.mxu0 %v223
    %246 = vmatprep.subr.bf16.mxu0 0
    %247 = vmatpush1.bf16.msra.mxu0 %v224
    %248 = vmatprep.subr.bf16.mxu0 0
    %249 = vmatpush1.bf16.msra.mxu0 %v225
    %250 = vmatprep.subr.bf16.mxu0 0
    %251 = vmatpush1.bf16.msra.mxu0 0
    %252 = vmatprep.subr.bf16.mxu0 0
    %253 = vmatpush1.bf16.msra.mxu0 0
    %254 = vmatprep.subr.bf16.mxu0 0
    %255 = vmatpush1.bf16.msra.mxu0 0
    %256 = vmatprep.subr.bf16.mxu0 0
    %257 = vmatpush1.bf16.msra.mxu0 0
    %258 = vmatprep.subr.bf16.mxu0 0
    %259 = vmatpush1.bf16.msra.mxu0 0
    %260 = vmatprep.subr.bf16.mxu0 0
    %261 = vmatpush1.bf16.msra.mxu0 0
    %262 = vmatprep.subr.bf16.mxu0 0
    %263 = vmatpush1.bf16.msra.mxu0 0
    %264 = vmatprep.subr.bf16.mxu0 0
    %265 = vmatpush1.bf16.msra.mxu0 0
    %266 = vmatprep.mubr.bf16.mxu0 0
    %267 = vmatmul.mubr.bf16.gmra.mrb[0].mxu0 %v162
    %v268 = vpop.f32.mrb[0].mxu0
    %v269 = vadd.f32 %v184, %v268
    %v270 = vpop.f32.mrb[0].mxu0
    %v271 = vpop.f32.mrb[0].mxu0
    %v272 = vadd.f32 %v184, %v271
    %v273 = vpop.f32.mrb[0].mxu0
    %274 = vdwg.mxu0
    %v275 = vadd.f32 %v28, %v269
    %v276 = vadd.f32 %v29, %v272
    %277 = vst.msk [vmem:[#allocation2] sm:$0xff] %vm32, %v275
    %278 = vst.msk [vmem:[#allocation2 + $0x8] sm:$0xff] %vm32, %v276
    // Predicated region
    $region30: #{transformer_block.3} parent=1 // pred_check
      _
    $region31: #{transformer_block.3} parent=1 // pred_check_branch
      %280 = sbr.rel (0) target = $region33
    $region32: #{transformer_block.3} parent=1 // pred_region
      %s282 = ssub.s32 256, 256
      %283 = vsyncadd [#allocation3], %s282
      %s284 = sshll.u32 [#allocation2], 4
      %s285 = int_to_ptr.vmem [resolvable:$true] %s284
      %290 = dma.vmem_to_hbm [thread:$0]  %s285, 256, %s7, [#allocation3], 128, 128, 8
    $region33: #{transformer_block.3} parent=1 // pred_fallthru
      _
    // Predicated region
    $region34: #{transformer_block.3} parent=1 // pred_check
      _
    $region35: #{transformer_block.3} parent=1 // pred_check_branch
      %292 = sbr.rel (0) target = $region37
    $region36: #{transformer_block.3} parent=1 // pred_region
      %293 = dma.done [#allocation3], 256
    $region37: #{transformer_block.3} parent=1 // pred_fallthru
      _
    %294 = vsyncpa [#allocation3], 1

// kernel: transformer_block.2
$region0: #{transformer_block.2}
  #allocation0 [shape = 'u32[]', space=smem, size = 0x4, offset = 0x4, fixed_abs, tag = 'smem constant byte address 0x4 - core index']
  #allocation1 [shape = 'u32[144,128]{1,0:T(1,128)}', space=vmem, size = 0x12000, scoped, tag = 'internal scratch']
  %s0 = inlined_call_operand.vmem [shape: f32[2,8,32], index: 0, kind: input, shape index: {}, may-alias: {0,1}]
  %s1 = inlined_call_operand.vmem [shape: f32[2,8,32], index: 1, kind: input, shape index: {}, may-alias: {0,1}]
  %s2 = inlined_call_operand.vmem [shape: f32[1,32], index: 2, kind: input, shape index: {}]
  %s3 = inlined_call_operand.vmem [shape: f32[1,32], index: 3, kind: input, shape index: {}]
  %s4 = inlined_call_operand.vmem [shape: bf16[32,32], index: 4, kind: input, shape index: {}]
  %s5 = inlined_call_operand.vmem [shape: f32[1,32], index: 5, kind: input, shape index: {}]
  %s6 = inlined_call_operand.vmem [shape: bf16[32,64], index: 6, kind: input, shape index: {}]
  %s7 = inlined_call_operand.vmem [shape: f32[1,64], index: 7, kind: input, shape index: {}]
  %s8 = inlined_call_operand.vmem [shape: bf16[32,32], index: 8, kind: input, shape index: {}]
  %s9 = inlined_call_operand.vmem [shape: f32[1,32], index: 9, kind: input, shape index: {}]
  %s10 = inlined_call_operand.vmem [shape: f32[2,8,32], index: 10, kind: output, shape index: {}]
  %s11 = sld [smem:[#allocation0]]
  $region73: #{transformer_block.2} parent=0
    _
  %s13 = ssub.s32 1, %s11
  %s14 = scalar_select 0, %s13, %s11
  loop: start=0, step=1, limit=4
  $region2: #{transformer_block.2} parent=0 // loop_pre_header
    _
  $region3: #{transformer_block.2} parent=0 // loop_header
    %s16 = sphi 0, %s20
    %p17 = scmp.ge.s32.totalorder %s16, 4
    %s23 = sphi 0, %s35
    %s24 = sphi 0, %s31
    %s25 = sphi 0, %s23
    %s26 = sphi 0, %s24
    %s27 = sphi 0, %s25
    %s28 = sphi 0, %s26
    %s40 = sphi 0, %s42
    %s43 = sphi 0, %s40
    %s44 = sphi 0, %s43
    %s60 = sphi 0, %s44
    %s66 = sphi 0, %s68
    %s69 = sphi 0, %s66
    %s70 = sphi 0, %s69
    %s86 = sphi 0, %s70
    %s90 = sphi 0, %s90
    %s92 = sphi 0, %s90
    %s93 = sphi 0, %s92
    %s107 = sphi 0, %s93
    %s111 = sphi 0, %s111
    %s113 = sphi 0, %s111
    %s114 = sphi 0, %s113
    %s128 = sphi 0, %s114
    %s132 = sphi 0, %s132
    %s134 = sphi 0, %s132
    %s135 = sphi 0, %s134
    %s149 = sphi 0, %s135
    %s153 = sphi 0, %s153
    %s155 = sphi 0, %s153
    %s156 = sphi 0, %s155
    %s170 = sphi 0, %s156
    %s174 = sphi 0, %s174
    %s176 = sphi 0, %s174
    %s177 = sphi 0, %s176
    %s191 = sphi 0, %s177
    %s195 = sphi 0, %s195
    %s197 = sphi 0, %s195
    %s198 = sphi 0, %s197
    %s212 = sphi 0, %s198
    %s216 = sphi 0, %s216
    %s218 = sphi 0, %s216
    %s219 = sphi 0, %s218
    %s233 = sphi 0, %s219
    %s237 = sphi 0, %s237
    %s239 = sphi 0, %s237
    %s240 = sphi 0, %s239
    %s254 = sphi 0, %s240
    %s262 = sphi 0, %s264
    %s265 = sphi 0, %s262
    %s266 = sphi 0, %s265
    %s282 = sphi 0, %s266
  $region4: #{transformer_block.2} parent=0 // loop_header_branch
    %19 = sbr.rel (%p17) target = $region8
  $region5: #{transformer_block.2} parent=0 // loop_body
    %s21 = ssub.s32 %s16, 1
    %s22 = ssub.s32 %s16, 2
    %s29 = sadd.s32 1, %s24
    %p30 = scmp.ge.s32.totalorder %s29, 1
    %s31 = scalar_select %p30, 0, %s29
    %s32 = sadd.s32 1, %s23
    %s33 = scalar_select %p30, %s32, %s23
    %p34 = scmp.ge.s32.totalorder %s33, 2
    %s35 = scalar_select %p34, 0, %s33
    %s36 = ssub.s32 %s23, %s35
    %s37 = ssub.s32 %s24, %s31
    %s38 = sor.u32 %s36, %s37
    %p39 = scmp.eq.s32.totalorder %s38, 0
    %s41 = sadd.s32 %s40, 1
    %s42 = scalar_select %p39, %s40, %s41
    %p45 = pneg %p39
    %p46 = scmp.eq.s32.totalorder %s16, 1
    %p47 = por %p45, %p46
    %p48 = scmp.ne.s32.totalorder %s40, %s43
    %p49 = scmp.eq.s32.totalorder %s16, 0
    %p50 = por %p48, %p49
    %p51 = scmp.ne.s32.totalorder %s40, %s43
    %p52 = scmp.eq.s32.totalorder %s21, 1
    %p53 = por %p51, %p52
    %p54 = scmp.ne.s32.totalorder %s43, %s44
    %p55 = scmp.eq.s32.totalorder %s21, 0
    %p56 = por %p54, %p55
    %p57 = scmp.ne.s32.totalorder %s43, %s44
    %p58 = scmp.eq.s32.totalorder %s22, 1
    %p59 = por %p57, %p58
    %p61 = scmp.ne.s32.totalorder %s44, %s60
    %p62 = scmp.eq.s32.totalorder %s22, 0
    %p63 = por %p61, %p62
    %s64 = ssub.s32 %s23, %s35
    %p65 = scmp.eq.s32.totalorder %s64, 0
    %s67 = sadd.s32 %s66, 1
    %s68 = scalar_select %p65, %s66, %s67
    %p71 = pneg %p65
    %p72 = scmp.eq.s32.totalorder %s16, 1
    %p73 = por %p71, %p72
    %p74 = scmp.ne.s32.totalorder %s66, %s69
    %p75 = scmp.eq.s32.totalorder %s16, 0
    %p76 = por %p74, %p75
    %p77 = scmp.ne.s32.totalorder %s66, %s69
    %p78 = scmp.eq.s32.totalorder %s21, 1
    %p79 = por %p77, %p78
    %p80 = scmp.ne.s32.totalorder %s69, %s70
    %p81 = scmp.eq.s32.totalorder %s21, 0
    %p82 = por %p80, %p81
    %p83 = scmp.ne.s32.totalorder %s69, %s70
    %p84 = scmp.eq.s32.totalorder %s22, 1
    %p85 = por %p83, %p84
    %p87 = scmp.ne.s32.totalorder %s70, %s86
    %p88 = scmp.eq.s32.totalorder %s22, 0
    %p89 = por %p87, %p88
    %s91 = sadd.s32 %s90, 1
    %p94 = scmp.eq.s32.totalorder %s16, 1
    %p95 = scmp.ne.s32.totalorder %s90, %s92
    %p96 = scmp.eq.s32.totalorder %s16, 0
    %p97 = por %p95, %p96
    %p98 = scmp.ne.s32.totalorder %s90, %s92
    %p99 = scmp.eq.s32.totalorder %s21, 1
    %p100 = por %p98, %p99
    %p101 = scmp.ne.s32.totalorder %s92, %s93
    %p102 = scmp.eq.s32.totalorder %s21, 0
    %p103 = por %p101, %p102
    %p104 = scmp.ne.s32.totalorder %s92, %s93
    %p105 = scmp.eq.s32.totalorder %s22, 1
    %p106 = por %p104, %p105
    %p108 = scmp.ne.s32.totalorder %s93, %s107
    %p109 = scmp.eq.s32.totalorder %s22, 0
    %p110 = por %p108, %p109
    %s112 = sadd.s32 %s111, 1
    %p115 = scmp.eq.s32.totalorder %s16, 1
    %p116 = scmp.ne.s32.totalorder %s111, %s113
    %p117 = scmp.eq.s32.totalorder %s16, 0
    %p118 = por %p116, %p117
    %p119 = scmp.ne.s32.totalorder %s111, %s113
    %p120 = scmp.eq.s32.totalorder %s21, 1
    %p121 = por %p119, %p120
    %p122 = scmp.ne.s32.totalorder %s113, %s114
    %p123 = scmp.eq.s32.totalorder %s21, 0
    %p124 = por %p122, %p123
    %p125 = scmp.ne.s32.totalorder %s113, %s114
    %p126 = scmp.eq.s32.totalorder %s22, 1
    %p127 = por %p125, %p126
    %p129 = scmp.ne.s32.totalorder %s114, %s128
    %p130 = scmp.eq.s32.totalorder %s22, 0
    %p131 = por %p129, %p130
    %s133 = sadd.s32 %s132, 1
    %p136 = scmp.eq.s32.totalorder %s16, 1
    %p137 = scmp.ne.s32.totalorder %s132, %s134
    %p138 = scmp.eq.s32.totalorder %s16, 0
    %p139 = por %p137, %p138
    %p140 = scmp.ne.s32.totalorder %s132, %s134
    %p141 = scmp.eq.s32.totalorder %s21, 1
    %p142 = por %p140, %p141
    %p143 = scmp.ne.s32.totalorder %s134, %s135
    %p144 = scmp.eq.s32.totalorder %s21, 0
    %p145 = por %p143, %p144
    %p146 = scmp.ne.s32.totalorder %s134, %s135
    %p147 = scmp.eq.s32.totalorder %s22, 1
    %p148 = por %p146, %p147
    %p150 = scmp.ne.s32.totalorder %s135, %s149
    %p151 = scmp.eq.s32.totalorder %s22, 0
    %p152 = por %p150, %p151
    %s154 = sadd.s32 %s153, 1
    %p157 = scmp.eq.s32.totalorder %s16, 1
    %p158 = scmp.ne.s32.totalorder %s153, %s155
    %p159 = scmp.eq.s32.totalorder %s16, 0
    %p160 = por %p158, %p159
    %p161 = scmp.ne.s32.totalorder %s153, %s155
    %p162 = scmp.eq.s32.totalorder %s21, 1
    %p163 = por %p161, %p162
    %p164 = scmp.ne.s32.totalorder %s155, %s156
    %p165 = scmp.eq.s32.totalorder %s21, 0
    %p166 = por %p164, %p165
    %p167 = scmp.ne.s32.totalorder %s155, %s156
    %p168 = scmp.eq.s32.totalorder %s22, 1
    %p169 = por %p167, %p168
    %p171 = scmp.ne.s32.totalorder %s156, %s170
    %p172 = scmp.eq.s32.totalorder %s22, 0
    %p173 = por %p171, %p172
    %s175 = sadd.s32 %s174, 1
    %p178 = scmp.eq.s32.totalorder %s16, 1
    %p179 = scmp.ne.s32.totalorder %s174, %s176
    %p180 = scmp.eq.s32.totalorder %s16, 0
    %p181 = por %p179, %p180
    %p182 = scmp.ne.s32.totalorder %s174, %s176
    %p183 = scmp.eq.s32.totalorder %s21, 1
    %p184 = por %p182, %p183
    %p185 = scmp.ne.s32.totalorder %s176, %s177
    %p186 = scmp.eq.s32.totalorder %s21, 0
    %p187 = por %p185, %p186
    %p188 = scmp.ne.s32.totalorder %s176, %s177
    %p189 = scmp.eq.s32.totalorder %s22, 1
    %p190 = por %p188, %p189
    %p192 = scmp.ne.s32.totalorder %s177, %s191
    %p193 = scmp.eq.s32.totalorder %s22, 0
    %p194 = por %p192, %p193
    %s196 = sadd.s32 %s195, 1
    %p199 = scmp.eq.s32.totalorder %s16, 1
    %p200 = scmp.ne.s32.totalorder %s195, %s197
    %p201 = scmp.eq.s32.totalorder %s16, 0
    %p202 = por %p200, %p201
    %p203 = scmp.ne.s32.totalorder %s195, %s197
    %p204 = scmp.eq.s32.totalorder %s21, 1
    %p205 = por %p203, %p204
    %p206 = scmp.ne.s32.totalorder %s197, %s198
    %p207 = scmp.eq.s32.totalorder %s21, 0
    %p208 = por %p206, %p207
    %p209 = scmp.ne.s32.totalorder %s197, %s198
    %p210 = scmp.eq.s32.totalorder %s22, 1
    %p211 = por %p209, %p210
    %p213 = scmp.ne.s32.totalorder %s198, %s212
    %p214 = scmp.eq.s32.totalorder %s22, 0
    %p215 = por %p213, %p214
    %s217 = sadd.s32 %s216, 1
    %p220 = scmp.eq.s32.totalorder %s16, 1
    %p221 = scmp.ne.s32.totalorder %s216, %s218
    %p222 = scmp.eq.s32.totalorder %s16, 0
    %p223 = por %p221, %p222
    %p224 = scmp.ne.s32.totalorder %s216, %s218
    %p225 = scmp.eq.s32.totalorder %s21, 1
    %p226 = por %p224, %p225
    %p227 = scmp.ne.s32.totalorder %s218, %s219
    %p228 = scmp.eq.s32.totalorder %s21, 0
    %p229 = por %p227, %p228
    %p230 = scmp.ne.s32.totalorder %s218, %s219
    %p231 = scmp.eq.s32.totalorder %s22, 1
    %p232 = por %p230, %p231
    %p234 = scmp.ne.s32.totalorder %s219, %s233
    %p235 = scmp.eq.s32.totalorder %s22, 0
    %p236 = por %p234, %p235
    %s238 = sadd.s32 %s237, 1
    %p241 = scmp.eq.s32.totalorder %s16, 1
    %p242 = scmp.ne.s32.totalorder %s237, %s239
    %p243 = scmp.eq.s32.totalorder %s16, 0
    %p244 = por %p242, %p243
    %p245 = scmp.ne.s32.totalorder %s237, %s239
    %p246 = scmp.eq.s32.totalorder %s21, 1
    %p247 = por %p245, %p246
    %p248 = scmp.ne.s32.totalorder %s239, %s240
    %p249 = scmp.eq.s32.totalorder %s21, 0
    %p250 = por %p248, %p249
    %p251 = scmp.ne.s32.totalorder %s239, %s240
    %p252 = scmp.eq.s32.totalorder %s22, 1
    %p253 = por %p251, %p252
    %p255 = scmp.ne.s32.totalorder %s240, %s254
    %p256 = scmp.eq.s32.totalorder %s22, 0
    %p257 = por %p255, %p256
    %s258 = ssub.s32 %s23, %s35
    %s259 = ssub.s32 %s24, %s31
    %s260 = sor.u32 %s258, %s259
    %p261 = scmp.eq.s32.totalorder %s260, 0
    %s263 = sadd.s32 %s262, 1
    %s264 = scalar_select %p261, %s262, %s263
    %p267 = pneg %p261
    %p268 = scmp.eq.s32.totalorder %s16, 1
    %p269 = por %p267, %p268
    %p270 = scmp.ne.s32.totalorder %s262, %s265
    %p271 = scmp.eq.s32.totalorder %s16, 0
    %p272 = por %p270, %p271
    %p273 = scmp.ne.s32.totalorder %s262, %s265
    %p274 = scmp.eq.s32.totalorder %s21, 1
    %p275 = por %p273, %p274
    %p276 = scmp.ne.s32.totalorder %s265, %s266
    %p277 = scmp.eq.s32.totalorder %s21, 0
    %p278 = por %p276, %p277
    %p279 = scmp.ne.s32.totalorder %s265, %s266
    %p280 = scmp.eq.s32.totalorder %s22, 1
    %p281 = por %p279, %p280
    %p283 = scmp.ne.s32.totalorder %s266, %s282
    %p284 = scmp.eq.s32.totalorder %s22, 0
    %p285 = por %p283, %p284
    %p286 = scmp.le.s32.totalorder 1, %s16
    %p287 = scmp.lt.s32.totalorder %s16, 3
    %p288 = pnand %p286, %p287
    %p289 = pneg %p288
    // Predicated region
    $region9: #{transformer_block.2} parent=5 // pred_check
      _
    $region10: #{transformer_block.2} parent=5 // pred_check_branch
      %291 = sbr.rel (%p288) target = $region12
    $region11: #{transformer_block.2} parent=5 // pred_region
      %s292 = ssub.s32 %s16, 1
      // Predicated region
      $region13: #{transformer_block.2} parent=11 // pred_check
        %p293 = pneg %p103
      $region14: #{transformer_block.2} parent=11 // pred_check_branch
        %295 = sbr.rel (%p293) target = $region16
      $region15: #{transformer_block.2} parent=11 // pred_region
        _
      $region16: #{transformer_block.2} parent=11 // pred_fallthru
        _
      // Predicated region
      $region17: #{transformer_block.2} parent=11 // pred_check
        %p296 = pneg %p124
      $region18: #{transformer_block.2} parent=11 // pred_check_branch
        %298 = sbr.rel (%p296) target = $region20
      $region19: #{transformer_block.2} parent=11 // pred_region
        _
      $region20: #{transformer_block.2} parent=11 // pred_fallthru
        _
      // Predicated region
      $region21: #{transformer_block.2} parent=11 // pred_check
        %p299 = pneg %p145
      $region22: #{transformer_block.2} parent=11 // pred_check_branch
        %301 = sbr.rel (%p299) target = $region24
      $region23: #{transformer_block.2} parent=11 // pred_region
        _
      $region24: #{transformer_block.2} parent=11 // pred_fallthru
        _
      // Predicated region
      $region25: #{transformer_block.2} parent=11 // pred_check
        %p302 = pneg %p166
      $region26: #{transformer_block.2} parent=11 // pred_check_branch
        %304 = sbr.rel (%p302) target = $region28
      $region27: #{transformer_block.2} parent=11 // pred_region
        _
      $region28: #{transformer_block.2} parent=11 // pred_fallthru
        _
      // Predicated region
      $region29: #{transformer_block.2} parent=11 // pred_check
        %p305 = pneg %p187
      $region30: #{transformer_block.2} parent=11 // pred_check_branch
        %307 = sbr.rel (%p305) target = $region32
      $region31: #{transformer_block.2} parent=11 // pred_region
        _
      $region32: #{transformer_block.2} parent=11 // pred_fallthru
        _
      // Predicated region
      $region33: #{transformer_block.2} parent=11 // pred_check
        %p308 = pneg %p208
      $region34: #{transformer_block.2} parent=11 // pred_check_branch
        %310 = sbr.rel (%p308) target = $region36
      $region35: #{transformer_block.2} parent=11 // pred_region
        _
      $region36: #{transformer_block.2} parent=11 // pred_fallthru
        _
      // Predicated region
      $region37: #{transformer_block.2} parent=11 // pred_check
        %p311 = pneg %p229
      $region38: #{transformer_block.2} parent=11 // pred_check_branch
        %313 = sbr.rel (%p311) target = $region40
      $region39: #{transformer_block.2} parent=11 // pred_region
        _
      $region40: #{transformer_block.2} parent=11 // pred_fallthru
        _
      // Predicated region
      $region41: #{transformer_block.2} parent=11 // pred_check
        %p314 = pneg %p250
      $region42: #{transformer_block.2} parent=11 // pred_check_branch
        %316 = sbr.rel (%p314) target = $region44
      $region43: #{transformer_block.2} parent=11 // pred_region
        _
      $region44: #{transformer_block.2} parent=11 // pred_fallthru
        _
    $region12: #{transformer_block.2} parent=5 // pred_fallthru
      _
    %p317 = scmp.lt.s32.totalorder %s16, 2
    // Predicated region
    $region45: #{transformer_block.2} parent=5 // pred_check
      %p318 = pneg %p317
    $region46: #{transformer_block.2} parent=5 // pred_check_branch
      %320 = sbr.rel (%p318) target = $region48
    $region47: #{transformer_block.2} parent=5 // pred_region
      // Predicated region
      $region49: #{transformer_block.2} parent=47 // pred_check
        %p321 = pneg %p50
      $region50: #{transformer_block.2} parent=47 // pred_check_branch
        %323 = sbr.rel (%p321) target = $region52
      $region51: #{transformer_block.2} parent=47 // pred_region
        %p324 = scmp.lt.s32.totalorder %s23, 1
        %s325 = scalar_select %p324, %s23, 1
        %p326 = scmp.lt.s32.totalorder %s24, 0
        %s327 = scalar_select %p326, %s24, 0
        %s328 = sadd.s32 %s327, %s325
        %s329 = smul.addr %s328, 8
        %s330 = scalar_lea.vmem %s0, %s329
      $region52: #{transformer_block.2} parent=47 // pred_fallthru
        _
      // Predicated region
      $region53: #{transformer_block.2} parent=47 // pred_check
        %p331 = pneg %p76
      $region54: #{transformer_block.2} parent=47 // pred_check_branch
        %333 = sbr.rel (%p331) target = $region56
      $region55: #{transformer_block.2} parent=47 // pred_region
        %p334 = scmp.lt.s32.totalorder %s23, 1
        %s335 = scalar_select %p334, %s23, 1
        %s336 = smul.addr %s335, 8
        %s337 = scalar_lea.vmem %s1, %s336
      $region56: #{transformer_block.2} parent=47 // pred_fallthru
        _
    $region48: #{transformer_block.2} parent=5 // pred_fallthru
      _
    %p338 = scmp.le.s32.totalorder 1, %s16
    %p339 = scmp.lt.s32.totalorder %s16, 3
    %p340 = pnand %p338, %p339
    %p341 = pneg %p340
    // Predicated region
    $region57: #{transformer_block.2} parent=5 // pred_check
      _
    $region58: #{transformer_block.2} parent=5 // pred_check_branch
      %343 = sbr.rel (%p340) target = $region60
    $region59: #{transformer_block.2} parent=5 // pred_region
      %s344 = ssub.s32 %s16, 1
      %p345 = scmp.lt.s32.totalorder %s25, 1
      %s346 = scalar_select %p345, %s25, 1
      %p347 = scmp.lt.s32.totalorder %s26, 0
      %s348 = scalar_select %p347, %s26, 0
      %s349 = sadd.s32 %s348, %s346
      %s350 = smul.addr %s349, 8
      %s351 = scalar_lea.vmem %s0, %s350
      %p352 = pneg %p56
      %p353 = pneg %p53
      %p354 = scmp.lt.s32.totalorder %s25, 1
      %s355 = scalar_select %p354, %s25, 1
      %s356 = smul.addr %s355, 8
      %s357 = scalar_lea.vmem %s1, %s356
      %p358 = pneg %p82
      %p359 = pneg %p79
      %p360 = pneg %p103
      %p361 = pneg %p100
      %p362 = pneg %p124
      %p363 = pneg %p121
      %p364 = pneg %p145
      %p365 = pneg %p142
      %p366 = pneg %p166
      %p367 = pneg %p163
      %p368 = pneg %p187
      %p369 = pneg %p184
      %p370 = pneg %p208
      %p371 = pneg %p205
      %p372 = pneg %p229
      %p373 = pneg %p226
      %p374 = pneg %p250
      %p375 = pneg %p247
      %p376 = pneg %p278
      %p377 = pneg %p275
      %p378 = scmp.lt.s32.totalorder %s25, 1
      %s379 = scalar_select %p378, %s25, 1
      %p380 = scmp.lt.s32.totalorder %s26, 0
      %s381 = scalar_select %p380, %s26, 0
      %s382 = sadd.s32 %s381, %s379
      %s383 = smul.addr %s382, 8
      %s384 = scalar_lea.vmem %s10, %s383
      %p385 = scmp.lt.s32.totalorder %s25, 1
      %s386 = scalar_select %p385, %s25, 1
      %p387 = scmp.lt.s32.totalorder %s26, 0
      %s388 = scalar_select %p387, %s26, 0
      %s389 = sadd.s32 %s388, %s386
      %s390 = smul.addr %s389, 8
      %s391 = scalar_lea.vmem %s0, %s390
      %p392 = scmp.lt.s32.totalorder %s25, 1
      %s393 = scalar_select %p392, %s25, 1
      %s394 = smul.addr %s393, 8
      %s395 = scalar_lea.vmem %s1, %s394
      %p396 = scmp.lt.s32.totalorder %s25, 1
      %s397 = scalar_select %p396, %s25, 1
      %p398 = scmp.lt.s32.totalorder %s26, 0
      %s399 = scalar_select %p398, %s26, 0
      %s400 = sadd.s32 %s399, %s397
      %s401 = smul.addr %s400, 8
      %s402 = scalar_lea.vmem %s10, %s401
      %v404 = vld [vmem:[%s391] sm:$0xff]
      %v405 = vld [vmem:[%s2] sm:$0x1]
      %v406 = vld [vmem:[%s3] sm:$0x1]
      %vm407 = vcmask 261120
      %v408 = vsel %vm407, %v404, 0.0
      %409 = vadd.xlane.f32.xlu0 %v408
      %v410 = vpop.xlane.xlu0 %409
      %v411 = vrcp.pop 32.0
      %v412 = vmul.f32 %v410, %v411
      %v413 = vsub.f32 %v404, %v412
      %v414 = vmul.f32 %v413, %v413
      %v415 = vsel %vm407, %v414, 0.0
      %416 = vadd.xlane.f32.xlu0 %v415
      %v417 = vpop.xlane.xlu0 %416
      %v418 = vmul.f32 %v417, %v411
      %v419 = vadd.f32 %v418, 1e-05
      %v420 = vrsqrt.pop %v419
      %v421 = vmul.f32 %v413, %v420
      %v423 = vlaneseq
      %v424 = vshrl.u32 %v423, 7
      %v425 = vsub.s32 0, %v424
      %v426 = vrot.slane %v405, %v425
      %v428 = vmul.f32 %v421, %v426
      %v430 = vlaneseq
      %v431 = vshrl.u32 %v430, 7
      %v432 = vsub.s32 0, %v431
      %v433 = vrot.slane %v406, %v432
      %v435 = vadd.f32 %v428, %v433
      %v436 = vpack.c.bf16 %v435, %v435
      %v437 = vld [vmem:[%s395] sm:$0xff]
      %v438 = vsel %vm407, %v437, 0.0
      %439 = vadd.xlane.f32.xlu0 %v438
      %v440 = vpop.xlane.xlu0 %439
      %v441 = vmul.f32 %v440, %v411
      %v442 = vsub.f32 %v437, %v441
      %v443 = vmul.f32 %v442, %v442
      %v444 = vsel %vm407, %v443, 0.0
      %445 = vadd.xlane.f32.xlu0 %v444
      %v446 = vpop.xlane.xlu0 %445
      %v447 = vmul.f32 %v446, %v411
      %v448 = vadd.f32 %v447, 1e-05
      %v449 = vrsqrt.pop %v448
      %v450 = vmul.f32 %v442, %v449
      %v451 = vmul.f32 %v450, %v426
      %v452 = vadd.f32 %v451, %v433
      %v453 = vpack.c.bf16 %v452, %v452
      %v454 = vld [vmem:[%s4] sm:$0xf]
      %v455 = vld [vmem:[%s4 + $0x4] sm:$0xf]
      %v456 = vld [vmem:[%s4 + $0x8] sm:$0xf]
      %v457 = vld [vmem:[%s4 + $0xc] sm:$0xf]
      %v458 = vld [vmem:[%s5] sm:$0x1]
      %v460 = vlaneseq
      %v461 = vshrl.u32 %v460, 7
      %v462 = vsub.s32 0, %v461
      %v463 = vrot.slane %v458, %v462
      %v469 = vunpack.c.l.b16 %v454
      %v470 = vunpack.c.l.b16 %v455
      %v471 = vunpack.c.l.b16 %v456
      %v472 = vunpack.c.l.b16 %v457
      %v473 = vpack.c.b16 %v470, %v469
      %v474 = vpack.c.b16 %v472, %v471
      %v478 = vsel %vm407, %v436, 0
      %480 = vmatprep.subr.bf16.mxu0 0
      %481 = vmatpush1.bf16.msra.mxu0 %v473
      %482 = vmatprep.subr.bf16.mxu0 0
      %483 = vmatpush1.bf16.msra.mxu0 %v474
      %484 = vmatprep.subr.bf16.mxu0 0
      %485 = vmatpush1.bf16.msra.mxu0 0
      %486 = vmatprep.subr.bf16.mxu0 0
      %487 = vmatpush1.bf16.msra.mxu0 0
      %488 = vmatprep.subr.bf16.mxu0 0
      %489 = vmatpush1.bf16.msra.mxu0 0
      %490 = vmatprep.subr.bf16.mxu0 0
      %491 = vmatpush1.bf16.msra.mxu0 0
      %492 = vmatprep.subr.bf16.mxu0 0
      %493 = vmatpush1.bf16.msra.mxu0 0
      %494 = vmatprep.subr.bf16.mxu0 0
      %495 = vmatpush1.bf16.msra.mxu0 0
      %496 = vmatprep.subr.bf16.mxu0 0
      %497 = vmatpush1.bf16.msra.mxu0 0
      %498 = vmatprep.subr.bf16.mxu0 0
      %499 = vmatpush1.bf16.msra.mxu0 0
      %500 = vmatprep.subr.bf16.mxu0 0
      %501 = vmatpush1.bf16.msra.mxu0 0
      %502 = vmatprep.subr.bf16.mxu0 0
      %503 = vmatpush1.bf16.msra.mxu0 0
      %504 = vmatprep.subr.bf16.mxu0 0
      %505 = vmatpush1.bf16.msra.mxu0 0
      %506 = vmatprep.subr.bf16.mxu0 0
      %507 = vmatpush1.bf16.msra.mxu0 0
      %508 = vmatprep.subr.bf16.mxu0 0
      %509 = vmatpush1.bf16.msra.mxu0 0
      %510 = vmatprep.subr.bf16.mxu0 0
      %511 = vmatpush1.bf16.msra.mxu0 0
      %512 = vmatprep.mubr.bf16.mxu0 0
      %513 = vmatmul.mubr.bf16.gmra.mrb[0].mxu0 %v478
      %v514 = vpop.f32.mrb[0].mxu0
      %v515 = vadd.f32 %v463, %v514
      %v516 = vpop.f32.mrb[0].mxu0
      %v517 = vpop.f32.mrb[0].mxu0
      %v518 = vpop.f32.mrb[0].mxu0
      %519 = vdwg.mxu0
      %v520 = vpack.c.bf16 %v515, %v515
      %v521 = vld [vmem:[%s6] sm:$0xf]
      %v522 = vld [vmem:[%s6 + $0x4] sm:$0xf]
      %v523 = vld [vmem:[%s6 + $0x8] sm:$0xf]
      %v524 = vld [vmem:[%s6 + $0xc] sm:$0xf]
      %v525 = vld [vmem:[%s7] sm:$0x1]
      %v527 = vlaneseq
      %v528 = vshrl.u32 %v527, 7
      %v529 = vsub.s32 0, %v528
      %v530 = vrot.slane %v525, %v529
      %v536 = vunpack.c.l.b16 %v521
      %v537 = vunpack.c.l.b16 %v522
      %v538 = vunpack.c.l.b16 %v523
      %v539 = vunpack.c.l.b16 %v524
      %v540 = vpack.c.b16 %v537, %v536
      %v541 = vpack.c.b16 %v539, %v538
      %v545 = vsel %vm407, %v453, 0
      %547 = vmatprep.subr.bf16.mxu0 0
      %548 = vmatpush1.bf16.msra.mxu0 %v540
      %549 = vmatprep.subr.bf16.mxu0 0
      %550 = vmatpush1.bf16.msra.mxu0 %v541
      %551 = vmatprep.subr.bf16.mxu0 0
      %552 = vmatpush1.bf16.msra.mxu0 0
      %553 = vmatprep.subr.bf16.mxu0 0
      %554 = vmatpush1.bf16.msra.mxu0 0
      %555 = vmatprep.subr.bf16.mxu0 0
      %556 = vmatpush1.bf16.msra.mxu0 0
      %557 = vmatprep.subr.bf16.mxu0 0
      %558 = vmatpush1.bf16.msra.mxu0 0
      %559 = vmatprep.subr.bf16.mxu0 0
      %560 = vmatpush1.bf16.msra.mxu0 0
      %561 = vmatprep.subr.bf16.mxu0 0
      %562 = vmatpush1.bf16.msra.mxu0 0
      %563 = vmatprep.subr.bf16.mxu0 0
      %564 = vmatpush1.bf16.msra.mxu0 0
      %565 = vmatprep.subr.bf16.mxu0 0
      %566 = vmatpush1.bf16.msra.mxu0 0
      %567 = vmatprep.subr.bf16.mxu0 0
      %568 = vmatpush1.bf16.msra.mxu0 0
      %569 = vmatprep.subr.bf16.mxu0 0
      %570 = vmatpush1.bf16.msra.mxu0 0
      %571 = vmatprep.subr.bf16.mxu0 0
      %572 = vmatpush1.bf16.msra.mxu0 0
      %573 = vmatprep.subr.bf16.mxu0 0
      %574 = vmatpush1.bf16.msra.mxu0 0
      %575 = vmatprep.subr.bf16.mxu0 0
      %576 = vmatpush1.bf16.msra.mxu0 0
      %577 = vmatprep.subr.bf16.mxu0 0
      %578 = vmatpush1.bf16.msra.mxu0 0
      %579 = vmatprep.mubr.bf16.mxu0 0
      %580 = vmatmul.mubr.bf16.gmra.mrb[0].mxu0 %v545
      %v581 = vpop.f32.mrb[0].mxu0
      %v582 = vadd.f32 %v530, %v581
      %v583 = vpop.f32.mrb[0].mxu0
      %v584 = vpop.f32.mrb[0].mxu0
      %v585 = vpop.f32.mrb[0].mxu0
      %586 = vdwg.mxu0
      %v587 = vpack.c.bf16 %v582, %v582
      %s588 = smul.u32 %s26, 8
      %v589 = vlaneseq
      %v590 = vshrl.u32 %v589, 7
      %v591 = vstv %s588
      %v592 = vadd.s32 %v591, %v590
      %v593 = vlaneseq
      %v594 = vand.u32 %v593, 127
      %vm595 = vcmp.gt.s32.totalorder %v594, %v592
      %vm596 = vcmask 64512
      %v598 = vsel %vm596, %v520, 0
      %v601 = vsel %vm596, %v587, 0
      %603 = vmatprep.subr.bf16.mxu0 0
      %604 = vmatpush1.bf16.xpose.msra.mxu0 %v601
      %605 = vmatprep.subr.bf16.mxu0 0
      %606 = vmatpush1.bf16.xpose.msra.mxu0 0
      %607 = vmatprep.subr.bf16.mxu0 0
      %608 = vmatpush1.bf16.xpose.msra.mxu0 0
      %609 = vmatprep.subr.bf16.mxu0 0
      %610 = vmatpush1.bf16.xpose.msra.mxu0 0
      %611 = vmatprep.subr.bf16.mxu0 0
      %612 = vmatpush1.bf16.xpose.msra.mxu0 0
      %613 = vmatprep.subr.bf16.mxu0 0
      %614 = vmatpush1.bf16.xpose.msra.mxu0 0
      %615 = vmatprep.subr.bf16.mxu0 0
      %616 = vmatpush1.bf16.xpose.msra.mxu0 0
      %617 = vmatprep.subr.bf16.mxu0 0
      %618 = vmatpush1.bf16.xpose.msra.mxu0 0
      %619 = vmatprep.subr.bf16.mxu0 0
      %620 = vmatpush1.bf16.xpose.msra.mxu0 0
      %621 = vmatprep.subr.bf16.mxu0 0
      %622 = vmatpush1.bf16.xpose.msra.mxu0 0
      %623 = vmatprep.subr.bf16.mxu0 0
      %624 = vmatpush1.bf16.xpose.msra.mxu0 0
      %625 = vmatprep.subr.bf16.mxu0 0
      %626 = vmatpush1.bf16.xpose.msra.mxu0 0
      %627 = vmatprep.subr.bf16.mxu0 0
      %628 = vmatpush1.bf16.xpose.msra.mxu0 0
      %629 = vmatprep.subr.bf16.mxu0 0
      %630 = vmatpush1.bf16.xpose.msra.mxu0 0
      %631 = vmatprep.subr.bf16.mxu0 0
      %632 = vmatpush1.bf16.xpose.msra.mxu0 0
      %633 = vmatprep.subr.bf16.mxu0 0
      %634 = vmatpush1.bf16.xpose.msra.mxu0 0
      %635 = vmatprep.mubr.bf16.mxu0 0
      %636 = vmatmul.mubr.bf16.gmra.mrb[0].mxu0 %v598
      %v637 = vpop.f32.mrb[0].mxu0
      %v638 = vadd.f32 0.0, %v637
      %v639 = vpop.f32.mrb[0].mxu0
      %v640 = vpop.f32.mrb[0].mxu0
      %v641 = vpop.f32.mrb[0].mxu0
      %642 = vdwg.mxu0
      %v643 = vmul.f32 %v638, 0.35355338
      %v644 = vsel %vm595, -inf, %v643
      %v645 = vsel %vm596, %v644, -inf
      %646 = vmax.xlane.f32.xlu0 %v645
      %v647 = vpop.xlane.xlu0 %646
      %v648 = vsub.f32 %v644, %v647
      %v649 = vmul.f32 %v648, 1.442695
      %v650 = vpow.pop %v649
      %v651 = vsel %vm596, %v650, 0.0
      %652 = vadd.xlane.f32.xlu0 %v651
      %v653 = vpop.xlane.xlu0 %652
      %v654 = vrcp.pop %v653
      %v655 = vmul.f32 %v650, %v654
      %v656 = vpack.c.bf16 %v655, %v655
      %658 = vrot.lane.b32.xlu0 %v587, 96
      %v659 = vpop.permute.xlu0 %658
      %v661 = vsel %vm596, %v656, 0
      %vm663 = vcmask 1043456
      %v665 = vsel %vm663, %v659, 0
      %667 = vmatprep.subr.bf16.mxu0 0
      %668 = vmatpush1.bf16.msra.mxu0 %v665
      %669 = vmatprep.subr.bf16.mxu0 0
      %670 = vmatpush1.bf16.msra.mxu0 0
      %671 = vmatprep.subr.bf16.mxu0 0
      %672 = vmatpush1.bf16.msra.mxu0 0
      %673 = vmatprep.subr.bf16.mxu0 0
      %674 = vmatpush1.bf16.msra.mxu0 0
      %675 = vmatprep.subr.bf16.mxu0 0
      %676 = vmatpush1.bf16.msra.mxu0 0
      %677 = vmatprep.subr.bf16.mxu0 0
      %678 = vmatpush1.bf16.msra.mxu0 0
      %679 = vmatprep.subr.bf16.mxu0 0
      %680 = vmatpush1.bf16.msra.mxu0 0
      %681 = vmatprep.subr.bf16.mxu0 0
      %682 = vmatpush1.bf16.msra.mxu0 0
      %683 = vmatprep.subr.bf16.mxu0 0
      %684 = vmatpush1.bf16.msra.mxu0 0
      %685 = vmatprep.subr.bf16.mxu0 0
      %686 = vmatpush1.bf16.msra.mxu0 0
      %687 = vmatprep.subr.bf16.mxu0 0
      %688 = vmatpush1.bf16.msra.mxu0 0
      %689 = vmatprep.subr.bf16.mxu0 0
      %690 = vmatpush1.bf16.msra.mxu0 0
      %691 = vmatprep.subr.bf16.mxu0 0
      %692 = vmatpush1.bf16.msra.mxu0 0
      %693 = vmatprep.subr.bf16.mxu0 0
      %694 = vmatpush1.bf16.msra.mxu0 0
      %695 = vmatprep.subr.bf16.mxu0 0
      %696 = vmatpush1.bf16.msra.mxu0 0
      %697 = vmatprep.subr.bf16.mxu0 0
      %698 = vmatpush1.bf16.msra.mxu0 0
      %699 = vmatprep.mubr.bf16.mxu0 0
      %700 = vmatmul.mubr.bf16.gmra.mrb[0].mxu0 %v661
      %v701 = vpop.f32.mrb[0].mxu0
      %v702 = vadd.f32 0.0, %v701
      %v703 = vpop.f32.mrb[0].mxu0
      %v704 = vpop.f32.mrb[0].mxu0
      %v705 = vpop.f32.mrb[0].mxu0
      %706 = vdwg.mxu0
      %708 = vrot.lane.b32.xlu0 %v520, 120
      %v709 = vpop.permute.xlu0 %708
      %710 = vrot.lane.b32.xlu0 %v587, 120
      %v711 = vpop.permute.xlu0 %710
      %v713 = vsel %vm596, %v709, 0
      %v716 = vsel %vm596, %v711, 0
      %718 = vmatprep.subr.bf16.mxu0 0
      %719 = vmatpush1.bf16.xpose.msra.mxu0 %v716
      %720 = vmatprep.subr.bf16.mxu0 0
      %721 = vmatpush1.bf16.xpose.msra.mxu0 0
      %722 = vmatprep.subr.bf16.mxu0 0
      %723 = vmatpush1.bf16.xpose.msra.mxu0 0
      %724 = vmatprep.subr.bf16.mxu0 0
      %725 = vmatpush1.bf16.xpose.msra.mxu0 0
      %726 = vmatprep.subr.bf16.mxu0 0
      %727 = vmatpush1.bf16.xpose.msra.mxu0 0
      %728 = vmatprep.subr.bf16.mxu0 0
      %729 = vmatpush1.bf16.xpose.msra.mxu0 0
      %730 = vmatprep.subr.bf16.mxu0 0
      %731 = vmatpush1.bf16.xpose.msra.mxu0 0
      %732 = vmatprep.subr.bf16.mxu0 0
      %733 = vmatpush1.bf16.xpose.msra.mxu0 0
      %734 = vmatprep.subr.bf16.mxu0 0
      %735 = vmatpush1.bf16.xpose.msra.mxu0 0
      %736 = vmatprep.subr.bf16.mxu0 0
      %737 = vmatpush1.bf16.xpose.msra.mxu0 0
      %738 = vmatprep.subr.bf16.mxu0 0
      %739 = vmatpush1.bf16.xpose.msra.mxu0 0
      %740 = vmatprep.subr.bf16.mxu0 0
      %741 = vmatpush1.bf16.xpose.msra.mxu0 0
      %742 = vmatprep.subr.bf16.mxu0 0
      %743 = vmatpush1.bf16.xpose.msra.mxu0 0
      %744 = vmatprep.subr.bf16.mxu0 0
      %745 = vmatpush1.bf16.xpose.msra.mxu0 0
      %746 = vmatprep.subr.bf16.mxu0 0
      %747 = vmatpush1.bf16.xpose.msra.mxu0 0
      %748 = vmatprep.subr.bf16.mxu0 0
      %749 = vmatpush1.bf16.xpose.msra.mxu0 0
      %750 = vmatprep.mubr.bf16.mxu0 0
      %751 = vmatmul.mubr.bf16.gmra.mrb[0].mxu0 %v713
      %v752 = vpop.f32.mrb[0].mxu0
      %v753 = vadd.f32 0.0, %v752
      %v754 = vpop.f32.mrb[0].mxu0
      %v755 = vpop.f32.mrb[0].mxu0
      %v756 = vpop.f32.mrb[0].mxu0
      %757 = vdwg.mxu0
      %v758 = vmul.f32 %v753, 0.35355338
      %v759 = vsel %vm595, -inf, %v758
      %v760 = vsel %vm596, %v759, -inf
      %761 = vmax.xlane.f32.xlu0 %v760
      %v762 = vpop.xlane.xlu0 %761
      %v763 = vsub.f32 %v759, %v762
      %v764 = vmul.f32 %v763, 1.442695
      %v765 = vpow.pop %v764
      %v766 = vsel %vm596, %v765, 0.0
      %767 = vadd.xlane.f32.xlu0 %v766
      %v768 = vpop.xlane.xlu0 %767
      %v769 = vrcp.pop %v768
      %v770 = vmul.f32 %v765, %v769
      %v771 = vpack.c.bf16 %v770, %v770
      %772 = vrot.lane.b32.xlu0 %v587, 88
      %v773 = vpop.permute.xlu0 %772
      %v775 = vsel %vm596, %v771, 0
      %v778 = vsel %vm663, %v773, 0
      %780 = vmatprep.subr.bf16.mxu0 0
      %781 = vmatpush1.bf16.msra.mxu0 %v778
      %782 = vmatprep.subr.bf16.mxu0 0
      %783 = vmatpush1.bf16.msra.mxu0 0
      %784 = vmatprep.subr.bf16.mxu0 0
      %785 = vmatpush1.bf16.msra.mxu0 0
      %786 = vmatprep.subr.bf16.mxu0 0
      %787 = vmatpush1.bf16.msra.mxu0 0
      %788 = vmatprep.subr.bf16.mxu0 0
      %789 = vmatpush1.bf16.msra.mxu0 0
      %790 = vmatprep.subr.bf16.mxu0 0
      %791 = vmatpush1.bf16.msra.mxu0 0
      %792 = vmatprep.subr.bf16.mxu0 0
      %793 = vmatpush1.bf16.msra.mxu0 0
      %794 = vmatprep.subr.bf16.mxu0 0
      %795 = vmatpush1.bf16.msra.mxu0 0
      %796 = vmatprep.subr.bf16.mxu0 0
      %797 = vmatpush1.bf16.msra.mxu0 0
      %798 = vmatprep.subr.bf16.mxu0 0
      %799 = vmatpush1.bf16.msra.mxu0 0
      %800 = vmatprep.subr.bf16.mxu0 0
      %801 = vmatpush1.bf16.msra.mxu0 0
      %802 = vmatprep.subr.bf16.mxu0 0
      %803 = vmatpush1.bf16.msra.mxu0 0
      %804 = vmatprep.subr.bf16.mxu0 0
      %805 = vmatpush1.bf16.msra.mxu0 0
      %806 = vmatprep.subr.bf16.mxu0 0
      %807 = vmatpush1.bf16.msra.mxu0 0
      %808 = vmatprep.subr.bf16.mxu0 0
      %809 = vmatpush1.bf16.msra.mxu0 0
      %810 = vmatprep.subr.bf16.mxu0 0
      %811 = vmatpush1.bf16.msra.mxu0 0
      %812 = vmatprep.mubr.bf16.mxu0 0
      %813 = vmatmul.mubr.bf16.gmra.mrb[0].mxu0 %v775
      %v814 = vpop.f32.mrb[0].mxu0
      %v815 = vadd.f32 0.0, %v814
      %v816 = vpop.f32.mrb[0].mxu0
      %v817 = vpop.f32.mrb[0].mxu0
      %v818 = vpop.f32.mrb[0].mxu0
      %819 = vdwg.mxu0
      %820 = vrot.lane.b32.xlu0 %v520, 112
      %v821 = vpop.permute.xlu0 %820
      %822 = vrot.lane.b32.xlu0 %v587, 112
      %v823 = vpop.permute.xlu0 %822
      %v825 = vsel %vm596, %v821, 0
      %v828 = vsel %vm596, %v823, 0
      %830 = vmatprep.subr.bf16.mxu0 0
      %831 = vmatpush1.bf16.xpose.msra.mxu0 %v828
      %832 = vmatprep.subr.bf16.mxu0 0
      %833 = vmatpush1.bf16.xpose.msra.mxu0 0
      %834 = vmatprep.subr.bf16.mxu0 0
      %835 = vmatpush1.bf16.xpose.msra.mxu0 0
      %836 = vmatprep.subr.bf16.mxu0 0
      %837 = vmatpush1.bf16.xpose.msra.mxu0 0
      %838 = vmatprep.subr.bf16.mxu0 0
      %839 = vmatpush1.bf16.xpose.msra.mxu0 0
      %840 = vmatprep.subr.bf16.mxu0 0
      %841 = vmatpush1.bf16.xpose.msra.mxu0 0
      %842 = vmatprep.subr.bf16.mxu0 0
      %843 = vmatpush1.bf16.xpose.msra.mxu0 0
      %844 = vmatprep.subr.bf16.mxu0 0
      %845 = vmatpush1.bf16.xpose.msra.mxu0 0
      %846 = vmatprep.subr.bf16.mxu0 0
      %847 = vmatpush1.bf16.xpose.msra.mxu0 0
      %848 = vmatprep.subr.bf16.mxu0 0
      %849 = vmatpush1.bf16.xpose.msra.mxu0 0
      %850 = vmatprep.subr.bf16.mxu0 0
      %851 = vmatpush1.bf16.xpose.msra.mxu0 0
      %852 = vmatprep.subr.bf16.mxu0 0
      %853 = vmatpush1.bf16.xpose.msra.mxu0 0
      %854 = vmatprep.subr.bf16.mxu0 0
      %855 = vmatpush1.bf16.xpose.msra.mxu0 0
      %856 = vmatprep.subr.bf16.mxu0 0
      %857 = vmatpush1.bf16.xpose.msra.mxu0 0
      %858 = vmatprep.subr.bf16.mxu0 0
      %859 = vmatpush1.bf16.xpose.msra.mxu0 0
      %860 = vmatprep.subr.bf16.mxu0 0
      %861 = vmatpush1.bf16.xpose.msra.mxu0 0
      %862 = vmatprep.mubr.bf16.mxu0 0
      %863 = vmatmul.mubr.bf16.gmra.mrb[0].mxu0 %v825
      %v864 = vpop.f32.mrb[0].mxu0
      %v865 = vadd.f32 0.0, %v864
      %v866 = vpop.f32.mrb[0].mxu0
      %v867 = vpop.f32.mrb[0].mxu0
      %v868 = vpop.f32.mrb[0].mxu0
      %869 = vdwg.mxu0
      %v870 = vmul.f32 %v865, 0.35355338
      %v871 = vsel %vm595, -inf, %v870
      %v872 = vsel %vm596, %v871, -inf
      %873 = vmax.xlane.f32.xlu0 %v872
      %v874 = vpop.xlane.xlu0 %873
      %v875 = vsub.f32 %v871, %v874
      %v876 = vmul.f32 %v875, 1.442695
      %v877 = vpow.pop %v876
      %v878 = vsel %vm596, %v877, 0.0
      %879 = vadd.xlane.f32.xlu0 %v878
      %v880 = vpop.xlane.xlu0 %879
      %v881 = vrcp.pop %v880
      %v882 = vmul.f32 %v877, %v881
      %v883 = vpack.c.bf16 %v882, %v882
      %884 = vrot.lane.b32.xlu0 %v587, 80
      %v885 = vpop.permute.xlu0 %884
      %v887 = vsel %vm596, %v883, 0
      %v890 = vsel %vm663, %v885, 0
      %892 = vmatprep.subr.bf16.mxu0 0
      %893 = vmatpush1.bf16.msra.mxu0 %v890
      %894 = vmatprep.subr.bf16.mxu0 0
      %895 = vmatpush1.bf16.msra.mxu0 0
      %896 = vmatprep.subr.bf16.mxu0 0
      %897 = vmatpush1.bf16.msra.mxu0 0
      %898 = vmatprep.subr.bf16.mxu0 0
      %899 = vmatpush1.bf16.msra.mxu0 0
      %900 = vmatprep.subr.bf16.mxu0 0
      %901 = vmatpush1.bf16.msra.mxu0 0
      %902 = vmatprep.subr.bf16.mxu0 0
      %903 = vmatpush1.bf16.msra.mxu0 0
      %904 = vmatprep.subr.bf16.mxu0 0
      %905 = vmatpush1.bf16.msra.mxu0 0
      %906 = vmatprep.subr.bf16.mxu0 0
      %907 = vmatpush1.bf16.msra.mxu0 0
      %908 = vmatprep.subr.bf16.mxu0 0
      %909 = vmatpush1.bf16.msra.mxu0 0
      %910 = vmatprep.subr.bf16.mxu0 0
      %911 = vmatpush1.bf16.msra.mxu0 0
      %912 = vmatprep.subr.bf16.mxu0 0
      %913 = vmatpush1.bf16.msra.mxu0 0
      %914 = vmatprep.subr.bf16.mxu0 0
      %915 = vmatpush1.bf16.msra.mxu0 0
      %916 = vmatprep.subr.bf16.mxu0 0
      %917 = vmatpush1.bf16.msra.mxu0 0
      %918 = vmatprep.subr.bf16.mxu0 0
      %919 = vmatpush1.bf16.msra.mxu0 0
      %920 = vmatprep.subr.bf16.mxu0 0
      %921 = vmatpush1.bf16.msra.mxu0 0
      %922 = vmatprep.subr.bf16.mxu0 0
      %923 = vmatpush1.bf16.msra.mxu0 0
      %924 = vmatprep.mubr.bf16.mxu0 0
      %925 = vmatmul.mubr.bf16.gmra.mrb[0].mxu0 %v887
      %v926 = vpop.f32.mrb[0].mxu0
      %v927 = vadd.f32 0.0, %v926
      %v928 = vpop.f32.mrb[0].mxu0
      %v929 = vpop.f32.mrb[0].mxu0
      %v930 = vpop.f32.mrb[0].mxu0
      %931 = vdwg.mxu0
      %932 = vrot.lane.b32.xlu0 %v520, 104
      %v933 = vpop.permute.xlu0 %932
      %934 = vrot.lane.b32.xlu0 %v587, 104
      %v935 = vpop.permute.xlu0 %934
      %v937 = vsel %vm596, %v933, 0
      %v940 = vsel %vm596, %v935, 0
      %942 = vmatprep.subr.bf16.mxu0 0
      %943 = vmatpush1.bf16.xpose.msra.mxu0 %v940
      %944 = vmatprep.subr.bf16.mxu0 0
      %945 = vmatpush1.bf16.xpose.msra.mxu0 0
      %946 = vmatprep.subr.bf16.mxu0 0
      %947 = vmatpush1.bf16.xpose.msra.mxu0 0
      %948 = vmatprep.subr.bf16.mxu0 0
      %949 = vmatpush1.bf16.xpose.msra.mxu0 0
      %950 = vmatprep.subr.bf16.mxu0 0
      %951 = vmatpush1.bf16.xpose.msra.mxu0 0
      %952 = vmatprep.subr.bf16.mxu0 0
      %953 = vmatpush1.bf16.xpose.msra.mxu0 0
      %954 = vmatprep.subr.bf16.mxu0 0
      %955 = vmatpush1.bf16.xpose.msra.mxu0 0
      %956 = vmatprep.subr.bf16.mxu0 0
      %957 = vmatpush1.bf16.xpose.msra.mxu0 0
      %958 = vmatprep.subr.bf16.mxu0 0
      %959 = vmatpush1.bf16.xpose.msra.mxu0 0
      %960 = vmatprep.subr.bf16.mxu0 0
      %961 = vmatpush1.bf16.xpose.msra.mxu0 0
      %962 = vmatprep.subr.bf16.mxu0 0
      %963 = vmatpush1.bf16.xpose.msra.mxu0 0
      %964 = vmatprep.subr.bf16.mxu0 0
      %965 = vmatpush1.bf16.xpose.msra.mxu0 0
      %966 = vmatprep.subr.bf16.mxu0 0
      %967 = vmatpush1.bf16.xpose.msra.mxu0 0
      %968 = vmatprep.subr.bf16.mxu0 0
      %969 = vmatpush1.bf16.xpose.msra.mxu0 0
      %970 = vmatprep.subr.bf16.mxu0 0
      %971 = vmatpush1.bf16.xpose.msra.mxu0 0
      %972 = vmatprep.subr.bf16.mxu0 0
      %973 = vmatpush1.bf16.xpose.msra.mxu0 0
      %974 = vmatprep.mubr.bf16.mxu0 0
      %975 = vmatmul.mubr.bf16.gmra.mrb[0].mxu0 %v937
      %v976 = vpop.f32.mrb[0].mxu0
      %v977 = vadd.f32 0.0, %v976
      %v978 = vpop.f32.mrb[0].mxu0
      %v979 = vpop.f32.mrb[0].mxu0
      %v980 = vpop.f32.mrb[0].mxu0
      %981 = vdwg.mxu0
      %v982 = vmul.f32 %v977, 0.35355338
      %v983 = vsel %vm595, -inf, %v982
      %v984 = vsel %vm596, %v983, -inf
      %985 = vmax.xlane.f32.xlu0 %v984
      %v986 = vpop.xlane.xlu0 %985
      %v987 = vsub.f32 %v983, %v986
      %v988 = vmul.f32 %v987, 1.442695
      %v989 = vpow.pop %v988
      %v990 = vsel %vm596, %v989, 0.0
      %991 = vadd.xlane.f32.xlu0 %v990
      %v992 = vpop.xlane.xlu0 %991
      %v993 = vrcp.pop %v992
      %v994 = vmul.f32 %v989, %v993
      %v995 = vpack.c.bf16 %v994, %v994
      %996 = vrot.lane.b32.xlu0 %v587, 72
      %v997 = vpop.permute.xlu0 %996
      %v999 = vsel %vm596, %v995, 0
      %v1002 = vsel %vm663, %v997, 0
      %1004 = vmatprep.subr.bf16.mxu0 0
      %1005 = vmatpush1.bf16.msra.mxu0 %v1002
      %1006 = vmatprep.subr.bf16.mxu0 0
      %1007 = vmatpush1.bf16.msra.mxu0 0
      %1008 = vmatprep.subr.bf16.mxu0 0
      %1009 = vmatpush1.bf16.msra.mxu0 0
      %1010 = vmatprep.subr.bf16.mxu0 0
      %1011 = vmatpush1.bf16.msra.mxu0 0
      %1012 = vmatprep.subr.bf16.mxu0 0
      %1013 = vmatpush1.bf16.msra.mxu0 0
      %1014 = vmatprep.subr.bf16.mxu0 0
      %1015 = vmatpush1.bf16.msra.mxu0 0
      %1016 = vmatprep.subr.bf16.mxu0 0
      %1017 = vmatpush1.bf16.msra.mxu0 0
      %1018 = vmatprep.subr.bf16.mxu0 0
      %1019 = vmatpush1.bf16.msra.mxu0 0
      %1020 = vmatprep.subr.bf16.mxu0 0
      %1021 = vmatpush1.bf16.msra.mxu0 0
      %1022 = vmatprep.subr.bf16.mxu0 0
      %1023 = vmatpush1.bf16.msra.mxu0 0
      %1024 = vmatprep.subr.bf16.mxu0 0
      %1025 = vmatpush1.bf16.msra.mxu0 0
      %1026 = vmatprep.subr.bf16.mxu0 0
      %1027 = vmatpush1.bf16.msra.mxu0 0
      %1028 = vmatprep.subr.bf16.mxu0 0
      %1029 = vmatpush1.bf16.msra.mxu0 0
      %1030 = vmatprep.subr.bf16.mxu0 0
      %1031 = vmatpush1.bf16.msra.mxu0 0
      %1032 = vmatprep.subr.bf16.mxu0 0
      %1033 = vmatpush1.bf16.msra.mxu0 0
      %1034 = vmatprep.subr.bf16.mxu0 0
      %1035 = vmatpush1.bf16.msra.mxu0 0
      %1036 = vmatprep.mubr.bf16.mxu0 0
      %1037 = vmatmul.mubr.bf16.gmra.mrb[0].mxu0 %v999
      %v1038 = vpop.f32.mrb[0].mxu0
      %v1039 = vadd.f32 0.0, %v1038
      %v1040 = vpop.f32.mrb[0].mxu0
      %v1041 = vpop.f32.mrb[0].mxu0
      %v1042 = vpop.f32.mrb[0].mxu0
      %1043 = vdwg.mxu0
      %1045 = vrot.lane.b32.xlu0 %v815, 8
      %v1046 = vpop.permute.xlu0 %1045
      %1049 = vrot.lane.b32.xlu0 %v927, 16
      %v1050 = vpop.permute.xlu0 %1049
      %1053 = vrot.lane.b32.xlu0 %v1039, 24
      %v1054 = vpop.permute.xlu0 %1053
      %v1056 = vsel %vm596, %v702, %v1046
      %vm1057 = vcmask 130048
      %v1058 = vsel %vm1057, %v1056, %v1050
      %vm1059 = vcmask 195584
      %v1060 = vsel %vm1059, %v1058, %v1054
      %v1061 = vpack.c.bf16 %v1060, %v1060
      %v1062 = vld [vmem:[%s8] sm:$0xf]
      %v1063 = vld [vmem:[%s8 + $0x4] sm:$0xf]
      %v1064 = vld [vmem:[%s8 + $0x8] sm:$0xf]
      %v1065 = vld [vmem:[%s8 + $0xc] sm:$0xf]
      %v1066 = vld [vmem:[%s9] sm:$0x1]
      %v1068 = vlaneseq
      %v1069 = vshrl.u32 %v1068, 7
      %v1070 = vsub.s32 0, %v1069
      %v1071 = vrot.slane %v1066, %v1070
      %v1077 = vunpack.c.l.b16 %v1062
      %v1078 = vunpack.c.l.b16 %v1063
      %v1079 = vunpack.c.l.b16 %v1064
      %v1080 = vunpack.c.l.b16 %v1065
      %v1081 = vpack.c.b16 %v1078, %v1077
      %v1082 = vpack.c.b16 %v1080, %v1079
      %v1086 = vsel %vm407, %v1061, 0
      %1088 = vmatprep.subr.bf16.mxu0 0
      %1089 = vmatpush1.bf16.msra.mxu0 %v1081
      %1090 = vmatprep.subr.bf16.mxu0 0
      %1091 = vmatpush1.bf16.msra.mxu0 %v1082
      %1092 = vmatprep.subr.bf16.mxu0 0
      %1093 = vmatpush1.bf16.msra.mxu0 0
      %1094 = vmatprep.subr.bf16.mxu0 0
      %1095 = vmatpush1.bf16.msra.mxu0 0
      %1096 = vmatprep.subr.bf16.mxu0 0
      %1097 = vmatpush1.bf16.msra.mxu0 0
      %1098 = vmatprep.subr.bf16.mxu0 0
      %1099 = vmatpush1.bf16.msra.mxu0 0
      %1100 = vmatprep.subr.bf16.mxu0 0
      %1101 = vmatpush1.bf16.msra.mxu0 0
      %1102 = vmatprep.subr.bf16.mxu0 0
      %1103 = vmatpush1.bf16.msra.mxu0 0
      %1104 = vmatprep.subr.bf16.mxu0 0
      %1105 = vmatpush1.bf16.msra.mxu0 0
      %1106 = vmatprep.subr.bf16.mxu0 0
      %1107 = vmatpush1.bf16.msra.mxu0 0
      %1108 = vmatprep.subr.bf16.mxu0 0
      %1109 = vmatpush1.bf16.msra.mxu0 0
      %1110 = vmatprep.subr.bf16.mxu0 0
      %1111 = vmatpush1.bf16.msra.mxu0 0
      %1112 = vmatprep.subr.bf16.mxu0 0
      %1113 = vmatpush1.bf16.msra.mxu0 0
      %1114 = vmatprep.subr.bf16.mxu0 0
      %1115 = vmatpush1.bf16.msra.mxu0 0
      %1116 = vmatprep.subr.bf16.mxu0 0
      %1117 = vmatpush1.bf16.msra.mxu0 0
      %1118 = vmatprep.subr.bf16.mxu0 0
      %1119 = vmatpush1.bf16.msra.mxu0 0
      %1120 = vmatprep.mubr.bf16.mxu0 0
      %1121 = vmatmul.mubr.bf16.gmra.mrb[0].mxu0 %v1086
      %v1122 = vpop.f32.mrb[0].mxu0
      %v1123 = vadd.f32 %v1071, %v1122
      %v1124 = vpop.f32.mrb[0].mxu0
      %v1125 = vpop.f32.mrb[0].mxu0
      %v1126 = vpop.f32.mrb[0].mxu0
      %1127 = vdwg.mxu0
      %v1128 = vadd.f32 %v404, %v1123
      %1129 = vst.msk [vmem:[%s402] sm:$0xff] %vm407, %v1128
      %p1130 = scmp.lt.s32.totalorder %s25, 1
      %s1131 = scalar_select %p1130, %s25, 1
      %p1132 = scmp.lt.s32.totalorder %s26, 0
      %s1133 = scalar_select %p1132, %s26, 0
      %s1134 = sadd.s32 %s1133, %s1131
      %s1135 = smul.addr %s1134, 8
      %s1136 = scalar_lea.vmem %s10, %s1135
      // Predicated region
      $region61: #{transformer_block.2} parent=59 // pred_check
        %p1137 = pneg %p275
      $region62: #{transformer_block.2} parent=59 // pred_check_branch
        %1139 = sbr.rel (%p1137) target = $region64
      $region63: #{transformer_block.2} parent=59 // pred_region
        _
      $region64: #{transformer_block.2} parent=59 // pred_fallthru
        _
    $region60: #{transformer_block.2} parent=5 // pred_fallthru
      _
    %p1140 = scmp.le.s32.totalorder 2, %s16
    // Predicated region
    $region65: #{transformer_block.2} parent=5 // pred_check
      %p1141 = pneg %p1140
    $region66: #{transformer_block.2} parent=5 // pred_check_branch
      %1143 = sbr.rel (%p1141) target = $region68
    $region67: #{transformer_block.2} parent=5 // pred_region
      %s1144 = ssub.s32 %s16, 2
      // Predicated region
      $region69: #{transformer_block.2} parent=67 // pred_check
        %p1145 = pneg %p281
      $region70: #{transformer_block.2} parent=67 // pred_check_branch
        %1147 = sbr.rel (%p1145) target = $region72
      $region71: #{transformer_block.2} parent=67 // pred_region
        %p1148 = scmp.lt.s32.totalorder %s27, 1
        %s1149 = scalar_select %p1148, %s27, 1
        %p1150 = scmp.lt.s32.totalorder %s28, 0
        %s1151 = scalar_select %p1150, %s28, 0
        %s1152 = sadd.s32 %s1151, %s1149
        %s1153 = smul.addr %s1152, 8
        %s1154 = scalar_lea.vmem %s10, %s1153
      $region72: #{transformer_block.2} parent=67 // pred_fallthru
        _
    $region68: #{transformer_block.2} parent=5 // pred_fallthru
      _
  $region6: #{transformer_block.2} parent=0 // loop_footer
    %s20 = sadd.s32 1, %s16
  $region7: #{transformer_block.2} parent=0 // loop_footer_branch
    %15 = sbr.rel target = $region3
  $region8: #{transformer_block.2} parent=0 // loop_exit
    _

// kernel: transformer_block.2
$region0: #{transformer_block.2}
  #allocation0 [shape = 'u32[]', space=smem, size = 0x4, offset = 0x4, fixed_abs, tag = 'smem constant byte address 0x4 - core index']
  #allocation1 [shape = 'u32[144,128]{1,0:T(1,128)}', space=vmem, size = 0x12000, scoped, tag = 'internal scratch']
  %s0 = inlined_call_operand.vmem [shape: f32[2,8,32], index: 0, kind: input, shape index: {}, may-alias: {0,1}]
  %s1 = inlined_call_operand.vmem [shape: f32[2,8,32], index: 1, kind: input, shape index: {}, may-alias: {0,1}]
  %s2 = inlined_call_operand.vmem [shape: f32[1,32], index: 2, kind: input, shape index: {}]
  %s3 = inlined_call_operand.vmem [shape: f32[1,32], index: 3, kind: input, shape index: {}]
  %s4 = inlined_call_operand.vmem [shape: bf16[32,32], index: 4, kind: input, shape index: {}]
  %s5 = inlined_call_operand.vmem [shape: f32[1,32], index: 5, kind: input, shape index: {}]
  %s6 = inlined_call_operand.vmem [shape: bf16[32,64], index: 6, kind: input, shape index: {}]
  %s7 = inlined_call_operand.vmem [shape: f32[1,64], index: 7, kind: input, shape index: {}]
  %s8 = inlined_call_operand.vmem [shape: bf16[32,32], index: 8, kind: input, shape index: {}]
  %s9 = inlined_call_operand.vmem [shape: f32[1,32], index: 9, kind: input, shape index: {}]
  %s10 = inlined_call_operand.vmem [shape: f32[2,8,32], index: 10, kind: output, shape index: {}]
  %s11 = sld [smem:[#allocation0]]
  $region73: #{transformer_block.2} parent=0
    _
  %s13 = ssub.s32 1, %s11
  %s14 = scalar_select 0, %s13, %s11
  loop: start=0, step=1, limit=4
  $region2: #{transformer_block.2} parent=0 // loop_pre_header
    _
  $region3: #{transformer_block.2} parent=0 // loop_header
    %s16 = sphi 0, %s20
    %p17 = scmp.ge.s32.totalorder %s16, 4
    %s23 = sphi 0, %s35
    %s24 = sphi 0, %s31
    %s25 = sphi 0, %s23
    %s26 = sphi 0, %s24
    %s27 = sphi 0, %s25
    %s28 = sphi 0, %s26
    %s40 = sphi 0, %s42
    %s43 = sphi 0, %s40
    %s44 = sphi 0, %s43
    %s60 = sphi 0, %s44
    %s66 = sphi 0, %s68
    %s69 = sphi 0, %s66
    %s70 = sphi 0, %s69
    %s86 = sphi 0, %s70
    %s90 = sphi 0, %s90
    %s92 = sphi 0, %s90
    %s93 = sphi 0, %s92
    %s107 = sphi 0, %s93
    %s111 = sphi 0, %s111
    %s113 = sphi 0, %s111
    %s114 = sphi 0, %s113
    %s128 = sphi 0, %s114
    %s132 = sphi 0, %s132
    %s134 = sphi 0, %s132
    %s135 = sphi 0, %s134
    %s149 = sphi 0, %s135
    %s153 = sphi 0, %s153
    %s155 = sphi 0, %s153
    %s156 = sphi 0, %s155
    %s170 = sphi 0, %s156
    %s174 = sphi 0, %s174
    %s176 = sphi 0, %s174
    %s177 = sphi 0, %s176
    %s191 = sphi 0, %s177
    %s195 = sphi 0, %s195
    %s197 = sphi 0, %s195
    %s198 = sphi 0, %s197
    %s212 = sphi 0, %s198
    %s216 = sphi 0, %s216
    %s218 = sphi 0, %s216
    %s219 = sphi 0, %s218
    %s233 = sphi 0, %s219
    %s237 = sphi 0, %s237
    %s239 = sphi 0, %s237
    %s240 = sphi 0, %s239
    %s254 = sphi 0, %s240
    %s262 = sphi 0, %s264
    %s265 = sphi 0, %s262
    %s266 = sphi 0, %s265
    %s282 = sphi 0, %s266
  $region4: #{transformer_block.2} parent=0 // loop_header_branch
    %19 = sbr.rel (%p17) target = $region8
  $region5: #{transformer_block.2} parent=0 // loop_body
    %s21 = ssub.s32 %s16, 1
    %s22 = ssub.s32 %s16, 2
    %s29 = sadd.s32 1, %s24
    %p30 = scmp.ge.s32.totalorder %s29, 1
    %s31 = scalar_select %p30, 0, %s29
    %s32 = sadd.s32 1, %s23
    %s33 = scalar_select %p30, %s32, %s23
    %p34 = scmp.ge.s32.totalorder %s33, 2
    %s35 = scalar_select %p34, 0, %s33
    %s36 = ssub.s32 %s23, %s35
    %s37 = ssub.s32 %s24, %s31
    %s38 = sor.u32 %s36, %s37
    %p39 = scmp.eq.s32.totalorder %s38, 0
    %s41 = sadd.s32 %s40, 1
    %s42 = scalar_select %p39, %s40, %s41
    %p45 = pneg %p39
    %p46 = scmp.eq.s32.totalorder %s16, 1
    %p47 = por %p45, %p46
    %p48 = scmp.ne.s32.totalorder %s40, %s43
    %p49 = scmp.eq.s32.totalorder %s16, 0
    %p50 = por %p48, %p49
    %p51 = scmp.ne.s32.totalorder %s40, %s43
    %p52 = scmp.eq.s32.totalorder %s21, 1
    %p53 = por %p51, %p52
    %p54 = scmp.ne.s32.totalorder %s43, %s44
    %p55 = scmp.eq.s32.totalorder %s21, 0
    %p56 = por %p54, %p55
    %p57 = scmp.ne.s32.totalorder %s43, %s44
    %p58 = scmp.eq.s32.totalorder %s22, 1
    %p59 = por %p57, %p58
    %p61 = scmp.ne.s32.totalorder %s44, %s60
    %p62 = scmp.eq.s32.totalorder %s22, 0
    %p63 = por %p61, %p62
    %s64 = ssub.s32 %s23, %s35
    %p65 = scmp.eq.s32.totalorder %s64, 0
    %s67 = sadd.s32 %s66, 1
    %s68 = scalar_select %p65, %s66, %s67
    %p71 = pneg %p65
    %p72 = scmp.eq.s32.totalorder %s16, 1
    %p73 = por %p71, %p72
    %p74 = scmp.ne.s32.totalorder %s66, %s69
    %p75 = scmp.eq.s32.totalorder %s16, 0
    %p76 = por %p74, %p75
    %p77 = scmp.ne.s32.totalorder %s66, %s69
    %p78 = scmp.eq.s32.totalorder %s21, 1
    %p79 = por %p77, %p78
    %p80 = scmp.ne.s32.totalorder %s69, %s70
    %p81 = scmp.eq.s32.totalorder %s21, 0
    %p82 = por %p80, %p81
    %p83 = scmp.ne.s32.totalorder %s69, %s70
    %p84 = scmp.eq.s32.totalorder %s22, 1
    %p85 = por %p83, %p84
    %p87 = scmp.ne.s32.totalorder %s70, %s86
    %p88 = scmp.eq.s32.totalorder %s22, 0
    %p89 = por %p87, %p88
    %s91 = sadd.s32 %s90, 1
    %p94 = scmp.eq.s32.totalorder %s16, 1
    %p95 = scmp.ne.s32.totalorder %s90, %s92
    %p96 = scmp.eq.s32.totalorder %s16, 0
    %p97 = por %p95, %p96
    %p98 = scmp.ne.s32.totalorder %s90, %s92
    %p99 = scmp.eq.s32.totalorder %s21, 1
    %p100 = por %p98, %p99
    %p101 = scmp.ne.s32.totalorder %s92, %s93
    %p102 = scmp.eq.s32.totalorder %s21, 0
    %p103 = por %p101, %p102
    %p104 = scmp.ne.s32.totalorder %s92, %s93
    %p105 = scmp.eq.s32.totalorder %s22, 1
    %p106 = por %p104, %p105
    %p108 = scmp.ne.s32.totalorder %s93, %s107
    %p109 = scmp.eq.s32.totalorder %s22, 0
    %p110 = por %p108, %p109
    %s112 = sadd.s32 %s111, 1
    %p115 = scmp.eq.s32.totalorder %s16, 1
    %p116 = scmp.ne.s32.totalorder %s111, %s113
    %p117 = scmp.eq.s32.totalorder %s16, 0
    %p118 = por %p116, %p117
    %p119 = scmp.ne.s32.totalorder %s111, %s113
    %p120 = scmp.eq.s32.totalorder %s21, 1
    %p121 = por %p119, %p120
    %p122 = scmp.ne.s32.totalorder %s113, %s114
    %p123 = scmp.eq.s32.totalorder %s21, 0
    %p124 = por %p122, %p123
    %p125 = scmp.ne.s32.totalorder %s113, %s114
    %p126 = scmp.eq.s32.totalorder %s22, 1
    %p127 = por %p125, %p126
    %p129 = scmp.ne.s32.totalorder %s114, %s128
    %p130 = scmp.eq.s32.totalorder %s22, 0
    %p131 = por %p129, %p130
    %s133 = sadd.s32 %s132, 1
    %p136 = scmp.eq.s32.totalorder %s16, 1
    %p137 = scmp.ne.s32.totalorder %s132, %s134
    %p138 = scmp.eq.s32.totalorder %s16, 0
    %p139 = por %p137, %p138
    %p140 = scmp.ne.s32.totalorder %s132, %s134
    %p141 = scmp.eq.s32.totalorder %s21, 1
    %p142 = por %p140, %p141
    %p143 = scmp.ne.s32.totalorder %s134, %s135
    %p144 = scmp.eq.s32.totalorder %s21, 0
    %p145 = por %p143, %p144
    %p146 = scmp.ne.s32.totalorder %s134, %s135
    %p147 = scmp.eq.s32.totalorder %s22, 1
    %p148 = por %p146, %p147
    %p150 = scmp.ne.s32.totalorder %s135, %s149
    %p151 = scmp.eq.s32.totalorder %s22, 0
    %p152 = por %p150, %p151
    %s154 = sadd.s32 %s153, 1
    %p157 = scmp.eq.s32.totalorder %s16, 1
    %p158 = scmp.ne.s32.totalorder %s153, %s155
    %p159 = scmp.eq.s32.totalorder %s16, 0
    %p160 = por %p158, %p159
    %p161 = scmp.ne.s32.totalorder %s153, %s155
    %p162 = scmp.eq.s32.totalorder %s21, 1
    %p163 = por %p161, %p162
    %p164 = scmp.ne.s32.totalorder %s155, %s156
    %p165 = scmp.eq.s32.totalorder %s21, 0
    %p166 = por %p164, %p165
    %p167 = scmp.ne.s32.totalorder %s155, %s156
    %p168 = scmp.eq.s32.totalorder %s22, 1
    %p169 = por %p167, %p168
    %p171 = scmp.ne.s32.totalorder %s156, %s170
    %p172 = scmp.eq.s32.totalorder %s22, 0
    %p173 = por %p171, %p172
    %s175 = sadd.s32 %s174, 1
    %p178 = scmp.eq.s32.totalorder %s16, 1
    %p179 = scmp.ne.s32.totalorder %s174, %s176
    %p180 = scmp.eq.s32.totalorder %s16, 0
    %p181 = por %p179, %p180
    %p182 = scmp.ne.s32.totalorder %s174, %s176
    %p183 = scmp.eq.s32.totalorder %s21, 1
    %p184 = por %p182, %p183
    %p185 = scmp.ne.s32.totalorder %s176, %s177
    %p186 = scmp.eq.s32.totalorder %s21, 0
    %p187 = por %p185, %p186
    %p188 = scmp.ne.s32.totalorder %s176, %s177
    %p189 = scmp.eq.s32.totalorder %s22, 1
    %p190 = por %p188, %p189
    %p192 = scmp.ne.s32.totalorder %s177, %s191
    %p193 = scmp.eq.s32.totalorder %s22, 0
    %p194 = por %p192, %p193
    %s196 = sadd.s32 %s195, 1
    %p199 = scmp.eq.s32.totalorder %s16, 1
    %p200 = scmp.ne.s32.totalorder %s195, %s197
    %p201 = scmp.eq.s32.totalorder %s16, 0
    %p202 = por %p200, %p201
    %p203 = scmp.ne.s32.totalorder %s195, %s197
    %p204 = scmp.eq.s32.totalorder %s21, 1
    %p205 = por %p203, %p204
    %p206 = scmp.ne.s32.totalorder %s197, %s198
    %p207 = scmp.eq.s32.totalorder %s21, 0
    %p208 = por %p206, %p207
    %p209 = scmp.ne.s32.totalorder %s197, %s198
    %p210 = scmp.eq.s32.totalorder %s22, 1
    %p211 = por %p209, %p210
    %p213 = scmp.ne.s32.totalorder %s198, %s212
    %p214 = scmp.eq.s32.totalorder %s22, 0
    %p215 = por %p213, %p214
    %s217 = sadd.s32 %s216, 1
    %p220 = scmp.eq.s32.totalorder %s16, 1
    %p221 = scmp.ne.s32.totalorder %s216, %s218
    %p222 = scmp.eq.s32.totalorder %s16, 0
    %p223 = por %p221, %p222
    %p224 = scmp.ne.s32.totalorder %s216, %s218
    %p225 = scmp.eq.s32.totalorder %s21, 1
    %p226 = por %p224, %p225
    %p227 = scmp.ne.s32.totalorder %s218, %s219
    %p228 = scmp.eq.s32.totalorder %s21, 0
    %p229 = por %p227, %p228
    %p230 = scmp.ne.s32.totalorder %s218, %s219
    %p231 = scmp.eq.s32.totalorder %s22, 1
    %p232 = por %p230, %p231
    %p234 = scmp.ne.s32.totalorder %s219, %s233
    %p235 = scmp.eq.s32.totalorder %s22, 0
    %p236 = por %p234, %p235
    %s238 = sadd.s32 %s237, 1
    %p241 = scmp.eq.s32.totalorder %s16, 1
    %p242 = scmp.ne.s32.totalorder %s237, %s239
    %p243 = scmp.eq.s32.totalorder %s16, 0
    %p244 = por %p242, %p243
    %p245 = scmp.ne.s32.totalorder %s237, %s239
    %p246 = scmp.eq.s32.totalorder %s21, 1
    %p247 = por %p245, %p246
    %p248 = scmp.ne.s32.totalorder %s239, %s240
    %p249 = scmp.eq.s32.totalorder %s21, 0
    %p250 = por %p248, %p249
    %p251 = scmp.ne.s32.totalorder %s239, %s240
    %p252 = scmp.eq.s32.totalorder %s22, 1
    %p253 = por %p251, %p252
    %p255 = scmp.ne.s32.totalorder %s240, %s254
    %p256 = scmp.eq.s32.totalorder %s22, 0
    %p257 = por %p255, %p256
    %s258 = ssub.s32 %s23, %s35
    %s259 = ssub.s32 %s24, %s31
    %s260 = sor.u32 %s258, %s259
    %p261 = scmp.eq.s32.totalorder %s260, 0
    %s263 = sadd.s32 %s262, 1
    %s264 = scalar_select %p261, %s262, %s263
    %p267 = pneg %p261
    %p268 = scmp.eq.s32.totalorder %s16, 1
    %p269 = por %p267, %p268
    %p270 = scmp.ne.s32.totalorder %s262, %s265
    %p271 = scmp.eq.s32.totalorder %s16, 0
    %p272 = por %p270, %p271
    %p273 = scmp.ne.s32.totalorder %s262, %s265
    %p274 = scmp.eq.s32.totalorder %s21, 1
    %p275 = por %p273, %p274
    %p276 = scmp.ne.s32.totalorder %s265, %s266
    %p277 = scmp.eq.s32.totalorder %s21, 0
    %p278 = por %p276, %p277
    %p279 = scmp.ne.s32.totalorder %s265, %s266
    %p280 = scmp.eq.s32.totalorder %s22, 1
    %p281 = por %p279, %p280
    %p283 = scmp.ne.s32.totalorder %s266, %s282
    %p284 = scmp.eq.s32.totalorder %s22, 0
    %p285 = por %p283, %p284
    %p286 = scmp.le.s32.totalorder 1, %s16
    %p287 = scmp.lt.s32.totalorder %s16, 3
    %p288 = pnand %p286, %p287
    %p289 = pneg %p288
    // Predicated region
    $region9: #{transformer_block.2} parent=5 // pred_check
      _
    $region10: #{transformer_block.2} parent=5 // pred_check_branch
      %291 = sbr.rel (%p288) target = $region12
    $region11: #{transformer_block.2} parent=5 // pred_region
      %s292 = ssub.s32 %s16, 1
      // Predicated region
      $region13: #{transformer_block.2} parent=11 // pred_check
        %p293 = pneg %p103
      $region14: #{transformer_block.2} parent=11 // pred_check_branch
        %295 = sbr.rel (%p293) target = $region16
      $region15: #{transformer_block.2} parent=11 // pred_region
        _
      $region16: #{transformer_block.2} parent=11 // pred_fallthru
        _
      // Predicated region
      $region17: #{transformer_block.2} parent=11 // pred_check
        %p296 = pneg %p124
      $region18: #{transformer_block.2} parent=11 // pred_check_branch
        %298 = sbr.rel (%p296) target = $region20
      $region19: #{transformer_block.2} parent=11 // pred_region
        _
      $region20: #{transformer_block.2} parent=11 // pred_fallthru
        _
      // Predicated region
      $region21: #{transformer_block.2} parent=11 // pred_check
        %p299 = pneg %p145
      $region22: #{transformer_block.2} parent=11 // pred_check_branch
        %301 = sbr.rel (%p299) target = $region24
      $region23: #{transformer_block.2} parent=11 // pred_region
        _
      $region24: #{transformer_block.2} parent=11 // pred_fallthru
        _
      // Predicated region
      $region25: #{transformer_block.2} parent=11 // pred_check
        %p302 = pneg %p166
      $region26: #{transformer_block.2} parent=11 // pred_check_branch
        %304 = sbr.rel (%p302) target = $region28
      $region27: #{transformer_block.2} parent=11 // pred_region
        _
      $region28: #{transformer_block.2} parent=11 // pred_fallthru
        _
      // Predicated region
      $region29: #{transformer_block.2} parent=11 // pred_check
        %p305 = pneg %p187
      $region30: #{transformer_block.2} parent=11 // pred_check_branch
        %307 = sbr.rel (%p305) target = $region32
      $region31: #{transformer_block.2} parent=11 // pred_region
        _
      $region32: #{transformer_block.2} parent=11 // pred_fallthru
        _
      // Predicated region
      $region33: #{transformer_block.2} parent=11 // pred_check
        %p308 = pneg %p208
      $region34: #{transformer_block.2} parent=11 // pred_check_branch
        %310 = sbr.rel (%p308) target = $region36
      $region35: #{transformer_block.2} parent=11 // pred_region
        _
      $region36: #{transformer_block.2} parent=11 // pred_fallthru
        _
      // Predicated region
      $region37: #{transformer_block.2} parent=11 // pred_check
        %p311 = pneg %p229
      $region38: #{transformer_block.2} parent=11 // pred_check_branch
        %313 = sbr.rel (%p311) target = $region40
      $region39: #{transformer_block.2} parent=11 // pred_region
        _
      $region40: #{transformer_block.2} parent=11 // pred_fallthru
        _
      // Predicated region
      $region41: #{transformer_block.2} parent=11 // pred_check
        %p314 = pneg %p250
      $region42: #{transformer_block.2} parent=11 // pred_check_branch
        %316 = sbr.rel (%p314) target = $region44
      $region43: #{transformer_block.2} parent=11 // pred_region
        _
      $region44: #{transformer_block.2} parent=11 // pred_fallthru
        _
    $region12: #{transformer_block.2} parent=5 // pred_fallthru
      _
    %p317 = scmp.lt.s32.totalorder %s16, 2
    // Predicated region
    $region45: #{transformer_block.2} parent=5 // pred_check
      %p318 = pneg %p317
    $region46: #{transformer_block.2} parent=5 // pred_check_branch
      %320 = sbr.rel (%p318) target = $region48
    $region47: #{transformer_block.2} parent=5 // pred_region
      // Predicated region
      $region49: #{transformer_block.2} parent=47 // pred_check
        %p321 = pneg %p50
      $region50: #{transformer_block.2} parent=47 // pred_check_branch
        %323 = sbr.rel (%p321) target = $region52
      $region51: #{transformer_block.2} parent=47 // pred_region
        %p324 = scmp.lt.s32.totalorder %s23, 1
        %s325 = scalar_select %p324, %s23, 1
        %p326 = scmp.lt.s32.totalorder %s24, 0
        %s327 = scalar_select %p326, %s24, 0
        %s328 = sadd.s32 %s327, %s325
        %s329 = smul.addr %s328, 8
        %s330 = scalar_lea.vmem %s0, %s329
      $region52: #{transformer_block.2} parent=47 // pred_fallthru
        _
      // Predicated region
      $region53: #{transformer_block.2} parent=47 // pred_check
        %p331 = pneg %p76
      $region54: #{transformer_block.2} parent=47 // pred_check_branch
        %333 = sbr.rel (%p331) target = $region56
      $region55: #{transformer_block.2} parent=47 // pred_region
        %p334 = scmp.lt.s32.totalorder %s23, 1
        %s335 = scalar_select %p334, %s23, 1
        %s336 = smul.addr %s335, 8
        %s337 = scalar_lea.vmem %s1, %s336
      $region56: #{transformer_block.2} parent=47 // pred_fallthru
        _
    $region48: #{transformer_block.2} parent=5 // pred_fallthru
      _
    %p338 = scmp.le.s32.totalorder 1, %s16
    %p339 = scmp.lt.s32.totalorder %s16, 3
    %p340 = pnand %p338, %p339
    %p341 = pneg %p340
    // Predicated region
    $region57: #{transformer_block.2} parent=5 // pred_check
      _
    $region58: #{transformer_block.2} parent=5 // pred_check_branch
      %343 = sbr.rel (%p340) target = $region60
    $region59: #{transformer_block.2} parent=5 // pred_region
      %s344 = ssub.s32 %s16, 1
      %p345 = scmp.lt.s32.totalorder %s25, 1
      %s346 = scalar_select %p345, %s25, 1
      %p347 = scmp.lt.s32.totalorder %s26, 0
      %s348 = scalar_select %p347, %s26, 0
      %s349 = sadd.s32 %s348, %s346
      %s350 = smul.addr %s349, 8
      %s351 = scalar_lea.vmem %s0, %s350
      %p352 = pneg %p56
      %p353 = pneg %p53
      %p354 = scmp.lt.s32.totalorder %s25, 1
      %s355 = scalar_select %p354, %s25, 1
      %s356 = smul.addr %s355, 8
      %s357 = scalar_lea.vmem %s1, %s356
      %p358 = pneg %p82
      %p359 = pneg %p79
      %p360 = pneg %p103
      %p361 = pneg %p100
      %p362 = pneg %p124
      %p363 = pneg %p121
      %p364 = pneg %p145
      %p365 = pneg %p142
      %p366 = pneg %p166
      %p367 = pneg %p163
      %p368 = pneg %p187
      %p369 = pneg %p184
      %p370 = pneg %p208
      %p371 = pneg %p205
      %p372 = pneg %p229
      %p373 = pneg %p226
      %p374 = pneg %p250
      %p375 = pneg %p247
      %p376 = pneg %p278
      %p377 = pneg %p275
      %p378 = scmp.lt.s32.totalorder %s25, 1
      %s379 = scalar_select %p378, %s25, 1
      %p380 = scmp.lt.s32.totalorder %s26, 0
      %s381 = scalar_select %p380, %s26, 0
      %s382 = sadd.s32 %s381, %s379
      %s383 = smul.addr %s382, 8
      %s384 = scalar_lea.vmem %s10, %s383
      %p385 = scmp.lt.s32.totalorder %s25, 1
      %s386 = scalar_select %p385, %s25, 1
      %p387 = scmp.lt.s32.totalorder %s26, 0
      %s388 = scalar_select %p387, %s26, 0
      %s389 = sadd.s32 %s388, %s386
      %s390 = smul.addr %s389, 8
      %s391 = scalar_lea.vmem %s0, %s390
      %p392 = scmp.lt.s32.totalorder %s25, 1
      %s393 = scalar_select %p392, %s25, 1
      %s394 = smul.addr %s393, 8
      %s395 = scalar_lea.vmem %s1, %s394
      %p396 = scmp.lt.s32.totalorder %s25, 1
      %s397 = scalar_select %p396, %s25, 1
      %p398 = scmp.lt.s32.totalorder %s26, 0
      %s399 = scalar_select %p398, %s26, 0
      %s400 = sadd.s32 %s399, %s397
      %s401 = smul.addr %s400, 8
      %s402 = scalar_lea.vmem %s10, %s401
      %v404 = vld [vmem:[%s391] sm:$0xff]
      %v405 = vld [vmem:[%s2] sm:$0x1]
      %v406 = vld [vmem:[%s3] sm:$0x1]
      %vm407 = vcmask 261120
      %v408 = vsel %vm407, %v404, 0.0
      %409 = vadd.xlane.f32.xlu0 %v408
      %v410 = vpop.xlane.xlu0 %409
      %v411 = vrcp.pop 32.0
      %v412 = vmul.f32 %v410, %v411
      %v413 = vsub.f32 %v404, %v412
      %v414 = vmul.f32 %v413, %v413
      %v415 = vsel %vm407, %v414, 0.0
      %416 = vadd.xlane.f32.xlu0 %v415
      %v417 = vpop.xlane.xlu0 %416
      %v418 = vmul.f32 %v417, %v411
      %v419 = vadd.f32 %v418, 1e-05
      %v420 = vrsqrt.pop %v419
      %v421 = vmul.f32 %v413, %v420
      %v423 = vlaneseq
      %v424 = vshrl.u32 %v423, 7
      %v425 = vsub.s32 0, %v424
      %v426 = vrot.slane %v405, %v425
      %v428 = vmul.f32 %v421, %v426
      %v430 = vlaneseq
      %v431 = vshrl.u32 %v430, 7
      %v432 = vsub.s32 0, %v431
      %v433 = vrot.slane %v406, %v432
      %v435 = vadd.f32 %v428, %v433
      %v436 = vpack.c.bf16 %v435, %v435
      %v437 = vld [vmem:[%s395] sm:$0xff]
      %v438 = vsel %vm407, %v437, 0.0
      %439 = vadd.xlane.f32.xlu0 %v438
      %v440 = vpop.xlane.xlu0 %439
      %v441 = vmul.f32 %v440, %v411
      %v442 = vsub.f32 %v437, %v441
      %v443 = vmul.f32 %v442, %v442
      %v444 = vsel %vm407, %v443, 0.0
      %445 = vadd.xlane.f32.xlu0 %v444
      %v446 = vpop.xlane.xlu0 %445
      %v447 = vmul.f32 %v446, %v411
      %v448 = vadd.f32 %v447, 1e-05
      %v449 = vrsqrt.pop %v448
      %v450 = vmul.f32 %v442, %v449
      %v451 = vmul.f32 %v450, %v426
      %v452 = vadd.f32 %v451, %v433
      %v453 = vpack.c.bf16 %v452, %v452
      %v454 = vld [vmem:[%s4] sm:$0xf]
      %v455 = vld [vmem:[%s4 + $0x4] sm:$0xf]
      %v456 = vld [vmem:[%s4 + $0x8] sm:$0xf]
      %v457 = vld [vmem:[%s4 + $0xc] sm:$0xf]
      %v458 = vld [vmem:[%s5] sm:$0x1]
      %v460 = vlaneseq
      %v461 = vshrl.u32 %v460, 7
      %v462 = vsub.s32 0, %v461
      %v463 = vrot.slane %v458, %v462
      %v469 = vunpack.c.l.b16 %v454
      %v470 = vunpack.c.l.b16 %v455
      %v471 = vunpack.c.l.b16 %v456
      %v472 = vunpack.c.l.b16 %v457
      %v473 = vpack.c.b16 %v470, %v469
      %v474 = vpack.c.b16 %v472, %v471
      %v478 = vsel %vm407, %v436, 0
      %480 = vmatprep.subr.bf16.mxu0 0
      %481 = vmatpush1.bf16.msra.mxu0 %v473
      %482 = vmatprep.subr.bf16.mxu0 0
      %483 = vmatpush1.bf16.msra.mxu0 %v474
      %484 = vmatprep.subr.bf16.mxu0 0
      %485 = vmatpush1.bf16.msra.mxu0 0
      %486 = vmatprep.subr.bf16.mxu0 0
      %487 = vmatpush1.bf16.msra.mxu0 0
      %488 = vmatprep.subr.bf16.mxu0 0
      %489 = vmatpush1.bf16.msra.mxu0 0
      %490 = vmatprep.subr.bf16.mxu0 0
      %491 = vmatpush1.bf16.msra.mxu0 0
      %492 = vmatprep.subr.bf16.mxu0 0
      %493 = vmatpush1.bf16.msra.mxu0 0
      %494 = vmatprep.subr.bf16.mxu0 0
      %495 = vmatpush1.bf16.msra.mxu0 0
      %496 = vmatprep.subr.bf16.mxu0 0
      %497 = vmatpush1.bf16.msra.mxu0 0
      %498 = vmatprep.subr.bf16.mxu0 0
      %499 = vmatpush1.bf16.msra.mxu0 0
      %500 = vmatprep.subr.bf16.mxu0 0
      %501 = vmatpush1.bf16.msra.mxu0 0
      %502 = vmatprep.subr.bf16.mxu0 0
      %503 = vmatpush1.bf16.msra.mxu0 0
      %504 = vmatprep.subr.bf16.mxu0 0
      %505 = vmatpush1.bf16.msra.mxu0 0
      %506 = vmatprep.subr.bf16.mxu0 0
      %507 = vmatpush1.bf16.msra.mxu0 0
      %508 = vmatprep.subr.bf16.mxu0 0
      %509 = vmatpush1.bf16.msra.mxu0 0
      %510 = vmatprep.subr.bf16.mxu0 0
      %511 = vmatpush1.bf16.msra.mxu0 0
      %512 = vmatprep.mubr.bf16.mxu0 0
      %513 = vmatmul.mubr.bf16.gmra.mrb[0].mxu0 %v478
      %v514 = vpop.f32.mrb[0].mxu0
      %v515 = vadd.f32 %v463, %v514
      %v516 = vpop.f32.mrb[0].mxu0
      %v517 = vpop.f32.mrb[0].mxu0
      %v518 = vpop.f32.mrb[0].mxu0
      %519 = vdwg.mxu0
      %v520 = vpack.c.bf16 %v515, %v515
      %v521 = vld [vmem:[%s6] sm:$0xf]
      %v522 = vld [vmem:[%s6 + $0x4] sm:$0xf]
      %v523 = vld [vmem:[%s6 + $0x8] sm:$0xf]
      %v524 = vld [vmem:[%s6 + $0xc] sm:$0xf]
      %v525 = vld [vmem:[%s7] sm:$0x1]
      %v527 = vlaneseq
      %v528 = vshrl.u32 %v527, 7
      %v529 = vsub.s32 0, %v528
      %v530 = vrot.slane %v525, %v529
      %v536 = vunpack.c.l.b16 %v521
      %v537 = vunpack.c.l.b16 %v522
      %v538 = vunpack.c.l.b16 %v523
      %v539 = vunpack.c.l.b16 %v524
      %v540 = vpack.c.b16 %v537, %v536
      %v541 = vpack.c.b16 %v539, %v538
      %v545 = vsel %vm407, %v453, 0
      %547 = vmatprep.subr.bf16.mxu0 0
      %548 = vmatpush1.bf16.msra.mxu0 %v540
      %549 = vmatprep.subr.bf16.mxu0 0
      %550 = vmatpush1.bf16.msra.mxu0 %v541
      %551 = vmatprep.subr.bf16.mxu0 0
      %552 = vmatpush1.bf16.msra.mxu0 0
      %553 = vmatprep.subr.bf16.mxu0 0
      %554 = vmatpush1.bf16.msra.mxu0 0
      %555 = vmatprep.subr.bf16.mxu0 0
      %556 = vmatpush1.bf16.msra.mxu0 0
      %557 = vmatprep.subr.bf16.mxu0 0
      %558 = vmatpush1.bf16.msra.mxu0 0
      %559 = vmatprep.subr.bf16.mxu0 0
      %560 = vmatpush1.bf16.msra.mxu0 0
      %561 = vmatprep.subr.bf16.mxu0 0
      %562 = vmatpush1.bf16.msra.mxu0 0
      %563 = vmatprep.subr.bf16.mxu0 0
      %564 = vmatpush1.bf16.msra.mxu0 0
      %565 = vmatprep.subr.bf16.mxu0 0
      %566 = vmatpush1.bf16.msra.mxu0 0
      %567 = vmatprep.subr.bf16.mxu0 0
      %568 = vmatpush1.bf16.msra.mxu0 0
      %569 = vmatprep.subr.bf16.mxu0 0
      %570 = vmatpush1.bf16.msra.mxu0 0
      %571 = vmatprep.subr.bf16.mxu0 0
      %572 = vmatpush1.bf16.msra.mxu0 0
      %573 = vmatprep.subr.bf16.mxu0 0
      %574 = vmatpush1.bf16.msra.mxu0 0
      %575 = vmatprep.subr.bf16.mxu0 0
      %576 = vmatpush1.bf16.msra.mxu0 0
      %577 = vmatprep.subr.bf16.mxu0 0
      %578 = vmatpush1.bf16.msra.mxu0 0
      %579 = vmatprep.mubr.bf16.mxu0 0
      %580 = vmatmul.mubr.bf16.gmra.mrb[0].mxu0 %v545
      %v581 = vpop.f32.mrb[0].mxu0
      %v582 = vadd.f32 %v530, %v581
      %v583 = vpop.f32.mrb[0].mxu0
      %v584 = vpop.f32.mrb[0].mxu0
      %v585 = vpop.f32.mrb[0].mxu0
      %586 = vdwg.mxu0
      %v587 = vpack.c.bf16 %v582, %v582
      %s588 = smul.u32 %s26, 8
      %v589 = vlaneseq
      %v590 = vshrl.u32 %v589, 7
      %v591 = vstv %s588
      %v592 = vadd.s32 %v591, %v590
      %v593 = vlaneseq
      %v594 = vand.u32 %v593, 127
      %vm595 = vcmp.gt.s32.totalorder %v594, %v592
      %vm596 = vcmask 64512
      %v598 = vsel %vm596, %v520, 0
      %v601 = vsel %vm596, %v587, 0
      %603 = vmatprep.subr.bf16.mxu0 0
      %604 = vmatpush1.bf16.xpose.msra.mxu0 %v601
      %605 = vmatprep.subr.bf16.mxu0 0
      %606 = vmatpush1.bf16.xpose.msra.mxu0 0
      %607 = vmatprep.subr.bf16.mxu0 0
      %608 = vmatpush1.bf16.xpose.msra.mxu0 0
      %609 = vmatprep.subr.bf16.mxu0 0
      %610 = vmatpush1.bf16.xpose.msra.mxu0 0
      %611 = vmatprep.subr.bf16.mxu0 0
      %612 = vmatpush1.bf16.xpose.msra.mxu0 0
      %613 = vmatprep.subr.bf16.mxu0 0
      %614 = vmatpush1.bf16.xpose.msra.mxu0 0
      %615 = vmatprep.subr.bf16.mxu0 0
      %616 = vmatpush1.bf16.xpose.msra.mxu0 0
      %617 = vmatprep.subr.bf16.mxu0 0
      %618 = vmatpush1.bf16.xpose.msra.mxu0 0
      %619 = vmatprep.subr.bf16.mxu0 0
      %620 = vmatpush1.bf16.xpose.msra.mxu0 0
      %621 = vmatprep.subr.bf16.mxu0 0
      %622 = vmatpush1.bf16.xpose.msra.mxu0 0
      %623 = vmatprep.subr.bf16.mxu0 0
      %624 = vmatpush1.bf16.xpose.msra.mxu0 0
      %625 = vmatprep.subr.bf16.mxu0 0
      %626 = vmatpush1.bf16.xpose.msra.mxu0 0
      %627 = vmatprep.subr.bf16.mxu0 0
      %628 = vmatpush1.bf16.xpose.msra.mxu0 0
      %629 = vmatprep.subr.bf16.mxu0 0
      %630 = vmatpush1.bf16.xpose.msra.mxu0 0
      %631 = vmatprep.subr.bf16.mxu0 0
      %632 = vmatpush1.bf16.xpose.msra.mxu0 0
      %633 = vmatprep.subr.bf16.mxu0 0
      %634 = vmatpush1.bf16.xpose.msra.mxu0 0
      %635 = vmatprep.mubr.bf16.mxu0 0
      %636 = vmatmul.mubr.bf16.gmra.mrb[0].mxu0 %v598
      %v637 = vpop.f32.mrb[0].mxu0
      %v638 = vadd.f32 0.0, %v637
      %v639 = vpop.f32.mrb[0].mxu0
      %v640 = vpop.f32.mrb[0].mxu0
      %v641 = vpop.f32.mrb[0].mxu0
      %642 = vdwg.mxu0
      %v643 = vmul.f32 %v638, 0.35355338
      %v644 = vsel %vm595, -inf, %v643
      %v645 = vsel %vm596, %v644, -inf
      %646 = vmax.xlane.f32.xlu0 %v645
      %v647 = vpop.xlane.xlu0 %646
      %v648 = vsub.f32 %v644, %v647
      %v649 = vmul.f32 %v648, 1.442695
      %v650 = vpow.pop %v649
      %v651 = vsel %vm596, %v650, 0.0
      %652 = vadd.xlane.f32.xlu0 %v651
      %v653 = vpop.xlane.xlu0 %652
      %v654 = vrcp.pop %v653
      %v655 = vmul.f32 %v650, %v654
      %v656 = vpack.c.bf16 %v655, %v655
      %658 = vrot.lane.b32.xlu0 %v587, 96
      %v659 = vpop.permute.xlu0 %658
      %v661 = vsel %vm596, %v656, 0
      %vm663 = vcmask 1043456
      %v665 = vsel %vm663, %v659, 0
      %667 = vmatprep.subr.bf16.mxu0 0
      %668 = vmatpush1.bf16.msra.mxu0 %v665
      %669 = vmatprep.subr.bf16.mxu0 0
      %670 = vmatpush1.bf16.msra.mxu0 0
      %671 = vmatprep.subr.bf16.mxu0 0
      %672 = vmatpush1.bf16.msra.mxu0 0
      %673 = vmatprep.subr.bf16.mxu0 0
      %674 = vmatpush1.bf16.msra.mxu0 0
      %675 = vmatprep.subr.bf16.mxu0 0
      %676 = vmatpush1.bf16.msra.mxu0 0
      %677 = vmatprep.subr.bf16.mxu0 0
      %678 = vmatpush1.bf16.msra.mxu0 0
      %679 = vmatprep.subr.bf16.mxu0 0
      %680 = vmatpush1.bf16.msra.mxu0 0
      %681 = vmatprep.subr.bf16.mxu0 0
      %682 = vmatpush1.bf16.msra.mxu0 0
      %683 = vmatprep.subr.bf16.mxu0 0
      %684 = vmatpush1.bf16.msra.mxu0 0
      %685 = vmatprep.subr.bf16.mxu0 0
      %686 = vmatpush1.bf16.msra.mxu0 0
      %687 = vmatprep.subr.bf16.mxu0 0
      %688 = vmatpush1.bf16.msra.mxu0 0
      %689 = vmatprep.subr.bf16.mxu0 0
      %690 = vmatpush1.bf16.msra.mxu0 0
      %691 = vmatprep.subr.bf16.mxu0 0
      %692 = vmatpush1.bf16.msra.mxu0 0
      %693 = vmatprep.subr.bf16.mxu0 0
      %694 = vmatpush1.bf16.msra.mxu0 0
      %695 = vmatprep.subr.bf16.mxu0 0
      %696 = vmatpush1.bf16.msra.mxu0 0
      %697 = vmatprep.subr.bf16.mxu0 0
      %698 = vmatpush1.bf16.msra.mxu0 0
      %699 = vmatprep.mubr.bf16.mxu0 0
      %700 = vmatmul.mubr.bf16.gmra.mrb[0].mxu0 %v661
      %v701 = vpop.f32.mrb[0].mxu0
      %v702 = vadd.f32 0.0, %v701
      %v703 = vpop.f32.mrb[0].mxu0
      %v704 = vpop.f32.mrb[0].mxu0
      %v705 = vpop.f32.mrb[0].mxu0
      %706 = vdwg.mxu0
      %708 = vrot.lane.b32.xlu0 %v520, 120
      %v709 = vpop.permute.xlu0 %708
      %710 = vrot.lane.b32.xlu0 %v587, 120
      %v711 = vpop.permute.xlu0 %710
      %v713 = vsel %vm596, %v709, 0
      %v716 = vsel %vm596, %v711, 0
      %718 = vmatprep.subr.bf16.mxu0 0
      %719 = vmatpush1.bf16.xpose.msra.mxu0 %v716
      %720 = vmatprep.subr.bf16.mxu0 0
      %721 = vmatpush1.bf16.xpose.msra.mxu0 0
      %722 = vmatprep.subr.bf16.mxu0 0
      %723 = vmatpush1.bf16.xpose.msra.mxu0 0
      %724 = vmatprep.subr.bf16.mxu0 0
      %725 = vmatpush1.bf16.xpose.msra.mxu0 0
      %726 = vmatprep.subr.bf16.mxu0 0
      %727 = vmatpush1.bf16.xpose.msra.mxu0 0
      %728 = vmatprep.subr.bf16.mxu0 0
      %729 = vmatpush1.bf16.xpose.msra.mxu0 0
      %730 = vmatprep.subr.bf16.mxu0 0
      %731 = vmatpush1.bf16.xpose.msra.mxu0 0
      %732 = vmatprep.subr.bf16.mxu0 0
      %733 = vmatpush1.bf16.xpose.msra.mxu0 0
      %734 = vmatprep.subr.bf16.mxu0 0
      %735 = vmatpush1.bf16.xpose.msra.mxu0 0
      %736 = vmatprep.subr.bf16.mxu0 0
      %737 = vmatpush1.bf16.xpose.msra.mxu0 0
      %738 = vmatprep.subr.bf16.mxu0 0
      %739 = vmatpush1.bf16.xpose.msra.mxu0 0
      %740 = vmatprep.subr.bf16.mxu0 0
      %741 = vmatpush1.bf16.xpose.msra.mxu0 0
      %742 = vmatprep.subr.bf16.mxu0 0
      %743 = vmatpush1.bf16.xpose.msra.mxu0 0
      %744 = vmatprep.subr.bf16.mxu0 0
      %745 = vmatpush1.bf16.xpose.msra.mxu0 0
      %746 = vmatprep.subr.bf16.mxu0 0
      %747 = vmatpush1.bf16.xpose.msra.mxu0 0
      %748 = vmatprep.subr.bf16.mxu0 0
      %749 = vmatpush1.bf16.xpose.msra.mxu0 0
      %750 = vmatprep.mubr.bf16.mxu0 0
      %751 = vmatmul.mubr.bf16.gmra.mrb[0].mxu0 %v713
      %v752 = vpop.f32.mrb[0].mxu0
      %v753 = vadd.f32 0.0, %v752
      %v754 = vpop.f32.mrb[0].mxu0
      %v755 = vpop.f32.mrb[0].mxu0
      %v756 = vpop.f32.mrb[0].mxu0
      %757 = vdwg.mxu0
      %v758 = vmul.f32 %v753, 0.35355338
      %v759 = vsel %vm595, -inf, %v758
      %v760 = vsel %vm596, %v759, -inf
      %761 = vmax.xlane.f32.xlu0 %v760
      %v762 = vpop.xlane.xlu0 %761
      %v763 = vsub.f32 %v759, %v762
      %v764 = vmul.f32 %v763, 1.442695
      %v765 = vpow.pop %v764
      %v766 = vsel %vm596, %v765, 0.0
      %767 = vadd.xlane.f32.xlu0 %v766
      %v768 = vpop.xlane.xlu0 %767
      %v769 = vrcp.pop %v768
      %v770 = vmul.f32 %v765, %v769
      %v771 = vpack.c.bf16 %v770, %v770
      %772 = vrot.lane.b32.xlu0 %v587, 88
      %v773 = vpop.permute.xlu0 %772
      %v775 = vsel %vm596, %v771, 0
      %v778 = vsel %vm663, %v773, 0
      %780 = vmatprep.subr.bf16.mxu0 0
      %781 = vmatpush1.bf16.msra.mxu0 %v778
      %782 = vmatprep.subr.bf16.mxu0 0
      %783 = vmatpush1.bf16.msra.mxu0 0
      %784 = vmatprep.subr.bf16.mxu0 0
      %785 = vmatpush1.bf16.msra.mxu0 0
      %786 = vmatprep.subr.bf16.mxu0 0
      %787 = vmatpush1.bf16.msra.mxu0 0
      %788 = vmatprep.subr.bf16.mxu0 0
      %789 = vmatpush1.bf16.msra.mxu0 0
      %790 = vmatprep.subr.bf16.mxu0 0
      %791 = vmatpush1.bf16.msra.mxu0 0
      %792 = vmatprep.subr.bf16.mxu0 0
      %793 = vmatpush1.bf16.msra.mxu0 0
      %794 = vmatprep.subr.bf16.mxu0 0
      %795 = vmatpush1.bf16.msra.mxu0 0
      %796 = vmatprep.subr.bf16.mxu0 0
      %797 = vmatpush1.bf16.msra.mxu0 0
      %798 = vmatprep.subr.bf16.mxu0 0
      %799 = vmatpush1.bf16.msra.mxu0 0
      %800 = vmatprep.subr.bf16.mxu0 0
      %801 = vmatpush1.bf16.msra.mxu0 0
      %802 = vmatprep.subr.bf16.mxu0 0
      %803 = vmatpush1.bf16.msra.mxu0 0
      %804 = vmatprep.subr.bf16.mxu0 0
      %805 = vmatpush1.bf16.msra.mxu0 0
      %806 = vmatprep.subr.bf16.mxu0 0
      %807 = vmatpush1.bf16.msra.mxu0 0
      %808 = vmatprep.subr.bf16.mxu0 0
      %809 = vmatpush1.bf16.msra.mxu0 0
      %810 = vmatprep.subr.bf16.mxu0 0
      %811 = vmatpush1.bf16.msra.mxu0 0
      %812 = vmatprep.mubr.bf16.mxu0 0
      %813 = vmatmul.mubr.bf16.gmra.mrb[0].mxu0 %v775
      %v814 = vpop.f32.mrb[0].mxu0
      %v815 = vadd.f32 0.0, %v814
      %v816 = vpop.f32.mrb[0].mxu0
      %v817 = vpop.f32.mrb[0].mxu0
      %v818 = vpop.f32.mrb[0].mxu0
      %819 = vdwg.mxu0
      %820 = vrot.lane.b32.xlu0 %v520, 112
      %v821 = vpop.permute.xlu0 %820
      %822 = vrot.lane.b32.xlu0 %v587, 112
      %v823 = vpop.permute.xlu0 %822
      %v825 = vsel %vm596, %v821, 0
      %v828 = vsel %vm596, %v823, 0
      %830 = vmatprep.subr.bf16.mxu0 0
      %831 = vmatpush1.bf16.xpose.msra.mxu0 %v828
      %832 = vmatprep.subr.bf16.mxu0 0
      %833 = vmatpush1.bf16.xpose.msra.mxu0 0
      %834 = vmatprep.subr.bf16.mxu0 0
      %835 = vmatpush1.bf16.xpose.msra.mxu0 0
      %836 = vmatprep.subr.bf16.mxu0 0
      %837 = vmatpush1.bf16.xpose.msra.mxu0 0
      %838 = vmatprep.subr.bf16.mxu0 0
      %839 = vmatpush1.bf16.xpose.msra.mxu0 0
      %840 = vmatprep.subr.bf16.mxu0 0
      %841 = vmatpush1.bf16.xpose.msra.mxu0 0
      %842 = vmatprep.subr.bf16.mxu0 0
      %843 = vmatpush1.bf16.xpose.msra.mxu0 0
      %844 = vmatprep.subr.bf16.mxu0 0
      %845 = vmatpush1.bf16.xpose.msra.mxu0 0
      %846 = vmatprep.subr.bf16.mxu0 0
      %847 = vmatpush1.bf16.xpose.msra.mxu0 0
      %848 = vmatprep.subr.bf16.mxu0 0
      %849 = vmatpush1.bf16.xpose.msra.mxu0 0
      %850 = vmatprep.subr.bf16.mxu0 0
      %851 = vmatpush1.bf16.xpose.msra.mxu0 0
      %852 = vmatprep.subr.bf16.mxu0 0
      %853 = vmatpush1.bf16.xpose.msra.mxu0 0
      %854 = vmatprep.subr.bf16.mxu0 0
      %855 = vmatpush1.bf16.xpose.msra.mxu0 0
      %856 = vmatprep.subr.bf16.mxu0 0
      %857 = vmatpush1.bf16.xpose.msra.mxu0 0
      %858 = vmatprep.subr.bf16.mxu0 0
      %859 = vmatpush1.bf16.xpose.msra.mxu0 0
      %860 = vmatprep.subr.bf16.mxu0 0
      %861 = vmatpush1.bf16.xpose.msra.mxu0 0
      %862 = vmatprep.mubr.bf16.mxu0 0
      %863 = vmatmul.mubr.bf16.gmra.mrb[0].mxu0 %v825
      %v864 = vpop.f32.mrb[0].mxu0
      %v865 = vadd.f32 0.0, %v864
      %v866 = vpop.f32.mrb[0].mxu0
      %v867 = vpop.f32.mrb[0].mxu0
      %v868 = vpop.f32.mrb[0].mxu0
      %869 = vdwg.mxu0
      %v870 = vmul.f32 %v865, 0.35355338
      %v871 = vsel %vm595, -inf, %v870
      %v872 = vsel %vm596, %v871, -inf
      %873 = vmax.xlane.f32.xlu0 %v872
      %v874 = vpop.xlane.xlu0 %873
      %v875 = vsub.f32 %v871, %v874
      %v876 = vmul.f32 %v875, 1.442695
      %v877 = vpow.pop %v876
      %v878 = vsel %vm596, %v877, 0.0
      %879 = vadd.xlane.f32.xlu0 %v878
      %v880 = vpop.xlane.xlu0 %879
      %v881 = vrcp.pop %v880
      %v882 = vmul.f32 %v877, %v881
      %v883 = vpack.c.bf16 %v882, %v882
      %884 = vrot.lane.b32.xlu0 %v587, 80
      %v885 = vpop.permute.xlu0 %884
      %v887 = vsel %vm596, %v883, 0
      %v890 = vsel %vm663, %v885, 0
      %892 = vmatprep.subr.bf16.mxu0 0
      %893 = vmatpush1.bf16.msra.mxu0 %v890
      %894 = vmatprep.subr.bf16.mxu0 0
      %895 = vmatpush1.bf16.msra.mxu0 0
      %896 = vmatprep.subr.bf16.mxu0 0
      %897 = vmatpush1.bf16.msra.mxu0 0
      %898 = vmatprep.subr.bf16.mxu0 0
      %899 = vmatpush1.bf16.msra.mxu0 0
      %900 = vmatprep.subr.bf16.mxu0 0
      %901 = vmatpush1.bf16.msra.mxu0 0
      %902 = vmatprep.subr.bf16.mxu0 0
      %903 = vmatpush1.bf16.msra.mxu0 0
      %904 = vmatprep.subr.bf16.mxu0 0
      %905 = vmatpush1.bf16.msra.mxu0 0
      %906 = vmatprep.subr.bf16.mxu0 0
      %907 = vmatpush1.bf16.msra.mxu0 0
      %908 = vmatprep.subr.bf16.mxu0 0
      %909 = vmatpush1.bf16.msra.mxu0 0
      %910 = vmatprep.subr.bf16.mxu0 0
      %911 = vmatpush1.bf16.msra.mxu0 0
      %912 = vmatprep.subr.bf16.mxu0 0
      %913 = vmatpush1.bf16.msra.mxu0 0
      %914 = vmatprep.subr.bf16.mxu0 0
      %915 = vmatpush1.bf16.msra.mxu0 0
      %916 = vmatprep.subr.bf16.mxu0 0
      %917 = vmatpush1.bf16.msra.mxu0 0
      %918 = vmatprep.subr.bf16.mxu0 0
      %919 = vmatpush1.bf16.msra.mxu0 0
      %920 = vmatprep.subr.bf16.mxu0 0
      %921 = vmatpush1.bf16.msra.mxu0 0
      %922 = vmatprep.subr.bf16.mxu0 0
      %923 = vmatpush1.bf16.msra.mxu0 0
      %924 = vmatprep.mubr.bf16.mxu0 0
      %925 = vmatmul.mubr.bf16.gmra.mrb[0].mxu0 %v887
      %v926 = vpop.f32.mrb[0].mxu0
      %v927 = vadd.f32 0.0, %v926
      %v928 = vpop.f32.mrb[0].mxu0
      %v929 = vpop.f32.mrb[0].mxu0
      %v930 = vpop.f32.mrb[0].mxu0
      %931 = vdwg.mxu0
      %932 = vrot.lane.b32.xlu0 %v520, 104
      %v933 = vpop.permute.xlu0 %932
      %934 = vrot.lane.b32.xlu0 %v587, 104
      %v935 = vpop.permute.xlu0 %934
      %v937 = vsel %vm596, %v933, 0
      %v940 = vsel %vm596, %v935, 0
      %942 = vmatprep.subr.bf16.mxu0 0
      %943 = vmatpush1.bf16.xpose.msra.mxu0 %v940
      %944 = vmatprep.subr.bf16.mxu0 0
      %945 = vmatpush1.bf16.xpose.msra.mxu0 0
      %946 = vmatprep.subr.bf16.mxu0 0
      %947 = vmatpush1.bf16.xpose.msra.mxu0 0
      %948 = vmatprep.subr.bf16.mxu0 0
      %949 = vmatpush1.bf16.xpose.msra.mxu0 0
      %950 = vmatprep.subr.bf16.mxu0 0
      %951 = vmatpush1.bf16.xpose.msra.mxu0 0
      %952 = vmatprep.subr.bf16.mxu0 0
      %953 = vmatpush1.bf16.xpose.msra.mxu0 0
      %954 = vmatprep.subr.bf16.mxu0 0
      %955 = vmatpush1.bf16.xpose.msra.mxu0 0
      %956 = vmatprep.subr.bf16.mxu0 0
      %957 = vmatpush1.bf16.xpose.msra.mxu0 0
      %958 = vmatprep.subr.bf16.mxu0 0
      %959 = vmatpush1.bf16.xpose.msra.mxu0 0
      %960 = vmatprep.subr.bf16.mxu0 0
      %961 = vmatpush1.bf16.xpose.msra.mxu0 0
      %962 = vmatprep.subr.bf16.mxu0 0
      %963 = vmatpush1.bf16.xpose.msra.mxu0 0
      %964 = vmatprep.subr.bf16.mxu0 0
      %965 = vmatpush1.bf16.xpose.msra.mxu0 0
      %966 = vmatprep.subr.bf16.mxu0 0
      %967 = vmatpush1.bf16.xpose.msra.mxu0 0
      %968 = vmatprep.subr.bf16.mxu0 0
      %969 = vmatpush1.bf16.xpose.msra.mxu0 0
      %970 = vmatprep.subr.bf16.mxu0 0
      %971 = vmatpush1.bf16.xpose.msra.mxu0 0
      %972 = vmatprep.subr.bf16.mxu0 0
      %973 = vmatpush1.bf16.xpose.msra.mxu0 0
      %974 = vmatprep.mubr.bf16.mxu0 0
      %975 = vmatmul.mubr.bf16.gmra.mrb[0].mxu0 %v937
      %v976 = vpop.f32.mrb[0].mxu0
      %v977 = vadd.f32 0.0, %v976
      %v978 = vpop.f32.mrb[0].mxu0
      %v979 = vpop.f32.mrb[0].mxu0
      %v980 = vpop.f32.mrb[0].mxu0
      %981 = vdwg.mxu0
      %v982 = vmul.f32 %v977, 0.35355338
      %v983 = vsel %vm595, -inf, %v982
      %v984 = vsel %vm596, %v983, -inf
      %985 = vmax.xlane.f32.xlu0 %v984
      %v986 = vpop.xlane.xlu0 %985
      %v987 = vsub.f32 %v983, %v986
      %v988 = vmul.f32 %v987, 1.442695
      %v989 = vpow.pop %v988
      %v990 = vsel %vm596, %v989, 0.0
      %991 = vadd.xlane.f32.xlu0 %v990
      %v992 = vpop.xlane.xlu0 %991
      %v993 = vrcp.pop %v992
      %v994 = vmul.f32 %v989, %v993
      %v995 = vpack.c.bf16 %v994, %v994
      %996 = vrot.lane.b32.xlu0 %v587, 72
      %v997 = vpop.permute.xlu0 %996
      %v999 = vsel %vm596, %v995, 0
      %v1002 = vsel %vm663, %v997, 0
      %1004 = vmatprep.subr.bf16.mxu0 0
      %1005 = vmatpush1.bf16.msra.mxu0 %v1002
      %1006 = vmatprep.subr.bf16.mxu0 0
      %1007 = vmatpush1.bf16.msra.mxu0 0
      %1008 = vmatprep.subr.bf16.mxu0 0
      %1009 = vmatpush1.bf16.msra.mxu0 0
      %1010 = vmatprep.subr.bf16.mxu0 0
      %1011 = vmatpush1.bf16.msra.mxu0 0
      %1012 = vmatprep.subr.bf16.mxu0 0
      %1013 = vmatpush1.bf16.msra.mxu0 0
      %1014 = vmatprep.subr.bf16.mxu0 0
      %1015 = vmatpush1.bf16.msra.mxu0 0
      %1016 = vmatprep.subr.bf16.mxu0 0
      %1017 = vmatpush1.bf16.msra.mxu0 0
      %1018 = vmatprep.subr.bf16.mxu0 0
      %1019 = vmatpush1.bf16.msra.mxu0 0
      %1020 = vmatprep.subr.bf16.mxu0 0
      %1021 = vmatpush1.bf16.msra.mxu0 0
      %1022 = vmatprep.subr.bf16.mxu0 0
      %1023 = vmatpush1.bf16.msra.mxu0 0
      %1024 = vmatprep.subr.bf16.mxu0 0
      %1025 = vmatpush1.bf16.msra.mxu0 0
      %1026 = vmatprep.subr.bf16.mxu0 0
      %1027 = vmatpush1.bf16.msra.mxu0 0
      %1028 = vmatprep.subr.bf16.mxu0 0
      %1029 = vmatpush1.bf16.msra.mxu0 0
      %1030 = vmatprep.subr.bf16.mxu0 0
      %1031 = vmatpush1.bf16.msra.mxu0 0
      %1032 = vmatprep.subr.bf16.mxu0 0
      %1033 = vmatpush1.bf16.msra.mxu0 0
      %1034 = vmatprep.subr.bf16.mxu0 0
      %1035 = vmatpush1.bf16.msra.mxu0 0
      %1036 = vmatprep.mubr.bf16.mxu0 0
      %1037 = vmatmul.mubr.bf16.gmra.mrb[0].mxu0 %v999
      %v1038 = vpop.f32.mrb[0].mxu0
      %v1039 = vadd.f32 0.0, %v1038
      %v1040 = vpop.f32.mrb[0].mxu0
      %v1041 = vpop.f32.mrb[0].mxu0
      %v1042 = vpop.f32.mrb[0].mxu0
      %1043 = vdwg.mxu0
      %1045 = vrot.lane.b32.xlu0 %v815, 8
      %v1046 = vpop.permute.xlu0 %1045
      %1049 = vrot.lane.b32.xlu0 %v927, 16
      %v1050 = vpop.permute.xlu0 %1049
      %1053 = vrot.lane.b32.xlu0 %v1039, 24
      %v1054 = vpop.permute.xlu0 %1053
      %v1056 = vsel %vm596, %v702, %v1046
      %vm1057 = vcmask 130048
      %v1058 = vsel %vm1057, %v1056, %v1050
      %vm1059 = vcmask 195584
      %v1060 = vsel %vm1059, %v1058, %v1054
      %v1061 = vpack.c.bf16 %v1060, %v1060
      %v1062 = vld [vmem:[%s8] sm:$0xf]
      %v1063 = vld [vmem:[%s8 + $0x4] sm:$0xf]
      %v1064 = vld [vmem:[%s8 + $0x8] sm:$0xf]
      %v1065 = vld [vmem:[%s8 + $0xc] sm:$0xf]
      %v1066 = vld [vmem:[%s9] sm:$0x1]
      %v1068 = vlaneseq
      %v1069 = vshrl.u32 %v1068, 7
      %v1070 = vsub.s32 0, %v1069
      %v1071 = vrot.slane %v1066, %v1070
      %v1077 = vunpack.c.l.b16 %v1062
      %v1078 = vunpack.c.l.b16 %v1063
      %v1079 = vunpack.c.l.b16 %v1064
      %v1080 = vunpack.c.l.b16 %v1065
      %v1081 = vpack.c.b16 %v1078, %v1077
      %v1082 = vpack.c.b16 %v1080, %v1079
      %v1086 = vsel %vm407, %v1061, 0
      %1088 = vmatprep.subr.bf16.mxu0 0
      %1089 = vmatpush1.bf16.msra.mxu0 %v1081
      %1090 = vmatprep.subr.bf16.mxu0 0
      %1091 = vmatpush1.bf16.msra.mxu0 %v1082
      %1092 = vmatprep.subr.bf16.mxu0 0
      %1093 = vmatpush1.bf16.msra.mxu0 0
      %1094 = vmatprep.subr.bf16.mxu0 0
      %1095 = vmatpush1.bf16.msra.mxu0 0
      %1096 = vmatprep.subr.bf16.mxu0 0
      %1097 = vmatpush1.bf16.msra.mxu0 0
      %1098 = vmatprep.subr.bf16.mxu0 0
      %1099 = vmatpush1.bf16.msra.mxu0 0
      %1100 = vmatprep.subr.bf16.mxu0 0
      %1101 = vmatpush1.bf16.msra.mxu0 0
      %1102 = vmatprep.subr.bf16.mxu0 0
      %1103 = vmatpush1.bf16.msra.mxu0 0
      %1104 = vmatprep.subr.bf16.mxu0 0
      %1105 = vmatpush1.bf16.msra.mxu0 0
      %1106 = vmatprep.subr.bf16.mxu0 0
      %1107 = vmatpush1.bf16.msra.mxu0 0
      %1108 = vmatprep.subr.bf16.mxu0 0
      %1109 = vmatpush1.bf16.msra.mxu0 0
      %1110 = vmatprep.subr.bf16.mxu0 0
      %1111 = vmatpush1.bf16.msra.mxu0 0
      %1112 = vmatprep.subr.bf16.mxu0 0
      %1113 = vmatpush1.bf16.msra.mxu0 0
      %1114 = vmatprep.subr.bf16.mxu0 0
      %1115 = vmatpush1.bf16.msra.mxu0 0
      %1116 = vmatprep.subr.bf16.mxu0 0
      %1117 = vmatpush1.bf16.msra.mxu0 0
      %1118 = vmatprep.subr.bf16.mxu0 0
      %1119 = vmatpush1.bf16.msra.mxu0 0
      %1120 = vmatprep.mubr.bf16.mxu0 0
      %1121 = vmatmul.mubr.bf16.gmra.mrb[0].mxu0 %v1086
      %v1122 = vpop.f32.mrb[0].mxu0
      %v1123 = vadd.f32 %v1071, %v1122
      %v1124 = vpop.f32.mrb[0].mxu0
      %v1125 = vpop.f32.mrb[0].mxu0
      %v1126 = vpop.f32.mrb[0].mxu0
      %1127 = vdwg.mxu0
      %v1128 = vadd.f32 %v404, %v1123
      %1129 = vst.msk [vmem:[%s402] sm:$0xff] %vm407, %v1128
      %p1130 = scmp.lt.s32.totalorder %s25, 1
      %s1131 = scalar_select %p1130, %s25, 1
      %p1132 = scmp.lt.s32.totalorder %s26, 0
      %s1133 = scalar_select %p1132, %s26, 0
      %s1134 = sadd.s32 %s1133, %s1131
      %s1135 = smul.addr %s1134, 8
      %s1136 = scalar_lea.vmem %s10, %s1135
      // Predicated region
      $region61: #{transformer_block.2} parent=59 // pred_check
        %p1137 = pneg %p275
      $region62: #{transformer_block.2} parent=59 // pred_check_branch
        %1139 = sbr.rel (%p1137) target = $region64
      $region63: #{transformer_block.2} parent=59 // pred_region
        _
      $region64: #{transformer_block.2} parent=59 // pred_fallthru
        _
    $region60: #{transformer_block.2} parent=5 // pred_fallthru
      _
    %p1140 = scmp.le.s32.totalorder 2, %s16
    // Predicated region
    $region65: #{transformer_block.2} parent=5 // pred_check
      %p1141 = pneg %p1140
    $region66: #{transformer_block.2} parent=5 // pred_check_branch
      %1143 = sbr.rel (%p1141) target = $region68
    $region67: #{transformer_block.2} parent=5 // pred_region
      %s1144 = ssub.s32 %s16, 2
      // Predicated region
      $region69: #{transformer_block.2} parent=67 // pred_check
        %p1145 = pneg %p281
      $region70: #{transformer_block.2} parent=67 // pred_check_branch
        %1147 = sbr.rel (%p1145) target = $region72
      $region71: #{transformer_block.2} parent=67 // pred_region
        %p1148 = scmp.lt.s32.totalorder %s27, 1
        %s1149 = scalar_select %p1148, %s27, 1
        %p1150 = scmp.lt.s32.totalorder %s28, 0
        %s1151 = scalar_select %p1150, %s28, 0
        %s1152 = sadd.s32 %s1151, %s1149
        %s1153 = smul.addr %s1152, 8
        %s1154 = scalar_lea.vmem %s10, %s1153
      $region72: #{transformer_block.2} parent=67 // pred_fallthru
        _
    $region68: #{transformer_block.2} parent=5 // pred_fallthru
      _
  $region6: #{transformer_block.2} parent=0 // loop_footer
    %s20 = sadd.s32 1, %s16
  $region7: #{transformer_block.2} parent=0 // loop_footer_branch
    %15 = sbr.rel target = $region3
  $region8: #{transformer_block.2} parent=0 // loop_exit
    _

// kernel: transformer_block.3
$region0: #{transformer_block.3}
  #allocation0 [shape = 'u32[]', space=smem, size = 0x4, offset = 0x4, fixed_abs, tag = 'smem constant byte address 0x4 - core index']
  #allocation1 [shape = 'u32[144,128]{1,0:T(1,128)}', space=vmem, size = 0x12000, scoped, tag = 'internal scratch']
  %s0 = inlined_call_operand.vmem [shape: f32[16,32], index: 0, kind: input, shape index: {}]
  %s1 = inlined_call_operand.vmem [shape: f32[1,32], index: 1, kind: input, shape index: {}]
  %s2 = inlined_call_operand.vmem [shape: f32[1,32], index: 2, kind: input, shape index: {}]
  %s3 = inlined_call_operand.vmem [shape: bf16[32,128], index: 3, kind: input, shape index: {}]
  %s4 = inlined_call_operand.vmem [shape: f32[1,128], index: 4, kind: input, shape index: {}]
  %s5 = inlined_call_operand.vmem [shape: bf16[128,32], index: 5, kind: input, shape index: {}]
  %s6 = inlined_call_operand.vmem [shape: f32[1,32], index: 6, kind: input, shape index: {}]
  %s7 = inlined_call_operand.hbm [shape: f32[16,32], index: 7, kind: output, shape index: {}]
  %s8 = sld [smem:[#allocation0]]
  $region38: #{transformer_block.3} parent=0
    _
  %s10 = ssub.s32 1, %s8
  %s11 = scalar_select 0, %s10, %s8
  $region1: #{transformer_block.3} parent=0
    #allocation2 [shape = 'u8[8192]{0}', space=vmem, size = 0x2000, scoped, tag = 'output window, operand 0, single buffered']
    #allocation3 [shape = 's32[1]{0}', space=sflag, size = 0x4, scoped, tag = 'scoped memory for transformer_block.3']
    %12 = vsyncpa [#allocation3], 0
    // Predicated region
    $region2: #{transformer_block.3} parent=1 // pred_check
      _
    $region3: #{transformer_block.3} parent=1 // pred_check_branch
      %14 = sbr.rel (0) target = $region5
    $region4: #{transformer_block.3} parent=1 // pred_region
      _
    $region5: #{transformer_block.3} parent=1 // pred_fallthru
      _
    // Predicated region
    $region6: #{transformer_block.3} parent=1 // pred_check
      _
    $region7: #{transformer_block.3} parent=1 // pred_check_branch
      %16 = sbr.rel (0) target = $region9
    $region8: #{transformer_block.3} parent=1 // pred_region
      _
    $region9: #{transformer_block.3} parent=1 // pred_fallthru
      _
    // Predicated region
    $region10: #{transformer_block.3} parent=1 // pred_check
      _
    $region11: #{transformer_block.3} parent=1 // pred_check_branch
      %18 = sbr.rel (0) target = $region13
    $region12: #{transformer_block.3} parent=1 // pred_region
      _
    $region13: #{transformer_block.3} parent=1 // pred_fallthru
      _
    // Predicated region
    $region14: #{transformer_block.3} parent=1 // pred_check
      _
    $region15: #{transformer_block.3} parent=1 // pred_check_branch
      %20 = sbr.rel (0) target = $region17
    $region16: #{transformer_block.3} parent=1 // pred_region
      _
    $region17: #{transformer_block.3} parent=1 // pred_fallthru
      _
    // Predicated region
    $region18: #{transformer_block.3} parent=1 // pred_check
      _
    $region19: #{transformer_block.3} parent=1 // pred_check_branch
      %22 = sbr.rel (0) target = $region21
    $region20: #{transformer_block.3} parent=1 // pred_region
      _
    $region21: #{transformer_block.3} parent=1 // pred_fallthru
      _
    // Predicated region
    $region22: #{transformer_block.3} parent=1 // pred_check
      _
    $region23: #{transformer_block.3} parent=1 // pred_check_branch
      %24 = sbr.rel (0) target = $region25
    $region24: #{transformer_block.3} parent=1 // pred_region
      _
    $region25: #{transformer_block.3} parent=1 // pred_fallthru
      _
    // Predicated region
    $region26: #{transformer_block.3} parent=1 // pred_check
      _
    $region27: #{transformer_block.3} parent=1 // pred_check_branch
      %26 = sbr.rel (0) target = $region29
    $region28: #{transformer_block.3} parent=1 // pred_region
      _
    $region29: #{transformer_block.3} parent=1 // pred_fallthru
      _
    %v28 = vld [vmem:[%s0] sm:$0xff]
    %v29 = vld [vmem:[%s0 + $0x8] sm:$0xff]
    %v30 = vld [vmem:[%s1] sm:$0x1]
    %v31 = vld [vmem:[%s2] sm:$0x1]
    %vm32 = vcmask 261120
    %v33 = vsel %vm32, %v28, 0.0
    %34 = vadd.xlane.f32.xlu0 %v33
    %v35 = vpop.xlane.xlu0 %34
    %v36 = vsel %vm32, %v29, 0.0
    %37 = vadd.xlane.f32.xlu0 %v36
    %v38 = vpop.xlane.xlu0 %37
    %v39 = vrcp.pop 32.0
    %v40 = vmul.f32 %v35, %v39
    %v41 = vmul.f32 %v38, %v39
    %v42 = vsub.f32 %v28, %v40
    %v43 = vsub.f32 %v29, %v41
    %v44 = vmul.f32 %v42, %v42
    %v45 = vmul.f32 %v43, %v43
    %v46 = vsel %vm32, %v44, 0.0
    %47 = vadd.xlane.f32.xlu0 %v46
    %v48 = vpop.xlane.xlu0 %47
    %v49 = vsel %vm32, %v45, 0.0
    %50 = vadd.xlane.f32.xlu0 %v49
    %v51 = vpop.xlane.xlu0 %50
    %v52 = vmul.f32 %v48, %v39
    %v53 = vmul.f32 %v51, %v39
    %v54 = vadd.f32 %v52, 1e-05
    %v55 = vadd.f32 %v53, 1e-05
    %v56 = vrsqrt.pop %v54
    %v57 = vrsqrt.pop %v55
    %v58 = vmul.f32 %v42, %v56
    %v59 = vmul.f32 %v43, %v57
    %v61 = vlaneseq
    %v62 = vshrl.u32 %v61, 7
    %v63 = vsub.s32 0, %v62
    %v64 = vrot.slane %v30, %v63
    %v66 = vmul.f32 %v58, %v64
    %v67 = vmul.f32 %v59, %v64
    %v69 = vlaneseq
    %v70 = vshrl.u32 %v69, 7
    %v71 = vsub.s32 0, %v70
    %v72 = vrot.slane %v31, %v71
    %v74 = vadd.f32 %v66, %v72
    %v75 = vadd.f32 %v67, %v72
    %v76 = vpack.c.bf16 %v75, %v74
    %v77 = vld [vmem:[%s3] sm:$0xf]
    %v78 = vld [vmem:[%s3 + $0x4] sm:$0xf]
    %v79 = vld [vmem:[%s3 + $0x8] sm:$0xf]
    %v80 = vld [vmem:[%s3 + $0xc] sm:$0xf]
    %v81 = vld [vmem:[%s4] sm:$0x1]
    %v83 = vlaneseq
    %v84 = vshrl.u32 %v83, 7
    %v85 = vsub.s32 0, %v84
    %v86 = vrot.slane %v81, %v85
    %v92 = vunpack.c.l.b16 %v77
    %v93 = vunpack.c.l.b16 %v78
    %v94 = vunpack.c.l.b16 %v79
    %v95 = vunpack.c.l.b16 %v80
    %v96 = vpack.c.b16 %v93, %v92
    %v97 = vpack.c.b16 %v95, %v94
    %v101 = vsel %vm32, %v76, 0
    %103 = vmatprep.subr.bf16.mxu0 0
    %104 = vmatpush1.bf16.msra.mxu0 %v96
    %105 = vmatprep.subr.bf16.mxu0 0
    %106 = vmatpush1.bf16.msra.mxu0 %v97
    %107 = vmatprep.subr.bf16.mxu0 0
    %108 = vmatpush1.bf16.msra.mxu0 0
    %109 = vmatprep.subr.bf16.mxu0 0
    %110 = vmatpush1.bf16.msra.mxu0 0
    %111 = vmatprep.subr.bf16.mxu0 0
    %112 = vmatpush1.bf16.msra.mxu0 0
    %113 = vmatprep.subr.bf16.mxu0 0
    %114 = vmatpush1.bf16.msra.mxu0 0
    %115 = vmatprep.subr.bf16.mxu0 0
    %116 = vmatpush1.bf16.msra.mxu0 0
    %117 = vmatprep.subr.bf16.mxu0 0
    %118 = vmatpush1.bf16.msra.mxu0 0
    %119 = vmatprep.subr.bf16.mxu0 0
    %120 = vmatpush1.bf16.msra.mxu0 0
    %121 = vmatprep.subr.bf16.mxu0 0
    %122 = vmatpush1.bf16.msra.mxu0 0
    %123 = vmatprep.subr.bf16.mxu0 0
    %124 = vmatpush1.bf16.msra.mxu0 0
    %125 = vmatprep.subr.bf16.mxu0 0
    %126 = vmatpush1.bf16.msra.mxu0 0
    %127 = vmatprep.subr.bf16.mxu0 0
    %128 = vmatpush1.bf16.msra.mxu0 0
    %129 = vmatprep.subr.bf16.mxu0 0
    %130 = vmatpush1.bf16.msra.mxu0 0
    %131 = vmatprep.subr.bf16.mxu0 0
    %132 = vmatpush1.bf16.msra.mxu0 0
    %133 = vmatprep.subr.bf16.mxu0 0
    %134 = vmatpush1.bf16.msra.mxu0 0
    %135 = vmatprep.mubr.bf16.mxu0 0
    %136 = vmatmul.mubr.bf16.gmra.mrb[0].mxu0 %v101
    %v137 = vpop.f32.mrb[0].mxu0
    %v138 = vadd.f32 %v86, %v137
    %v139 = vpop.f32.mrb[0].mxu0
    %v140 = vpop.f32.mrb[0].mxu0
    %v141 = vadd.f32 %v86, %v140
    %v142 = vpop.f32.mrb[0].mxu0
    %143 = vdwg.mxu0
    %v144 = vmul.f32 %v138, 0.5
    %v145 = vmul.f32 %v141, 0.5
    %v146 = vmul.f32 %v138, 0.044715
    %v147 = vmul.f32 %v141, 0.044715
    %v148 = vmul.f32 %v146, %v138
    %v149 = vmul.f32 %v147, %v141
    %v150 = vmul.f32 %v148, %v138
    %v151 = vmul.f32 %v149, %v141
    %v152 = vadd.f32 %v138, %v150
    %v153 = vadd.f32 %v141, %v151
    %v154 = vmul.f32 %v152, 0.7978846
    %v155 = vmul.f32 %v153, 0.7978846
    %v156 = vtanh.pop %v154
    %v157 = vtanh.pop %v155
    %v158 = vadd.f32 %v156, 1.0
    %v159 = vadd.f32 %v157, 1.0
    %v160 = vmul.f32 %v144, %v158
    %v161 = vmul.f32 %v145, %v159
    %v162 = vpack.c.bf16 %v161, %v160
    %v163 = vld [vmem:[%s5] sm:$0xf]
    %v164 = vld [vmem:[%s5 + $0x4] sm:$0xf]
    %v165 = vld [vmem:[%s5 + $0x8] sm:$0xf]
    %v166 = vld [vmem:[%s5 + $0xc] sm:$0xf]
    %v167 = vld [vmem:[%s5 + $0x10] sm:$0xf]
    %v168 = vld [vmem:[%s5 + $0x14] sm:$0xf]
    %v169 = vld [vmem:[%s5 + $0x18] sm:$0xf]
    %v170 = vld [vmem:[%s5 + $0x1c] sm:$0xf]
    %v171 = vld [vmem:[%s5 + $0x20] sm:$0xf]
    %v172 = vld [vmem:[%s5 + $0x24] sm:$0xf]
    %v173 = vld [vmem:[%s5 + $0x28] sm:$0xf]
    %v174 = vld [vmem:[%s5 + $0x2c] sm:$0xf]
    %v175 = vld [vmem:[%s5 + $0x30] sm:$0xf]
    %v176 = vld [vmem:[%s5 + $0x34] sm:$0xf]
    %v177 = vld [vmem:[%s5 + $0x38] sm:$0xf]
    %v178 = vld [vmem:[%s5 + $0x3c] sm:$0xf]
    %v179 = vld [vmem:[%s6] sm:$0x1]
    %v181 = vlaneseq
    %v182 = vshrl.u32 %v181, 7
    %v183 = vsub.s32 0, %v182
    %v184 = vrot.slane %v179, %v183
    %v202 = vunpack.c.l.b16 %v163
    %v203 = vunpack.c.l.b16 %v164
    %v204 = vunpack.c.l.b16 %v165
    %v205 = vunpack.c.l.b16 %v166
    %v206 = vunpack.c.l.b16 %v167
    %v207 = vunpack.c.l.b16 %v168
    %v208 = vunpack.c.l.b16 %v169
    %v209 = vunpack.c.l.b16 %v170
    %v210 = vunpack.c.l.b16 %v171
    %v211 = vunpack.c.l.b16 %v172
    %v212 = vunpack.c.l.b16 %v173
    %v213 = vunpack.c.l.b16 %v174
    %v214 = vunpack.c.l.b16 %v175
    %v215 = vunpack.c.l.b16 %v176
    %v216 = vunpack.c.l.b16 %v177
    %v217 = vunpack.c.l.b16 %v178
    %v218 = vpack.c.b16 %v203, %v202
    %v219 = vpack.c.b16 %v205, %v204
    %v220 = vpack.c.b16 %v207, %v206
    %v221 = vpack.c.b16 %v209, %v208
    %v222 = vpack.c.b16 %v211, %v210
    %v223 = vpack.c.b16 %v213, %v212
    %v224 = vpack.c.b16 %v215, %v214
    %v225 = vpack.c.b16 %v217, %v216
    %234 = vmatprep.subr.bf16.mxu0 0
    %235 = vmatpush1.bf16.msra.mxu0 %v218
    %236 = vmatprep.subr.bf16.mxu0 0
    %237 = vmatpush1.bf16.msra.mxu0 %v219
    %238 = vmatprep.subr.bf16.mxu0 0
    %239 = vmatpush1.bf16.msra.mxu0 %v220
    %240 = vmatprep.subr.bf16.mxu0 0
    %241 = vmatpush1.bf16.msra.mxu0 %v221
    %242 = vmatprep.subr.bf16.mxu0 0
    %243 = vmatpush1.bf16.msra.mxu0 %v222
    %244 = vmatprep.subr.bf16.mxu0 0
    %245 = vmatpush1.bf16.msra.mxu0 %v223
    %246 = vmatprep.subr.bf16.mxu0 0
    %247 = vmatpush1.bf16.msra.mxu0 %v224
    %248 = vmatprep.subr.bf16.mxu0 0
    %249 = vmatpush1.bf16.msra.mxu0 %v225
    %250 = vmatprep.subr.bf16.mxu0 0
    %251 = vmatpush1.bf16.msra.mxu0 0
    %252 = vmatprep.subr.bf16.mxu0 0
    %253 = vmatpush1.bf16.msra.mxu0 0
    %254 = vmatprep.subr.bf16.mxu0 0
    %255 = vmatpush1.bf16.msra.mxu0 0
    %256 = vmatprep.subr.bf16.mxu0 0
    %257 = vmatpush1.bf16.msra.mxu0 0
    %258 = vmatprep.subr.bf16.mxu0 0
    %259 = vmatpush1.bf16.msra.mxu0 0
    %260 = vmatprep.subr.bf16.mxu0 0
    %261 = vmatpush1.bf16.msra.mxu0 0
    %262 = vmatprep.subr.bf16.mxu0 0
    %263 = vmatpush1.bf16.msra.mxu0 0
    %264 = vmatprep.subr.bf16.mxu0 0
    %265 = vmatpush1.bf16.msra.mxu0 0
    %266 = vmatprep.mubr.bf16.mxu0 0
    %267 = vmatmul.mubr.bf16.gmra.mrb[0].mxu0 %v162
    %v268 = vpop.f32.mrb[0].mxu0
    %v269 = vadd.f32 %v184, %v268
    %v270 = vpop.f32.mrb[0].mxu0
    %v271 = vpop.f32.mrb[0].mxu0
    %v272 = vadd.f32 %v184, %v271
    %v273 = vpop.f32.mrb[0].mxu0
    %274 = vdwg.mxu0
    %v275 = vadd.f32 %v28, %v269
    %v276 = vadd.f32 %v29, %v272
    %277 = vst.msk [vmem:[#allocation2] sm:$0xff] %vm32, %v275
    %278 = vst.msk [vmem:[#allocation2 + $0x8] sm:$0xff] %vm32, %v276
    // Predicated region
    $region30: #{transformer_block.3} parent=1 // pred_check
      _
    $region31: #{transformer_block.3} parent=1 // pred_check_branch
      %280 = sbr.rel (0) target = $region33
    $region32: #{transformer_block.3} parent=1 // pred_region
      %s282 = ssub.s32 256, 256
      %283 = vsyncadd [#allocation3], %s282
      %s284 = sshll.u32 [#allocation2], 4
      %s285 = int_to_ptr.vmem [resolvable:$true] %s284
      %290 = dma.vmem_to_hbm [thread:$0]  %s285, 256, %s7, [#allocation3], 128, 128, 8
    $region33: #{transformer_block.3} parent=1 // pred_fallthru
      _
    // Predicated region
    $region34: #{transformer_block.3} parent=1 // pred_check
      _
    $region35: #{transformer_block.3} parent=1 // pred_check_branch
      %292 = sbr.rel (0) target = $region37
    $region36: #{transformer_block.3} parent=1 // pred_region
      %293 = dma.done [#allocation3], 256
    $region37: #{transformer_block.3} parent=1 // pred_fallthru
      _
    %294 = vsyncpa [#allocation3], 1

</llo_original>
